<compile_context>
chip_gen: v5e
topology: v5e:2x2
jax: 0.10.0
libtpu: 0.0.40
codegen_flags: <defaults>
</compile_context>

<pallas_src>
import functools

import jax
import jax.numpy as jnp
from jax import lax
from jax.experimental import pallas as pl
from jax.experimental.pallas import tpu as pltpu

CIN_PAD = 8      # pad the 3 input channels to 8 (zero channels x zero weights -> exact)
COUT_HID = 64    # hidden channels of conv1 / conv2


# --------------------------------------------------------------------------- #
# Kernel
# --------------------------------------------------------------------------- #
def _fused_sr_kernel(x_ref, w1_ref, b1_ref, w2_ref, b2_ref, w3_ref, b3_ref,
                     mask_ref, out_ref, stk_ref, *, tile_h, Wp, cout3):
    t = pl.program_id(1)
    t_last = pl.num_programs(1) - 1

    npix0 = (tile_h + 6) * Wp   # x slab payload        (image rows r0-3 .. r0+tile_h+2)
    npix1 = (tile_h + 4) * Wp   # h1 payload            (image rows r0-2 .. r0+tile_h+1)
    npix2 = (tile_h + 2) * Wp   # h2 payload            (image rows r0-1 .. r0+tile_h)
    npix3 = tile_h * Wp         # conv3 output payload  (image rows r0   .. r0+tile_h-1)

    f32 = jnp.float32
    bf16 = jnp.bfloat16

    def conv(w_ref, b_ref, k_rows, c0, npix_out):
        # 3 accumulating MXU dots over the kh row offsets of the shared kw-stack.
        y = b_ref[...].astype(f32)
        for kh in range(3):
            off = c0 + kh * Wp
            y = y + jnp.dot(w_ref[kh], stk_ref[0:k_rows, off:off + npix_out],
                            preferred_element_type=f32)
        return y

    def store_kw_stack(val_bf16, npix):
        # Zero the 2-lane guards first (they ARE the correct seam zeros for the
        # flat pixels -1 / npix), then write the three kw-shifted copies: copy
        # kw lives in rows [kw*64, (kw+1)*64) at lane offset (2 - kw).  The
        # consuming dots read lanes [1, 1 + 2*Wp + npix_out).
        stk_ref[:, 0:2] = jnp.zeros((3 * COUT_HID, 2), bf16)
        stk_ref[:, npix:npix + 2] = jnp.zeros((3 * COUT_HID, 2), bf16)
        for kw in range(3):
            a = 2 - kw
            stk_ref[kw * COUT_HID:(kw + 1) * COUT_HID, a:a + npix] = val_bf16

    # ---- conv1: kw-stack the (8ch) input slab, 3 accumulating dots (K = 24) ----
    for kw in range(3):
        stk_ref[kw * CIN_PAD:(kw + 1) * CIN_PAD, 0:npix0] = \
            x_ref[0, 0, :, kw:kw + npix0]

    h = conv(w1_ref, b1_ref, 3 * CIN_PAD, 0, npix1)
    h = jnp.maximum(h, 0.0)
    # Seam/pad-column mask (next conv's SAME column padding) fused with the
    # out-of-image halo-row zeroing (next conv's SAME row padding).
    pix = lax.broadcasted_iota(jnp.int32, (1, npix1), 1)
    lo = jnp.where(t == 0, 2 * Wp, 0)
    hi = jnp.where(t == t_last, npix1 - 2 * Wp, npix1)
    keep = (mask_ref[:, :npix1] > 0.5) & (pix >= lo) & (pix < hi)
    h1 = jnp.where(keep, h, 0.0).astype(bf16)            # (64, npix1)

    # ---- conv2 (K = 192) --------------------------------------------------------
    store_kw_stack(h1, npix1)
    h = conv(w2_ref, b2_ref, 3 * COUT_HID, 1, npix2)
    h = jnp.maximum(h, 0.0)
    pix = lax.broadcasted_iota(jnp.int32, (1, npix2), 1)
    lo = jnp.where(t == 0, Wp, 0)
    hi = jnp.where(t == t_last, npix2 - Wp, npix2)
    keep = (mask_ref[:, :npix2] > 0.5) & (pix >= lo) & (pix < hi)
    h2 = jnp.where(keep, h, 0.0).astype(bf16)            # (64, npix2)

    # ---- conv3 (padded columns are cropped by the wrapper) ----------------------
    store_kw_stack(h2, npix2)
    y = conv(w3_ref, b3_ref, 3 * COUT_HID, 1, npix3)
    out_ref[...] = y.astype(bf16)[None, None]


# --------------------------------------------------------------------------- #
# Tiling heuristics (generation aware)
# --------------------------------------------------------------------------- #
def _vmem_bytes_estimate(tile_h, Wp, cout3):
    npix0 = (tile_h + 6) * Wp
    npix1 = (tile_h + 4) * Wp
    npix3 = tile_h * Wp
    b = 2 * 3 * COUT_HID * npix0                    # shared kw-stack scratch (bf16)
    b += 2 * 2 * CIN_PAD * (npix0 + 2)              # double-buffered input slab block
    b += 2 * 2 * cout3 * npix3                      # double-buffered bf16 output block
    b += 2 * 4 * COUT_HID * npix1                   # ~two live f32 layer temporaries
    b += 2 * 3 * COUT_HID * npix1                   # matmul-operand staging headroom
    b += 2 * 3 * (COUT_HID * 3 * CIN_PAD + COUT_HID * 3 * COUT_HID + cout3 * 3 * COUT_HID)
    b += 4 * (2 * COUT_HID + cout3) + 4 * npix1
    return b


def _vmem_budget_and_limit():
    phys = 64 * 1024 * 1024                         # conservative default (v7x VMEM)
    try:
        info = pltpu.get_tpu_info()
        cap = getattr(info, "vmem_capacity_bytes", None)
        if cap:
            phys = int(cap)
    except Exception:
        pass
    limit = min(int(phys * 0.85), 112 * 1024 * 1024)
    budget = int(phys * 0.60)
    return budget, limit


def _valid_tile_h(H, th):
    # Halo-row zeroing happens only on the first / last tile; with the clamped
    # overlapping last tile that is sufficient iff H % th != 1 (and th >= 2),
    # or there is a single tile.
    if th < 1 or th > H:
        return False
    if th == H:
        return True
    return th >= 2 and H % th != 1


def _fix_tile_h(H, th):
    th = max(1, min(int(th), H))
    if _valid_tile_h(H, th):
        return th
    for cand in range(th - 1, 1, -1):
        if _valid_tile_h(H, cand):
            return cand
    return H


def _pick_tile_h(N, H, Wp, cout3, budget_bytes, cap=128):
    cap = min(cap, H)
    cands = [th for th in range(2, cap + 1)
             if _valid_tile_h(H, th)
             and _vmem_bytes_estimate(th, Wp, cout3) <= budget_bytes]
    if not cands:
        return _fix_tile_h(H, 2)
    best = max(cands)
    total = lambda th: N * (-(-H // th))
    if total(best) % 2 != 0:
        # v7x 2-TC balance: prefer an even total tile count when it is cheap.
        even = [th for th in cands if total(th) % 2 == 0 and 3 * th >= 2 * best]
        if even:
            best = max(even)
    return best


# --------------------------------------------------------------------------- #
# Params / wrapper
# --------------------------------------------------------------------------- #
def init_params(key, scale_factor):
    # HWIO weights (3,3,cin,cout) + bias (cout,), deterministic synthetic init.
    specs = [(3, 64), (64, 64), (64, 3 * scale_factor ** 2)]
    params = []
    for i, (cin, cout) in enumerate(specs):
        kw_key, kb_key = jax.random.split(jax.random.fold_in(key, i))
        w = jax.random.normal(kw_key, (3, 3, cin, cout), jnp.float32) * 0.05
        b = jax.random.normal(kb_key, (cout,), jnp.float32) * 0.05
        params.append((w, b))
    return params


@functools.partial(jax.jit, static_argnames=("scale_factor", "tile_h"))
def super_resolution_forward(x_nchw, params, scale_factor=2, tile_h=None):
    N, Cin, H, W = x_nchw.shape
    assert Cin == 3
    r = scale_factor
    cout3 = 3 * r * r

    # Row pitch: at least 1 zero column left / right; pad the right side up to
    # a 128-aligned pitch when the waste is small (keeps kh*Wp slices aligned).
    Wp = W + 2
    aligned = ((Wp + 127) // 128) * 128
    if aligned - Wp <= max(0, Wp // 16):
        Wp = aligned

    budget, vmem_limit = _vmem_budget_and_limit()
    if tile_h is None:
        tile_h = _pick_tile_h(N, H, Wp, cout3, budget)
    tile_h = _fix_tile_h(H, tile_h)
    n_tiles = -(-H // tile_h)

    npix0 = (tile_h + 6) * Wp
    npix1 = (tile_h + 4) * Wp
    npix3 = tile_h * Wp

    (w1, b1), (w2, b2), (w3, b3) = params

    def to_stacked(w, cin_pad=None):
        # (3,3,cin,cout) -> (3, cout, 3*cin): ws[kh, co, kw*cin + c] = w[kh, kw, c, co]
        cin = w.shape[2]
        if cin_pad is not None and cin_pad > cin:
            w = jnp.pad(w, ((0, 0), (0, 0), (0, cin_pad - cin), (0, 0)))
        wt = jnp.transpose(w, (0, 3, 1, 2))              # (kh, cout, kw, cin)
        return wt.reshape(wt.shape[0], wt.shape[1], -1).astype(jnp.bfloat16)

    w1s = to_stacked(w1, CIN_PAD)                        # (3, 64, 24)
    w2s = to_stacked(w2)                                 # (3, 64, 192)
    w3s = to_stacked(w3)                                 # (3, cout3, 192)
    b1c = b1.reshape(-1, 1).astype(jnp.float32)
    b2c = b2.reshape(-1, 1).astype(jnp.float32)
    b3c = b3.reshape(-1, 1).astype(jnp.float32)

    # Padded input (3 zero rows top/bottom, zero columns, zero channel pad),
    # flattened per image with a 1-pixel guard so kw = 0/2 copies stay in-bounds.
    xb = x_nchw.astype(jnp.bfloat16)
    xb = jnp.pad(xb, ((0, 0), (0, CIN_PAD - 3), (3, 3), (1, Wp - W - 1)))   # (N,8,H+6,Wp)
    xflat = xb.reshape(N, CIN_PAD, (H + 6) * Wp)
    xflat = jnp.pad(xflat, ((0, 0), (0, 0), (1, 1)))

    # Per-tile overlapping halo slabs: Pallas auto-pipelines (double-buffers)
    # these blocks, replacing the previously exposed manual DMA.  The last tile
    # is clamped so non-divisible H just recomputes a few overlapping rows.
    row_starts = [min(t * tile_h, H - tile_h) for t in range(n_tiles)]
    slabs = [lax.slice_in_dim(xflat, rs * Wp, rs * Wp + npix0 + 2, axis=2)
             for rs in row_starts]
    x_slabs = jnp.stack(slabs, axis=1)                   # (N, n_tiles, 8, npix0 + 2)

    # Keep only real image columns (1..W): padded columns of h1/h2 must be
    # exactly zero because they are the next conv's SAME column padding.
    cols = jnp.arange(npix1, dtype=jnp.int32) % Wp
    mask = ((cols >= 1) & (cols <= W)).astype(jnp.float32).reshape(1, npix1)

    kernel = functools.partial(_fused_sr_kernel, tile_h=tile_h, Wp=Wp, cout3=cout3)

    flops = 2 * N * H * W * (COUT_HID * 3 * 3 * CIN_PAD + COUT_HID * 576 + cout3 * 576)
    bytes_accessed = int(x_slabs.size * 2 + N * n_tiles * cout3 * npix3 * 2
                         + (w1s.size + w2s.size + w3s.size) * 2)

    out = pl.pallas_call(
        kernel,
        out_shape=jax.ShapeDtypeStruct((N, n_tiles, cout3, npix3), jnp.bfloat16),
        grid_spec=pltpu.PrefetchScalarGridSpec(
            num_scalar_prefetch=0,
            grid=(N, n_tiles),
            in_specs=[
                pl.BlockSpec((1, 1, CIN_PAD, npix0 + 2), lambda n, t: (n, t, 0, 0)),
                pl.BlockSpec((3, COUT_HID, 3 * CIN_PAD), lambda n, t: (0, 0, 0)),   # w1
                pl.BlockSpec((COUT_HID, 1), lambda n, t: (0, 0)),                   # b1
                pl.BlockSpec((3, COUT_HID, 3 * COUT_HID), lambda n, t: (0, 0, 0)),  # w2
                pl.BlockSpec((COUT_HID, 1), lambda n, t: (0, 0)),                   # b2
                pl.BlockSpec((3, cout3, 3 * COUT_HID), lambda n, t: (0, 0, 0)),     # w3
                pl.BlockSpec((cout3, 1), lambda n, t: (0, 0)),                      # b3
                pl.BlockSpec((1, npix1), lambda n, t: (0, 0)),                      # column mask
            ],
            out_specs=pl.BlockSpec((1, 1, cout3, npix3), lambda n, t: (n, t, 0, 0)),
            scratch_shapes=[pltpu.VMEM((3 * COUT_HID, npix0), jnp.bfloat16)],
        ),
        compiler_params=pltpu.CompilerParams(
            dimension_semantics=("parallel", "parallel"),
            vmem_limit_bytes=vmem_limit),
        cost_estimate=pl.CostEstimate(flops=int(flops), transcendentals=0,
                                      bytes_accessed=bytes_accessed),
    )(x_slabs, w1s, b1c, w2s, b2c, w3s, b3c, mask)

    # (N, n_tiles, cout3, tile_h*Wp) -> (N, cout3, H, Wp): stitch tiles (the
    # last tile may overlap when H % tile_h != 0), crop padded columns,
    # PixelShuffle.  Pure data movement on the small final tensor.
    y = out.reshape(N, n_tiles, cout3, tile_h, Wp)
    if H == n_tiles * tile_h:
        img = jnp.transpose(y, (0, 2, 1, 3, 4)).reshape(N, cout3, H, Wp)
    else:
        rem = H - (n_tiles - 1) * tile_h
        parts = [y[:, t] for t in range(n_tiles - 1)]
        parts.append(y[:, n_tiles - 1, :, tile_h - rem:])
        img = jnp.concatenate(parts, axis=2)
    img = img[:, :, :, 1:1 + W].astype(jnp.float32)       # (N, cout3, H, W)
    img = img.reshape(N, 3, r, r, H, W)
    img = jnp.transpose(img, (0, 1, 4, 2, 5, 3)).reshape(N, 3, H * r, W * r)
    return img


@functools.partial(jax.jit, static_argnames=("scale_factor",))
def reference_forward(x_nchw, params, scale_factor=2):
    # Pure-JAX reference (f32 lax.conv) for correctness checking.
    dn = ("NCHW", "HWIO", "NCHW")

    def conv(h, w, b, relu):
        y = jax.lax.conv_general_dilated(h, w, (1, 1), "SAME", dimension_numbers=dn)
        y = y + b.reshape(1, -1, 1, 1)
        return jnp.maximum(y, 0.0) if relu else y

    (w1, b1), (w2, b2), (w3, b3) = params
    h = conv(x_nchw, w1, b1, True)
    h = conv(h, w2, b2, True)
    h = conv(h, w3, b3, False)
    N, _, H, W = h.shape
    r = scale_factor
    h = h.reshape(N, 3, r, r, H, W)
    h = jnp.transpose(h, (0, 1, 4, 2, 5, 3)).reshape(N, 3, H * r, W * r)
    return h


if __name__ == "__main__":
    key = jax.random.PRNGKey(0)

    # Test 1: batch=2, 3x16x16, scale 2, two spatial tiles (both boundary tiles).
    scale = 2
    x = jax.random.normal(jax.random.fold_in(key, 99), (2, 3, 16, 16), jnp.float32)
    params = init_params(key, scale)
    out = jax.block_until_ready(
        super_resolution_forward(x, params, scale_factor=scale, tile_h=8))
    assert out.shape == (2, 3, 32, 32), out.shape
    ref = jax.block_until_ready(reference_forward(x, params, scale_factor=scale))
    assert jnp.allclose(out, ref, atol=2e-2, rtol=2e-2), "mismatch vs reference (scale 2)"

    # Test 2: 3 tiles (interior-tile path) and scale 3 (cout3 = 27).
    scale3 = 3
    x2 = jax.random.normal(jax.random.fold_in(key, 7), (1, 3, 24, 16), jnp.float32)
    params3 = init_params(jax.random.fold_in(key, 1), scale3)
    out2 = jax.block_until_ready(
        super_resolution_forward(x2, params3, scale_factor=scale3, tile_h=8))
    assert out2.shape == (1, 3, 72, 48), out2.shape
    ref2 = jax.block_until_ready(reference_forward(x2, params3, scale_factor=scale3))
    assert jnp.allclose(out2, ref2, atol=2e-2, rtol=2e-2), "mismatch vs reference (scale 3)"

    # Test 3: non-divisible H (clamped overlapping last tile).
    x3 = jax.random.normal(jax.random.fold_in(key, 3), (1, 3, 20, 16), jnp.float32)
    out3 = jax.block_until_ready(
        super_resolution_forward(x3, params, scale_factor=scale, tile_h=8))
    assert out3.shape == (1, 3, 40, 32), out3.shape
    ref3 = jax.block_until_ready(reference_forward(x3, params, scale_factor=scale))
    assert jnp.allclose(out3, ref3, atol=2e-2, rtol=2e-2), "mismatch vs reference (remainder)"

    # Test 4: auto tile picking (exercises get_tpu_info budget + single-tile path).
    out4 = jax.block_until_ready(
        super_resolution_forward(x, params, scale_factor=scale))
    assert jnp.allclose(out4, ref, atol=2e-2, rtol=2e-2), "mismatch vs reference (auto tile)"

    print("KERNEL_OK")
</pallas_src>

<mosaic_0001>
module attributes {stable_mosaic.version = 11 : i64} {
  func.func @_fused_sr_kernel(%arg0: i32, %arg1: i32, %arg2: memref<1x1x8x254xbf16, #tpu.memory_space<vmem>>, %arg3: memref<3x64x24xbf16, #tpu.memory_space<vmem>>, %arg4: memref<64x1xf32, #tpu.memory_space<vmem>>, %arg5: memref<3x64x192xbf16, #tpu.memory_space<vmem>>, %arg6: memref<64x1xf32, #tpu.memory_space<vmem>>, %arg7: memref<3x12x192xbf16, #tpu.memory_space<vmem>>, %arg8: memref<12x1xf32, #tpu.memory_space<vmem>>, %arg9: memref<1x216xf32, #tpu.memory_space<vmem>>, %arg10: memref<1x1x12x144xbf16, #tpu.memory_space<vmem>>, %arg11: memref<192x252xbf16, #tpu.memory_space<vmem>>) attributes {dimension_semantics = [#tpu.dimension_semantics<parallel>, #tpu.dimension_semantics<parallel>], iteration_bounds = array<i64: 2, 2>, scalar_prefetch = 0 : i64, scratch_operands = 1 : i64, tpu.core_type = #tpu.core_type<tc>, window_params = [{transform_indices = @transform_0, window_bounds = array<i64: 1, 1, 8, 254>}, {pipeline_mode = #tpu.pipeline_mode<synchronous>, transform_indices = @transform_1, window_bounds = array<i64: 3, 64, 24>}, {pipeline_mode = #tpu.pipeline_mode<synchronous>, transform_indices = @transform_2, window_bounds = array<i64: 64, 1>}, {pipeline_mode = #tpu.pipeline_mode<synchronous>, transform_indices = @transform_3, window_bounds = array<i64: 3, 64, 192>}, {pipeline_mode = #tpu.pipeline_mode<synchronous>, transform_indices = @transform_4, window_bounds = array<i64: 64, 1>}, {pipeline_mode = #tpu.pipeline_mode<synchronous>, transform_indices = @transform_5, window_bounds = array<i64: 3, 12, 192>}, {pipeline_mode = #tpu.pipeline_mode<synchronous>, transform_indices = @transform_6, window_bounds = array<i64: 12, 1>}, {pipeline_mode = #tpu.pipeline_mode<synchronous>, transform_indices = @transform_7, window_bounds = array<i64: 1, 216>}, {transform_indices = @transform_8, window_bounds = array<i64: 1, 1, 12, 144>}]} {
    %c0 = arith.constant 0 : index
    %c0_0 = arith.constant 0 : index
    %c0_1 = arith.constant 0 : index
    %c0_2 = arith.constant 0 : index
    %0 = vector.load %arg2[%c0, %c0_0, %c0_1, %c0_2] : memref<1x1x8x254xbf16, #tpu.memory_space<vmem>>, vector<1x1x8x252xbf16>
    %1 = vector.shape_cast %0 : vector<1x1x8x252xbf16> to vector<8x252xbf16>
    %c0_3 = arith.constant 0 : index
    %c0_4 = arith.constant 0 : index
    %2 = vector.load %arg11[%c0_3, %c0_4] : memref<192x252xbf16, #tpu.memory_space<vmem>>, vector<8x252xbf16>
    tpu.vector_store %arg11[%c0_3, %c0_4], %1 {strides = array<i32>} : memref<192x252xbf16, #tpu.memory_space<vmem>>, vector<8x252xbf16>,
    %c0_5 = arith.constant 0 : index
    %c0_6 = arith.constant 0 : index
    %c0_7 = arith.constant 0 : index
    %c1 = arith.constant 1 : index
    %3 = vector.load %arg2[%c0_5, %c0_6, %c0_7, %c1] : memref<1x1x8x254xbf16, #tpu.memory_space<vmem>>, vector<1x1x8x252xbf16>
    %4 = vector.shape_cast %3 : vector<1x1x8x252xbf16> to vector<8x252xbf16>
    %c8 = arith.constant 8 : index
    %c0_8 = arith.constant 0 : index
    %5 = vector.load %arg11[%c8, %c0_8] : memref<192x252xbf16, #tpu.memory_space<vmem>>, vector<8x252xbf16>
    tpu.vector_store %arg11[%c8, %c0_8], %4 {strides = array<i32>} : memref<192x252xbf16, #tpu.memory_space<vmem>>, vector<8x252xbf16>,
    %c0_9 = arith.constant 0 : index
    %c0_10 = arith.constant 0 : index
    %c0_11 = arith.constant 0 : index
    %c2 = arith.constant 2 : index
    %6 = vector.load %arg2[%c0_9, %c0_10, %c0_11, %c2] : memref<1x1x8x254xbf16, #tpu.memory_space<vmem>>, vector<1x1x8x252xbf16>
    %7 = vector.shape_cast %6 : vector<1x1x8x252xbf16> to vector<8x252xbf16>
    %c16 = arith.constant 16 : index
    %c0_12 = arith.constant 0 : index
    %8 = vector.load %arg11[%c16, %c0_12] : memref<192x252xbf16, #tpu.memory_space<vmem>>, vector<8x252xbf16>
    tpu.vector_store %arg11[%c16, %c0_12], %7 {strides = array<i32>} : memref<192x252xbf16, #tpu.memory_space<vmem>>, vector<8x252xbf16>,
    %c0_13 = arith.constant 0 : index
    %c0_14 = arith.constant 0 : index
    %9 = vector.load %arg4[%c0_13, %c0_14] : memref<64x1xf32, #tpu.memory_space<vmem>>, vector<64x1xf32>
    %c0_15 = arith.constant 0 : index
    %c0_16 = arith.constant 0 : index
    %c0_17 = arith.constant 0 : index
    %10 = vector.load %arg3[%c0_15, %c0_16, %c0_17] : memref<3x64x24xbf16, #tpu.memory_space<vmem>>, vector<1x64x24xbf16>
    %11 = vector.shape_cast %10 : vector<1x64x24xbf16> to vector<64x24xbf16>
    %c0_18 = arith.constant 0 : index
    %c0_19 = arith.constant 0 : index
    %12 = vector.load %arg11[%c0_18, %c0_19] : memref<192x252xbf16, #tpu.memory_space<vmem>>, vector<24x216xbf16>
    %cst = arith.constant dense<0.000000e+00> : vector<64x216xf32>
    %13 = tpu.matmul %11, %12, %cst {dimension_numbers = #tpu.dot_dimension_numbers<[1], [0], [0], [1], [0, 0, 1, 1], [], []>} : vector<64x24xbf16>, vector<24x216xbf16>, vector<64x216xf32> -> vector<64x216xf32>
    %14 = vector.broadcast %9 : vector<64x1xf32> to vector<64x216xf32>
    %15 = arith.addf %14, %13 : vector<64x216xf32>
    %c1_20 = arith.constant 1 : index
    %c0_21 = arith.constant 0 : index
    %c0_22 = arith.constant 0 : index
    %16 = vector.load %arg3[%c1_20, %c0_21, %c0_22] : memref<3x64x24xbf16, #tpu.memory_space<vmem>>, vector<1x64x24xbf16>
    %17 = vector.shape_cast %16 : vector<1x64x24xbf16> to vector<64x24xbf16>
    %c0_23 = arith.constant 0 : index
    %c18 = arith.constant 18 : index
    %18 = vector.load %arg11[%c0_23, %c18] : memref<192x252xbf16, #tpu.memory_space<vmem>>, vector<24x216xbf16>
    %cst_24 = arith.constant dense<0.000000e+00> : vector<64x216xf32>
    %19 = tpu.matmul %17, %18, %cst_24 {dimension_numbers = #tpu.dot_dimension_numbers<[1], [0], [0], [1], [0, 0, 1, 1], [], []>} : vector<64x24xbf16>, vector<24x216xbf16>, vector<64x216xf32> -> vector<64x216xf32>
    %20 = arith.addf %15, %19 : vector<64x216xf32>
    %c2_25 = arith.constant 2 : index
    %c0_26 = arith.constant 0 : index
    %c0_27 = arith.constant 0 : index
    %21 = vector.load %arg3[%c2_25, %c0_26, %c0_27] : memref<3x64x24xbf16, #tpu.memory_space<vmem>>, vector<1x64x24xbf16>
    %22 = vector.shape_cast %21 : vector<1x64x24xbf16> to vector<64x24xbf16>
    %c0_28 = arith.constant 0 : index
    %c36 = arith.constant 36 : index
    %23 = vector.load %arg11[%c0_28, %c36] : memref<192x252xbf16, #tpu.memory_space<vmem>>, vector<24x216xbf16>
    %cst_29 = arith.constant dense<0.000000e+00> : vector<64x216xf32>
    %24 = tpu.matmul %22, %23, %cst_29 {dimension_numbers = #tpu.dot_dimension_numbers<[1], [0], [0], [1], [0, 0, 1, 1], [], []>} : vector<64x24xbf16>, vector<24x216xbf16>, vector<64x216xf32> -> vector<64x216xf32>
    %25 = arith.addf %20, %24 : vector<64x216xf32>
    %cst_30 = arith.constant 0.000000e+00 : f32
    %26 = vector.broadcast %cst_30 : f32 to vector<64x216xf32>
    %27 = arith.maximumf %25, %26 : vector<64x216xf32>
    %28 = tpu.iota {dimensions = array<i32: 1>} : vector<1x216xi32>
    %c0_i32 = arith.constant 0 : i32
    %29 = arith.cmpi eq, %arg1, %c0_i32 : i32
    %c36_i32 = arith.constant 36 : i32
    %c0_i32_31 = arith.constant 0 : i32
    %30 = arith.select %29, %c36_i32, %c0_i32_31 : i32
    %c1_i32 = arith.constant 1 : i32
    %31 = arith.cmpi eq, %arg1, %c1_i32 : i32
    %c180_i32 = arith.constant 180 : i32
    %c216_i32 = arith.constant 216 : i32
    %32 = arith.select %31, %c180_i32, %c216_i32 : i32
    %c0_32 = arith.constant 0 : index
    %c0_33 = arith.constant 0 : index
    %33 = vector.load %arg9[%c0_32, %c0_33] : memref<1x216xf32, #tpu.memory_space<vmem>>, vector<1x216xf32>
    %cst_34 = arith.constant 5.000000e-01 : f32
    %34 = vector.broadcast %cst_34 : f32 to vector<1x216xf32>
    %35 = arith.cmpf ogt, %33, %34 : vector<1x216xf32>
    %36 = vector.broadcast %30 : i32 to vector<1x216xi32>
    %37 = arith.cmpi sge, %28, %36 : vector<1x216xi32>
    %38 = arith.andi %35, %37 : vector<1x216xi1>
    %39 = vector.broadcast %32 : i32 to vector<1x216xi32>
    %40 = arith.cmpi slt, %28, %39 : vector<1x216xi32>
    %41 = arith.andi %38, %40 : vector<1x216xi1>
    %cst_35 = arith.constant 0.000000e+00 : f32
    %42 = vector.shape_cast %41 : vector<1x216xi1> to vector<1x216xi1>
    %43 = vector.broadcast %42 : vector<1x216xi1> to vector<64x216xi1>
    %44 = vector.broadcast %cst_35 : f32 to vector<64x216xf32>
    %45 = arith.select %43, %27, %44 : vector<64x216xi1>, vector<64x216xf32>
    %46 = arith.truncf %45 : vector<64x216xf32> to vector<64x216xbf16>
    %cst_36 = arith.constant 0.000000e+00 : bf16
    %47 = vector.broadcast %cst_36 : bf16 to vector<192x2xbf16>
    %c0_37 = arith.constant 0 : index
    %c0_38 = arith.constant 0 : index
    %48 = vector.load %arg11[%c0_37, %c0_38] : memref<192x252xbf16, #tpu.memory_space<vmem>>, vector<192x2xbf16>
    tpu.vector_store %arg11[%c0_37, %c0_38], %47 {strides = array<i32>} : memref<192x252xbf16, #tpu.memory_space<vmem>>, vector<192x2xbf16>,
    %cst_39 = arith.constant 0.000000e+00 : bf16
    %49 = vector.broadcast %cst_39 : bf16 to vector<192x2xbf16>
    %c0_40 = arith.constant 0 : index
    %c216 = arith.constant 216 : index
    %50 = vector.load %arg11[%c0_40, %c216] : memref<192x252xbf16, #tpu.memory_space<vmem>>, vector<192x2xbf16>
    tpu.vector_store %arg11[%c0_40, %c216], %49 {strides = array<i32>} : memref<192x252xbf16, #tpu.memory_space<vmem>>, vector<192x2xbf16>,
    %c0_41 = arith.constant 0 : index
    %c2_42 = arith.constant 2 : index
    %51 = vector.load %arg11[%c0_41, %c2_42] : memref<192x252xbf16, #tpu.memory_space<vmem>>, vector<64x216xbf16>
    tpu.vector_store %arg11[%c0_41, %c2_42], %46 {strides = array<i32>} : memref<192x252xbf16, #tpu.memory_space<vmem>>, vector<64x216xbf16>,
    %c64 = arith.constant 64 : index
    %c1_43 = arith.constant 1 : index
    %52 = vector.load %arg11[%c64, %c1_43] : memref<192x252xbf16, #tpu.memory_space<vmem>>, vector<64x216xbf16>
    tpu.vector_store %arg11[%c64, %c1_43], %46 {strides = array<i32>} : memref<192x252xbf16, #tpu.memory_space<vmem>>, vector<64x216xbf16>,
    %c128 = arith.constant 128 : index
    %c0_44 = arith.constant 0 : index
    %53 = vector.load %arg11[%c128, %c0_44] : memref<192x252xbf16, #tpu.memory_space<vmem>>, vector<64x216xbf16>
    tpu.vector_store %arg11[%c128, %c0_44], %46 {strides = array<i32>} : memref<192x252xbf16, #tpu.memory_space<vmem>>, vector<64x216xbf16>,
    %c0_45 = arith.constant 0 : index
    %c0_46 = arith.constant 0 : index
    %54 = vector.load %arg6[%c0_45, %c0_46] : memref<64x1xf32, #tpu.memory_space<vmem>>, vector<64x1xf32>
    %c0_47 = arith.constant 0 : index
    %c0_48 = arith.constant 0 : index
    %c0_49 = arith.constant 0 : index
    %55 = vector.load %arg5[%c0_47, %c0_48, %c0_49] : memref<3x64x192xbf16, #tpu.memory_space<vmem>>, vector<1x64x192xbf16>
    %56 = vector.shape_cast %55 : vector<1x64x192xbf16> to vector<64x192xbf16>
    %c0_50 = arith.constant 0 : index
    %c1_51 = arith.constant 1 : index
    %57 = vector.load %arg11[%c0_50, %c1_51] : memref<192x252xbf16, #tpu.memory_space<vmem>>, vector<192x180xbf16>
    %cst_52 = arith.constant dense<0.000000e+00> : vector<64x180xf32>
    %58 = tpu.matmul %56, %57, %cst_52 {dimension_numbers = #tpu.dot_dimension_numbers<[1], [0], [0], [1], [0, 0, 1, 1], [], []>} : vector<64x192xbf16>, vector<192x180xbf16>, vector<64x180xf32> -> vector<64x180xf32>
    %59 = vector.broadcast %54 : vector<64x1xf32> to vector<64x180xf32>
    %60 = arith.addf %59, %58 : vector<64x180xf32>
    %c1_53 = arith.constant 1 : index
    %c0_54 = arith.constant 0 : index
    %c0_55 = arith.constant 0 : index
    %61 = vector.load %arg5[%c1_53, %c0_54, %c0_55] : memref<3x64x192xbf16, #tpu.memory_space<vmem>>, vector<1x64x192xbf16>
    %62 = vector.shape_cast %61 : vector<1x64x192xbf16> to vector<64x192xbf16>
    %c0_56 = arith.constant 0 : index
    %c19 = arith.constant 19 : index
    %63 = vector.load %arg11[%c0_56, %c19] : memref<192x252xbf16, #tpu.memory_space<vmem>>, vector<192x180xbf16>
    %cst_57 = arith.constant dense<0.000000e+00> : vector<64x180xf32>
    %64 = tpu.matmul %62, %63, %cst_57 {dimension_numbers = #tpu.dot_dimension_numbers<[1], [0], [0], [1], [0, 0, 1, 1], [], []>} : vector<64x192xbf16>, vector<192x180xbf16>, vector<64x180xf32> -> vector<64x180xf32>
    %65 = arith.addf %60, %64 : vector<64x180xf32>
    %c2_58 = arith.constant 2 : index
    %c0_59 = arith.constant 0 : index
    %c0_60 = arith.constant 0 : index
    %66 = vector.load %arg5[%c2_58, %c0_59, %c0_60] : memref<3x64x192xbf16, #tpu.memory_space<vmem>>, vector<1x64x192xbf16>
    %67 = vector.shape_cast %66 : vector<1x64x192xbf16> to vector<64x192xbf16>
    %c0_61 = arith.constant 0 : index
    %c37 = arith.constant 37 : index
    %68 = vector.load %arg11[%c0_61, %c37] : memref<192x252xbf16, #tpu.memory_space<vmem>>, vector<192x180xbf16>
    %cst_62 = arith.constant dense<0.000000e+00> : vector<64x180xf32>
    %69 = tpu.matmul %67, %68, %cst_62 {dimension_numbers = #tpu.dot_dimension_numbers<[1], [0], [0], [1], [0, 0, 1, 1], [], []>} : vector<64x192xbf16>, vector<192x180xbf16>, vector<64x180xf32> -> vector<64x180xf32>
    %70 = arith.addf %65, %69 : vector<64x180xf32>
    %cst_63 = arith.constant 0.000000e+00 : f32
    %71 = vector.broadcast %cst_63 : f32 to vector<64x180xf32>
    %72 = arith.maximumf %70, %71 : vector<64x180xf32>
    %73 = tpu.iota {dimensions = array<i32: 1>} : vector<1x180xi32>
    %c0_i32_64 = arith.constant 0 : i32
    %74 = arith.cmpi eq, %arg1, %c0_i32_64 : i32
    %c18_i32 = arith.constant 18 : i32
    %c0_i32_65 = arith.constant 0 : i32
    %75 = arith.select %74, %c18_i32, %c0_i32_65 : i32
    %c1_i32_66 = arith.constant 1 : i32
    %76 = arith.cmpi eq, %arg1, %c1_i32_66 : i32
    %c162_i32 = arith.constant 162 : i32
    %c180_i32_67 = arith.constant 180 : i32
    %77 = arith.select %76, %c162_i32, %c180_i32_67 : i32
    %c0_68 = arith.constant 0 : index
    %c0_69 = arith.constant 0 : index
    %78 = vector.load %arg9[%c0_68, %c0_69] : memref<1x216xf32, #tpu.memory_space<vmem>>, vector<1x180xf32>
    %cst_70 = arith.constant 5.000000e-01 : f32
    %79 = vector.broadcast %cst_70 : f32 to vector<1x180xf32>
    %80 = arith.cmpf ogt, %78, %79 : vector<1x180xf32>
    %81 = vector.broadcast %75 : i32 to vector<1x180xi32>
    %82 = arith.cmpi sge, %73, %81 : vector<1x180xi32>
    %83 = arith.andi %80, %82 : vector<1x180xi1>
    %84 = vector.broadcast %77 : i32 to vector<1x180xi32>
    %85 = arith.cmpi slt, %73, %84 : vector<1x180xi32>
    %86 = arith.andi %83, %85 : vector<1x180xi1>
    %cst_71 = arith.constant 0.000000e+00 : f32
    %87 = vector.shape_cast %86 : vector<1x180xi1> to vector<1x180xi1>
    %88 = vector.broadcast %87 : vector<1x180xi1> to vector<64x180xi1>
    %89 = vector.broadcast %cst_71 : f32 to vector<64x180xf32>
    %90 = arith.select %88, %72, %89 : vector<64x180xi1>, vector<64x180xf32>
    %91 = arith.truncf %90 : vector<64x180xf32> to vector<64x180xbf16>
    %cst_72 = arith.constant 0.000000e+00 : bf16
    %92 = vector.broadcast %cst_72 : bf16 to vector<192x2xbf16>
    %c0_73 = arith.constant 0 : index
    %c0_74 = arith.constant 0 : index
    %93 = vector.load %arg11[%c0_73, %c0_74] : memref<192x252xbf16, #tpu.memory_space<vmem>>, vector<192x2xbf16>
    tpu.vector_store %arg11[%c0_73, %c0_74], %92 {strides = array<i32>} : memref<192x252xbf16, #tpu.memory_space<vmem>>, vector<192x2xbf16>,
    %cst_75 = arith.constant 0.000000e+00 : bf16
    %94 = vector.broadcast %cst_75 : bf16 to vector<192x2xbf16>
    %c0_76 = arith.constant 0 : index
    %c180 = arith.constant 180 : index
    %95 = vector.load %arg11[%c0_76, %c180] : memref<192x252xbf16, #tpu.memory_space<vmem>>, vector<192x2xbf16>
    tpu.vector_store %arg11[%c0_76, %c180], %94 {strides = array<i32>} : memref<192x252xbf16, #tpu.memory_space<vmem>>, vector<192x2xbf16>,
    %c0_77 = arith.constant 0 : index
    %c2_78 = arith.constant 2 : index
    %96 = vector.load %arg11[%c0_77, %c2_78] : memref<192x252xbf16, #tpu.memory_space<vmem>>, vector<64x180xbf16>
    tpu.vector_store %arg11[%c0_77, %c2_78], %91 {strides = array<i32>} : memref<192x252xbf16, #tpu.memory_space<vmem>>, vector<64x180xbf16>,
    %c64_79 = arith.constant 64 : index
    %c1_80 = arith.constant 1 : index
    %97 = vector.load %arg11[%c64_79, %c1_80] : memref<192x252xbf16, #tpu.memory_space<vmem>>, vector<64x180xbf16>
    tpu.vector_store %arg11[%c64_79, %c1_80], %91 {strides = array<i32>} : memref<192x252xbf16, #tpu.memory_space<vmem>>, vector<64x180xbf16>,
    %c128_81 = arith.constant 128 : index
    %c0_82 = arith.constant 0 : index
    %98 = vector.load %arg11[%c128_81, %c0_82] : memref<192x252xbf16, #tpu.memory_space<vmem>>, vector<64x180xbf16>
    tpu.vector_store %arg11[%c128_81, %c0_82], %91 {strides = array<i32>} : memref<192x252xbf16, #tpu.memory_space<vmem>>, vector<64x180xbf16>,
    %c0_83 = arith.constant 0 : index
    %c0_84 = arith.constant 0 : index
    %99 = vector.load %arg8[%c0_83, %c0_84] : memref<12x1xf32, #tpu.memory_space<vmem>>, vector<12x1xf32>
    %c0_85 = arith.constant 0 : index
    %c0_86 = arith.constant 0 : index
    %c0_87 = arith.constant 0 : index
    %100 = vector.load %arg7[%c0_85, %c0_86, %c0_87] : memref<3x12x192xbf16, #tpu.memory_space<vmem>>, vector<1x12x192xbf16>
    %101 = vector.shape_cast %100 : vector<1x12x192xbf16> to vector<12x192xbf16>
    %c0_88 = arith.constant 0 : index
    %c1_89 = arith.constant 1 : index
    %102 = vector.load %arg11[%c0_88, %c1_89] : memref<192x252xbf16, #tpu.memory_space<vmem>>, vector<192x144xbf16>
    %cst_90 = arith.constant dense<0.000000e+00> : vector<12x144xf32>
    %103 = tpu.matmul %101, %102, %cst_90 {dimension_numbers = #tpu.dot_dimension_numbers<[1], [0], [0], [1], [0, 0, 1, 1], [], []>} : vector<12x192xbf16>, vector<192x144xbf16>, vector<12x144xf32> -> vector<12x144xf32>
    %104 = vector.broadcast %99 : vector<12x1xf32> to vector<12x144xf32>
    %105 = arith.addf %104, %103 : vector<12x144xf32>
    %c1_91 = arith.constant 1 : index
    %c0_92 = arith.constant 0 : index
    %c0_93 = arith.constant 0 : index
    %106 = vector.load %arg7[%c1_91, %c0_92, %c0_93] : memref<3x12x192xbf16, #tpu.memory_space<vmem>>, vector<1x12x192xbf16>
    %107 = vector.shape_cast %106 : vector<1x12x192xbf16> to vector<12x192xbf16>
    %c0_94 = arith.constant 0 : index
    %c19_95 = arith.constant 19 : index
    %108 = vector.load %arg11[%c0_94, %c19_95] : memref<192x252xbf16, #tpu.memory_space<vmem>>, vector<192x144xbf16>
    %cst_96 = arith.constant dense<0.000000e+00> : vector<12x144xf32>
    %109 = tpu.matmul %107, %108, %cst_96 {dimension_numbers = #tpu.dot_dimension_numbers<[1], [0], [0], [1], [0, 0, 1, 1], [], []>} : vector<12x192xbf16>, vector<192x144xbf16>, vector<12x144xf32> -> vector<12x144xf32>
    %110 = arith.addf %105, %109 : vector<12x144xf32>
    %c2_97 = arith.constant 2 : index
    %c0_98 = arith.constant 0 : index
    %c0_99 = arith.constant 0 : index
    %111 = vector.load %arg7[%c2_97, %c0_98, %c0_99] : memref<3x12x192xbf16, #tpu.memory_space<vmem>>, vector<1x12x192xbf16>
    %112 = vector.shape_cast %111 : vector<1x12x192xbf16> to vector<12x192xbf16>
    %c0_100 = arith.constant 0 : index
    %c37_101 = arith.constant 37 : index
    %113 = vector.load %arg11[%c0_100, %c37_101] : memref<192x252xbf16, #tpu.memory_space<vmem>>, vector<192x144xbf16>
    %cst_102 = arith.constant dense<0.000000e+00> : vector<12x144xf32>
    %114 = tpu.matmul %112, %113, %cst_102 {dimension_numbers = #tpu.dot_dimension_numbers<[1], [0], [0], [1], [0, 0, 1, 1], [], []>} : vector<12x192xbf16>, vector<192x144xbf16>, vector<12x144xf32> -> vector<12x144xf32>
    %115 = arith.addf %110, %114 : vector<12x144xf32>
    %116 = arith.truncf %115 : vector<12x144xf32> to vector<12x144xbf16>
    %117 = vector.shape_cast %116 : vector<12x144xbf16> to vector<1x1x12x144xbf16>
    %c0_103 = arith.constant 0 : index
    %c0_104 = arith.constant 0 : index
    %c0_105 = arith.constant 0 : index
    %c0_106 = arith.constant 0 : index
    %118 = vector.load %arg10[%c0_103, %c0_104, %c0_105, %c0_106] : memref<1x1x12x144xbf16, #tpu.memory_space<vmem>>, vector<1x1x12x144xbf16>
    tpu.vector_store %arg10[%c0_103, %c0_104, %c0_105, %c0_106], %117 {strides = array<i32>} : memref<1x1x12x144xbf16, #tpu.memory_space<vmem>>, vector<1x1x12x144xbf16>,
    return
  }
  func.func @transform_0(%arg0: i32, %arg1: i32) -> (i32, i32, i32, i32) {
    %c0_i32 = arith.constant 0 : i32
    %c0_i32_0 = arith.constant 0 : i32
    %c0_i32_1 = arith.constant 0 : i32
    return %arg0, %arg1, %c0_i32, %c0_i32_0 : i32, i32, i32, i32
  }
  func.func @transform_1(%arg0: i32, %arg1: i32) -> (i32, i32, i32) {
    %c0_i32 = arith.constant 0 : i32
    %c0_i32_0 = arith.constant 0 : i32
    %c0_i32_1 = arith.constant 0 : i32
    %c0_i32_2 = arith.constant 0 : i32
    return %c0_i32, %c0_i32_0, %c0_i32_1 : i32, i32, i32
  }
  func.func @transform_2(%arg0: i32, %arg1: i32) -> (i32, i32) {
    %c0_i32 = arith.constant 0 : i32
    %c0_i32_0 = arith.constant 0 : i32
    %c0_i32_1 = arith.constant 0 : i32
    return %c0_i32, %c0_i32_0 : i32, i32
  }
  func.func @transform_3(%arg0: i32, %arg1: i32) -> (i32, i32, i32) {
    %c0_i32 = arith.constant 0 : i32
    %c0_i32_0 = arith.constant 0 : i32
    %c0_i32_1 = arith.constant 0 : i32
    %c0_i32_2 = arith.constant 0 : i32
    return %c0_i32, %c0_i32_0, %c0_i32_1 : i32, i32, i32
  }
  func.func @transform_4(%arg0: i32, %arg1: i32) -> (i32, i32) {
    %c0_i32 = arith.constant 0 : i32
    %c0_i32_0 = arith.constant 0 : i32
    %c0_i32_1 = arith.constant 0 : i32
    return %c0_i32, %c0_i32_0 : i32, i32
  }
  func.func @transform_5(%arg0: i32, %arg1: i32) -> (i32, i32, i32) {
    %c0_i32 = arith.constant 0 : i32
    %c0_i32_0 = arith.constant 0 : i32
    %c0_i32_1 = arith.constant 0 : i32
    %c0_i32_2 = arith.constant 0 : i32
    return %c0_i32, %c0_i32_0, %c0_i32_1 : i32, i32, i32
  }
  func.func @transform_6(%arg0: i32, %arg1: i32) -> (i32, i32) {
    %c0_i32 = arith.constant 0 : i32
    %c0_i32_0 = arith.constant 0 : i32
    %c0_i32_1 = arith.constant 0 : i32
    return %c0_i32, %c0_i32_0 : i32, i32
  }
  func.func @transform_7(%arg0: i32, %arg1: i32) -> (i32, i32) {
    %c0_i32 = arith.constant 0 : i32
    %c0_i32_0 = arith.constant 0 : i32
    %c0_i32_1 = arith.constant 0 : i32
    return %c0_i32, %c0_i32_0 : i32, i32
  }
  func.func @transform_8(%arg0: i32, %arg1: i32) -> (i32, i32, i32, i32) {
    %c0_i32 = arith.constant 0 : i32
    %c0_i32_0 = arith.constant 0 : i32
    %c0_i32_1 = arith.constant 0 : i32
    return %arg0, %arg1, %c0_i32, %c0_i32_0 : i32, i32, i32, i32
  }
}

</mosaic_0001>

<llo_original>
// kernel: super_resolution_forward.1
$region0: #{super_resolution_forward.1}
  #allocation0 [shape = 'u32[]', space=smem, size = 0x4, offset = 0x4, fixed_abs, tag = 'smem constant byte address 0x4 - core index']
  #allocation1 [shape = 'u32[72,128]{1,0:T(1,128)}', space=vmem, size = 0x9000, scoped, tag = 'internal scratch']
  #allocation2 [shape = 'bf16[192,252]{1,0:T(8,128)(2,1)}', space=vmem, size = 0x18000, scoped, tag = 'scratch operand']
  %s0 = inlined_call_operand.vmem [shape: bf16[2,2,8,254], index: 0, kind: input, shape index: {}]
  %s1 = inlined_call_operand.vmem [shape: bf16[3,64,24], index: 1, kind: input, shape index: {}]
  %s2 = inlined_call_operand.vmem [shape: f32[64,1], index: 2, kind: input, shape index: {}]
  %s3 = inlined_call_operand.vmem [shape: bf16[3,64,192], index: 3, kind: input, shape index: {}]
  %s4 = inlined_call_operand.vmem [shape: f32[64,1], index: 4, kind: input, shape index: {}]
  %s5 = inlined_call_operand.vmem [shape: bf16[3,12,192], index: 5, kind: input, shape index: {}]
  %s6 = inlined_call_operand.vmem [shape: f32[12,1], index: 6, kind: input, shape index: {}]
  %s7 = inlined_call_operand.vmem [shape: f32[1,216], index: 7, kind: input, shape index: {}]
  %s8 = inlined_call_operand.vmem [shape: bf16[2,2,12,144], index: 8, kind: output, shape index: {}]
  %s9 = sld [smem:[#allocation0]]
  $region65: #{super_resolution_forward.1} parent=0
    _
  %s11 = ssub.s32 1, %s9
  %s12 = scalar_select 0, %s11, %s9
  loop: start=0, step=1, limit=6
  $region2: #{super_resolution_forward.1} parent=0 // loop_pre_header
    _
  $region3: #{super_resolution_forward.1} parent=0 // loop_header
    %s14 = sphi 0, %s18
    %p15 = scmp.ge.s32.totalorder %s14, 6
    %s21 = sphi 0, %s33
    %s22 = sphi 0, %s29
    %s23 = sphi 0, %s21
    %s24 = sphi 0, %s22
    %s25 = sphi 0, %s23
    %s26 = sphi 0, %s24
    %s38 = sphi 0, %s40
    %s41 = sphi 0, %s38
    %s42 = sphi 0, %s41
    %s58 = sphi 0, %s42
    %s62 = sphi 0, %s62
    %s64 = sphi 0, %s62
    %s65 = sphi 0, %s64
    %s79 = sphi 0, %s65
    %s83 = sphi 0, %s83
    %s85 = sphi 0, %s83
    %s86 = sphi 0, %s85
    %s100 = sphi 0, %s86
    %s104 = sphi 0, %s104
    %s106 = sphi 0, %s104
    %s107 = sphi 0, %s106
    %s121 = sphi 0, %s107
    %s125 = sphi 0, %s125
    %s127 = sphi 0, %s125
    %s128 = sphi 0, %s127
    %s142 = sphi 0, %s128
    %s146 = sphi 0, %s146
    %s148 = sphi 0, %s146
    %s149 = sphi 0, %s148
    %s163 = sphi 0, %s149
    %s167 = sphi 0, %s167
    %s169 = sphi 0, %s167
    %s170 = sphi 0, %s169
    %s184 = sphi 0, %s170
    %s188 = sphi 0, %s188
    %s190 = sphi 0, %s188
    %s191 = sphi 0, %s190
    %s205 = sphi 0, %s191
    %s213 = sphi 0, %s215
    %s216 = sphi 0, %s213
    %s217 = sphi 0, %s216
    %s233 = sphi 0, %s217
  $region4: #{super_resolution_forward.1} parent=0 // loop_header_branch
    %17 = sbr.rel (%p15) target = $region8
  $region5: #{super_resolution_forward.1} parent=0 // loop_body
    %s19 = ssub.s32 %s14, 1
    %s20 = ssub.s32 %s14, 2
    %s27 = sadd.s32 1, %s22
    %p28 = scmp.ge.s32.totalorder %s27, 2
    %s29 = scalar_select %p28, 0, %s27
    %s30 = sadd.s32 1, %s21
    %s31 = scalar_select %p28, %s30, %s21
    %p32 = scmp.ge.s32.totalorder %s31, 2
    %s33 = scalar_select %p32, 0, %s31
    %s34 = ssub.s32 %s21, %s33
    %s35 = ssub.s32 %s22, %s29
    %s36 = sor.u32 %s34, %s35
    %p37 = scmp.eq.s32.totalorder %s36, 0
    %s39 = sadd.s32 %s38, 1
    %s40 = scalar_select %p37, %s38, %s39
    %p43 = pneg %p37
    %p44 = scmp.eq.s32.totalorder %s14, 3
    %p45 = por %p43, %p44
    %p46 = scmp.ne.s32.totalorder %s38, %s41
    %p47 = scmp.eq.s32.totalorder %s14, 0
    %p48 = por %p46, %p47
    %p49 = scmp.ne.s32.totalorder %s38, %s41
    %p50 = scmp.eq.s32.totalorder %s19, 3
    %p51 = por %p49, %p50
    %p52 = scmp.ne.s32.totalorder %s41, %s42
    %p53 = scmp.eq.s32.totalorder %s19, 0
    %p54 = por %p52, %p53
    %p55 = scmp.ne.s32.totalorder %s41, %s42
    %p56 = scmp.eq.s32.totalorder %s20, 3
    %p57 = por %p55, %p56
    %p59 = scmp.ne.s32.totalorder %s42, %s58
    %p60 = scmp.eq.s32.totalorder %s20, 0
    %p61 = por %p59, %p60
    %s63 = sadd.s32 %s62, 1
    %p66 = scmp.eq.s32.totalorder %s14, 3
    %p67 = scmp.ne.s32.totalorder %s62, %s64
    %p68 = scmp.eq.s32.totalorder %s14, 0
    %p69 = por %p67, %p68
    %p70 = scmp.ne.s32.totalorder %s62, %s64
    %p71 = scmp.eq.s32.totalorder %s19, 3
    %p72 = por %p70, %p71
    %p73 = scmp.ne.s32.totalorder %s64, %s65
    %p74 = scmp.eq.s32.totalorder %s19, 0
    %p75 = por %p73, %p74
    %p76 = scmp.ne.s32.totalorder %s64, %s65
    %p77 = scmp.eq.s32.totalorder %s20, 3
    %p78 = por %p76, %p77
    %p80 = scmp.ne.s32.totalorder %s65, %s79
    %p81 = scmp.eq.s32.totalorder %s20, 0
    %p82 = por %p80, %p81
    %s84 = sadd.s32 %s83, 1
    %p87 = scmp.eq.s32.totalorder %s14, 3
    %p88 = scmp.ne.s32.totalorder %s83, %s85
    %p89 = scmp.eq.s32.totalorder %s14, 0
    %p90 = por %p88, %p89
    %p91 = scmp.ne.s32.totalorder %s83, %s85
    %p92 = scmp.eq.s32.totalorder %s19, 3
    %p93 = por %p91, %p92
    %p94 = scmp.ne.s32.totalorder %s85, %s86
    %p95 = scmp.eq.s32.totalorder %s19, 0
    %p96 = por %p94, %p95
    %p97 = scmp.ne.s32.totalorder %s85, %s86
    %p98 = scmp.eq.s32.totalorder %s20, 3
    %p99 = por %p97, %p98
    %p101 = scmp.ne.s32.totalorder %s86, %s100
    %p102 = scmp.eq.s32.totalorder %s20, 0
    %p103 = por %p101, %p102
    %s105 = sadd.s32 %s104, 1
    %p108 = scmp.eq.s32.totalorder %s14, 3
    %p109 = scmp.ne.s32.totalorder %s104, %s106
    %p110 = scmp.eq.s32.totalorder %s14, 0
    %p111 = por %p109, %p110
    %p112 = scmp.ne.s32.totalorder %s104, %s106
    %p113 = scmp.eq.s32.totalorder %s19, 3
    %p114 = por %p112, %p113
    %p115 = scmp.ne.s32.totalorder %s106, %s107
    %p116 = scmp.eq.s32.totalorder %s19, 0
    %p117 = por %p115, %p116
    %p118 = scmp.ne.s32.totalorder %s106, %s107
    %p119 = scmp.eq.s32.totalorder %s20, 3
    %p120 = por %p118, %p119
    %p122 = scmp.ne.s32.totalorder %s107, %s121
    %p123 = scmp.eq.s32.totalorder %s20, 0
    %p124 = por %p122, %p123
    %s126 = sadd.s32 %s125, 1
    %p129 = scmp.eq.s32.totalorder %s14, 3
    %p130 = scmp.ne.s32.totalorder %s125, %s127
    %p131 = scmp.eq.s32.totalorder %s14, 0
    %p132 = por %p130, %p131
    %p133 = scmp.ne.s32.totalorder %s125, %s127
    %p134 = scmp.eq.s32.totalorder %s19, 3
    %p135 = por %p133, %p134
    %p136 = scmp.ne.s32.totalorder %s127, %s128
    %p137 = scmp.eq.s32.totalorder %s19, 0
    %p138 = por %p136, %p137
    %p139 = scmp.ne.s32.totalorder %s127, %s128
    %p140 = scmp.eq.s32.totalorder %s20, 3
    %p141 = por %p139, %p140
    %p143 = scmp.ne.s32.totalorder %s128, %s142
    %p144 = scmp.eq.s32.totalorder %s20, 0
    %p145 = por %p143, %p144
    %s147 = sadd.s32 %s146, 1
    %p150 = scmp.eq.s32.totalorder %s14, 3
    %p151 = scmp.ne.s32.totalorder %s146, %s148
    %p152 = scmp.eq.s32.totalorder %s14, 0
    %p153 = por %p151, %p152
    %p154 = scmp.ne.s32.totalorder %s146, %s148
    %p155 = scmp.eq.s32.totalorder %s19, 3
    %p156 = por %p154, %p155
    %p157 = scmp.ne.s32.totalorder %s148, %s149
    %p158 = scmp.eq.s32.totalorder %s19, 0
    %p159 = por %p157, %p158
    %p160 = scmp.ne.s32.totalorder %s148, %s149
    %p161 = scmp.eq.s32.totalorder %s20, 3
    %p162 = por %p160, %p161
    %p164 = scmp.ne.s32.totalorder %s149, %s163
    %p165 = scmp.eq.s32.totalorder %s20, 0
    %p166 = por %p164, %p165
    %s168 = sadd.s32 %s167, 1
    %p171 = scmp.eq.s32.totalorder %s14, 3
    %p172 = scmp.ne.s32.totalorder %s167, %s169
    %p173 = scmp.eq.s32.totalorder %s14, 0
    %p174 = por %p172, %p173
    %p175 = scmp.ne.s32.totalorder %s167, %s169
    %p176 = scmp.eq.s32.totalorder %s19, 3
    %p177 = por %p175, %p176
    %p178 = scmp.ne.s32.totalorder %s169, %s170
    %p179 = scmp.eq.s32.totalorder %s19, 0
    %p180 = por %p178, %p179
    %p181 = scmp.ne.s32.totalorder %s169, %s170
    %p182 = scmp.eq.s32.totalorder %s20, 3
    %p183 = por %p181, %p182
    %p185 = scmp.ne.s32.totalorder %s170, %s184
    %p186 = scmp.eq.s32.totalorder %s20, 0
    %p187 = por %p185, %p186
    %s189 = sadd.s32 %s188, 1
    %p192 = scmp.eq.s32.totalorder %s14, 3
    %p193 = scmp.ne.s32.totalorder %s188, %s190
    %p194 = scmp.eq.s32.totalorder %s14, 0
    %p195 = por %p193, %p194
    %p196 = scmp.ne.s32.totalorder %s188, %s190
    %p197 = scmp.eq.s32.totalorder %s19, 3
    %p198 = por %p196, %p197
    %p199 = scmp.ne.s32.totalorder %s190, %s191
    %p200 = scmp.eq.s32.totalorder %s19, 0
    %p201 = por %p199, %p200
    %p202 = scmp.ne.s32.totalorder %s190, %s191
    %p203 = scmp.eq.s32.totalorder %s20, 3
    %p204 = por %p202, %p203
    %p206 = scmp.ne.s32.totalorder %s191, %s205
    %p207 = scmp.eq.s32.totalorder %s20, 0
    %p208 = por %p206, %p207
    %s209 = ssub.s32 %s21, %s33
    %s210 = ssub.s32 %s22, %s29
    %s211 = sor.u32 %s209, %s210
    %p212 = scmp.eq.s32.totalorder %s211, 0
    %s214 = sadd.s32 %s213, 1
    %s215 = scalar_select %p212, %s213, %s214
    %p218 = pneg %p212
    %p219 = scmp.eq.s32.totalorder %s14, 3
    %p220 = por %p218, %p219
    %p221 = scmp.ne.s32.totalorder %s213, %s216
    %p222 = scmp.eq.s32.totalorder %s14, 0
    %p223 = por %p221, %p222
    %p224 = scmp.ne.s32.totalorder %s213, %s216
    %p225 = scmp.eq.s32.totalorder %s19, 3
    %p226 = por %p224, %p225
    %p227 = scmp.ne.s32.totalorder %s216, %s217
    %p228 = scmp.eq.s32.totalorder %s19, 0
    %p229 = por %p227, %p228
    %p230 = scmp.ne.s32.totalorder %s216, %s217
    %p231 = scmp.eq.s32.totalorder %s20, 3
    %p232 = por %p230, %p231
    %p234 = scmp.ne.s32.totalorder %s217, %s233
    %p235 = scmp.eq.s32.totalorder %s20, 0
    %p236 = por %p234, %p235
    %p237 = scmp.le.s32.totalorder 1, %s14
    %p238 = scmp.lt.s32.totalorder %s14, 5
    %p239 = pnand %p237, %p238
    %p240 = pneg %p239
    // Predicated region
    $region9: #{super_resolution_forward.1} parent=5 // pred_check
      _
    $region10: #{super_resolution_forward.1} parent=5 // pred_check_branch
      %242 = sbr.rel (%p239) target = $region12
    $region11: #{super_resolution_forward.1} parent=5 // pred_region
      %s243 = ssub.s32 %s14, 1
      // Predicated region
      $region13: #{super_resolution_forward.1} parent=11 // pred_check
        %p244 = pneg %p75
      $region14: #{super_resolution_forward.1} parent=11 // pred_check_branch
        %246 = sbr.rel (%p244) target = $region16
      $region15: #{super_resolution_forward.1} parent=11 // pred_region
        _
      $region16: #{super_resolution_forward.1} parent=11 // pred_fallthru
        _
      // Predicated region
      $region17: #{super_resolution_forward.1} parent=11 // pred_check
        %p247 = pneg %p96
      $region18: #{super_resolution_forward.1} parent=11 // pred_check_branch
        %249 = sbr.rel (%p247) target = $region20
      $region19: #{super_resolution_forward.1} parent=11 // pred_region
        _
      $region20: #{super_resolution_forward.1} parent=11 // pred_fallthru
        _
      // Predicated region
      $region21: #{super_resolution_forward.1} parent=11 // pred_check
        %p250 = pneg %p117
      $region22: #{super_resolution_forward.1} parent=11 // pred_check_branch
        %252 = sbr.rel (%p250) target = $region24
      $region23: #{super_resolution_forward.1} parent=11 // pred_region
        _
      $region24: #{super_resolution_forward.1} parent=11 // pred_fallthru
        _
      // Predicated region
      $region25: #{super_resolution_forward.1} parent=11 // pred_check
        %p253 = pneg %p138
      $region26: #{super_resolution_forward.1} parent=11 // pred_check_branch
        %255 = sbr.rel (%p253) target = $region28
      $region27: #{super_resolution_forward.1} parent=11 // pred_region
        _
      $region28: #{super_resolution_forward.1} parent=11 // pred_fallthru
        _
      // Predicated region
      $region29: #{super_resolution_forward.1} parent=11 // pred_check
        %p256 = pneg %p159
      $region30: #{super_resolution_forward.1} parent=11 // pred_check_branch
        %258 = sbr.rel (%p256) target = $region32
      $region31: #{super_resolution_forward.1} parent=11 // pred_region
        _
      $region32: #{super_resolution_forward.1} parent=11 // pred_fallthru
        _
      // Predicated region
      $region33: #{super_resolution_forward.1} parent=11 // pred_check
        %p259 = pneg %p180
      $region34: #{super_resolution_forward.1} parent=11 // pred_check_branch
        %261 = sbr.rel (%p259) target = $region36
      $region35: #{super_resolution_forward.1} parent=11 // pred_region
        _
      $region36: #{super_resolution_forward.1} parent=11 // pred_fallthru
        _
      // Predicated region
      $region37: #{super_resolution_forward.1} parent=11 // pred_check
        %p262 = pneg %p201
      $region38: #{super_resolution_forward.1} parent=11 // pred_check_branch
        %264 = sbr.rel (%p262) target = $region40
      $region39: #{super_resolution_forward.1} parent=11 // pred_region
        _
      $region40: #{super_resolution_forward.1} parent=11 // pred_fallthru
        _
    $region12: #{super_resolution_forward.1} parent=5 // pred_fallthru
      _
    %p265 = scmp.lt.s32.totalorder %s14, 4
    // Predicated region
    $region41: #{super_resolution_forward.1} parent=5 // pred_check
      %p266 = pneg %p265
    $region42: #{super_resolution_forward.1} parent=5 // pred_check_branch
      %268 = sbr.rel (%p266) target = $region44
    $region43: #{super_resolution_forward.1} parent=5 // pred_region
      // Predicated region
      $region45: #{super_resolution_forward.1} parent=43 // pred_check
        %p269 = pneg %p48
      $region46: #{super_resolution_forward.1} parent=43 // pred_check_branch
        %271 = sbr.rel (%p269) target = $region48
      $region47: #{super_resolution_forward.1} parent=43 // pred_region
        %p272 = scmp.lt.s32.totalorder %s21, 1
        %s273 = scalar_select %p272, %s21, 1
        %p274 = scmp.lt.s32.totalorder %s22, 1
        %s275 = scalar_select %p274, %s22, 1
        %s276 = smul.addr %s275, 2
        %s277 = smul.addr %s273, 4
        %s278 = sadd.s32 %s276, %s277
        %s279 = smul.addr %s278, 4
        %s280 = scalar_lea.vmem %s0, %s279
      $region48: #{super_resolution_forward.1} parent=43 // pred_fallthru
        _
    $region44: #{super_resolution_forward.1} parent=5 // pred_fallthru
      _
    %p281 = scmp.le.s32.totalorder 1, %s14
    %p282 = scmp.lt.s32.totalorder %s14, 5
    %p283 = pnand %p281, %p282
    %p284 = pneg %p283
    // Predicated region
    $region49: #{super_resolution_forward.1} parent=5 // pred_check
      _
    $region50: #{super_resolution_forward.1} parent=5 // pred_check_branch
      %286 = sbr.rel (%p283) target = $region52
    $region51: #{super_resolution_forward.1} parent=5 // pred_region
      %s287 = ssub.s32 %s14, 1
      %p288 = scmp.lt.s32.totalorder %s23, 1
      %s289 = scalar_select %p288, %s23, 1
      %p290 = scmp.lt.s32.totalorder %s24, 1
      %s291 = scalar_select %p290, %s24, 1
      %s292 = smul.addr %s291, 2
      %s293 = smul.addr %s289, 4
      %s294 = sadd.s32 %s292, %s293
      %s295 = smul.addr %s294, 4
      %s296 = scalar_lea.vmem %s0, %s295
      %p297 = pneg %p54
      %p298 = pneg %p51
      %p299 = pneg %p75
      %p300 = pneg %p72
      %p301 = pneg %p96
      %p302 = pneg %p93
      %p303 = pneg %p117
      %p304 = pneg %p114
      %p305 = pneg %p138
      %p306 = pneg %p135
      %p307 = pneg %p159
      %p308 = pneg %p156
      %p309 = pneg %p180
      %p310 = pneg %p177
      %p311 = pneg %p201
      %p312 = pneg %p198
      %p313 = pneg %p229
      %p314 = pneg %p226
      %p315 = scmp.lt.s32.totalorder %s23, 1
      %s316 = scalar_select %p315, %s23, 1
      %p317 = scmp.lt.s32.totalorder %s24, 1
      %s318 = scalar_select %p317, %s24, 1
      %s319 = smul.addr %s318, 4
      %s320 = smul.addr %s316, 8
      %s321 = sadd.s32 %s319, %s320
      %s322 = smul.addr %s321, 4
      %s323 = scalar_lea.vmem %s8, %s322
      %p324 = scmp.lt.s32.totalorder %s23, 1
      %s325 = scalar_select %p324, %s23, 1
      %p326 = scmp.lt.s32.totalorder %s24, 1
      %s327 = scalar_select %p326, %s24, 1
      %s328 = smul.addr %s327, 2
      %s329 = smul.addr %s325, 4
      %s330 = sadd.s32 %s328, %s329
      %s331 = smul.addr %s330, 4
      %s332 = scalar_lea.vmem %s0, %s331
      %p333 = scmp.lt.s32.totalorder %s23, 1
      %s334 = scalar_select %p333, %s23, 1
      %p335 = scmp.lt.s32.totalorder %s24, 1
      %s336 = scalar_select %p335, %s24, 1
      %s337 = smul.addr %s336, 4
      %s338 = smul.addr %s334, 8
      %s339 = sadd.s32 %s337, %s338
      %s340 = smul.addr %s339, 4
      %s341 = scalar_lea.vmem %s8, %s340
      %v343 = vld [vmem:[%s332] sm:$0xff]
      %vm344 = vcmask 1043456
      %vm345 = vcmask 1014788
      %vm346 = vmor %vm345, %vm344
      %347 = vst.msk [vmem:[#allocation2] sm:$0xff] %vm346, %v343
      %v348 = vld [vmem:[%s332] sm:$0xff]
      %350 = vrot.lane.b32.xlu0 %v348, 127
      %v351 = vpop.permute.xlu0 %350
      %v352 = vrot.slane %v351, 4
      %vm353 = vcmask 1039360
      %v354 = vsel %vm353, %v351, %v352
      %356 = vst.msk [vmem:[#allocation2 + $0x8] sm:$0xff] %vm346, %v354
      %v357 = vld [vmem:[%s332] sm:$0xff]
      %359 = vrot.lane.b32.xlu0 %v357, 126
      %v360 = vpop.permute.xlu0 %359
      %v361 = vrot.slane %v360, 4
      %vm362 = vcmask 1031168
      %v363 = vsel %vm362, %v360, %v361
      %365 = vst.msk [vmem:[#allocation2 + $0x10] sm:$0xff] %vm346, %v363
      %v366 = vld [vmem:[%s2] sm:$0xff]
      %v367 = vld [vmem:[%s2 + $0x8] sm:$0xff]
      %v368 = vld [vmem:[%s2 + $0x10] sm:$0xff]
      %v369 = vld [vmem:[%s2 + $0x18] sm:$0xff]
      %v370 = vld [vmem:[%s2 + $0x20] sm:$0xff]
      %v371 = vld [vmem:[%s2 + $0x28] sm:$0xff]
      %v372 = vld [vmem:[%s2 + $0x30] sm:$0xff]
      %v373 = vld [vmem:[%s2 + $0x38] sm:$0xff]
      %v374 = vld [vmem:[%s1] sm:$0xf]
      %v375 = vld [vmem:[%s1 + $0x4] sm:$0xf]
      %v376 = vld [vmem:[%s1 + $0x8] sm:$0xf]
      %v377 = vld [vmem:[%s1 + $0xc] sm:$0xf]
      %v378 = vld [vmem:[%s1 + $0x10] sm:$0xf]
      %v379 = vld [vmem:[%s1 + $0x14] sm:$0xf]
      %v380 = vld [vmem:[%s1 + $0x18] sm:$0xf]
      %v381 = vld [vmem:[%s1 + $0x1c] sm:$0xf]
      %v382 = vld [vmem:[#allocation2] sm:$0xff]
      %v383 = vld [vmem:[#allocation2 + $0x8] sm:$0xff]
      %v384 = vld [vmem:[#allocation2 + $0x10] sm:$0xff]
      %v393 = vunpack.c.l.b16 %v374
      %v394 = vunpack.c.l.b16 %v375
      %v395 = vunpack.c.l.b16 %v376
      %v396 = vunpack.c.l.b16 %v377
      %v397 = vunpack.c.l.b16 %v378
      %v398 = vunpack.c.l.b16 %v379
      %v399 = vunpack.c.l.b16 %v380
      %v400 = vunpack.c.l.b16 %v381
      %v401 = vpack.c.b16 %v394, %v393
      %v402 = vpack.c.b16 %v396, %v395
      %v403 = vpack.c.b16 %v398, %v397
      %v404 = vpack.c.b16 %v400, %v399
      %v408 = vunpack.c.l.b16 %v382
      %v409 = vunpack.c.h.b16 %v382
      %v410 = vunpack.c.l.b16 %v383
      %v411 = vunpack.c.h.b16 %v383
      %v412 = vunpack.c.l.b16 %v384
      %v413 = vunpack.c.h.b16 %v384
      %v414 = vpack.c.b16 %v410, %v408
      %v415 = vpack.c.b16 %v411, %v409
      %v416 = vpack.c.b16 %v412, %v412
      %v417 = vpack.c.b16 %v413, %v413
      %vm420 = vcmask 195584
      %v422 = vsel %vm420, %v401, 0
      %v425 = vsel %vm420, %v402, 0
      %v428 = vsel %vm420, %v403, 0
      %v431 = vsel %vm420, %v404, 0
      %v434 = vsel %vm344, %v416, 0
      %v437 = vsel %vm344, %v417, 0
      %439 = vmatpush.bf16.msra.mxu0 0
      %440 = vmatpush.bf16.msra.mxu0 0
      %441 = vmatpush.bf16.msra.mxu0 0
      %442 = vmatpush.bf16.msra.mxu0 0
      %443 = vmatpush.bf16.msra.mxu0 0
      %444 = vmatpush.bf16.msra.mxu0 0
      %445 = vmatpush.bf16.msra.mxu0 %v434
      %446 = vmatpush.bf16.msra.mxu0 %v414
      %447 = vmatmul.bf16.gmra.mxu0 %v422
      %v448 = vpop.f32.mrf.mxu0
      %v449 = vadd.f32 0.0, %v448
      %v450 = vpop.f32.mrf.mxu0
      %v451 = vadd.f32 0.0, %v450
      %452 = vmatmul.bf16.gmra.mxu0 %v425
      %v453 = vpop.f32.mrf.mxu0
      %v454 = vadd.f32 0.0, %v453
      %v455 = vpop.f32.mrf.mxu0
      %v456 = vadd.f32 0.0, %v455
      %457 = vmatmul.bf16.gmra.mxu0 %v428
      %v458 = vpop.f32.mrf.mxu0
      %v459 = vadd.f32 0.0, %v458
      %v460 = vpop.f32.mrf.mxu0
      %v461 = vadd.f32 0.0, %v460
      %462 = vmatmul.bf16.gmra.mxu0 %v431
      %v463 = vpop.f32.mrf.mxu0
      %v464 = vadd.f32 0.0, %v463
      %v465 = vpop.f32.mrf.mxu0
      %v466 = vadd.f32 0.0, %v465
      %467 = vdwg.mxu0
      %468 = vmatpush.bf16.msra.mxu0 0
      %469 = vmatpush.bf16.msra.mxu0 0
      %470 = vmatpush.bf16.msra.mxu0 0
      %471 = vmatpush.bf16.msra.mxu0 0
      %472 = vmatpush.bf16.msra.mxu0 0
      %473 = vmatpush.bf16.msra.mxu0 0
      %474 = vmatpush.bf16.msra.mxu0 %v437
      %475 = vmatpush.bf16.msra.mxu0 %v415
      %476 = vmatmul.bf16.gmra.mxu0 %v422
      %v477 = vpop.f32.mrf.mxu0
      %v478 = vadd.f32 0.0, %v477
      %v479 = vpop.f32.mrf.mxu0
      %v480 = vadd.f32 0.0, %v479
      %481 = vmatmul.bf16.gmra.mxu0 %v425
      %v482 = vpop.f32.mrf.mxu0
      %v483 = vadd.f32 0.0, %v482
      %v484 = vpop.f32.mrf.mxu0
      %v485 = vadd.f32 0.0, %v484
      %486 = vmatmul.bf16.gmra.mxu0 %v428
      %v487 = vpop.f32.mrf.mxu0
      %v488 = vadd.f32 0.0, %v487
      %v489 = vpop.f32.mrf.mxu0
      %v490 = vadd.f32 0.0, %v489
      %491 = vmatmul.bf16.gmra.mxu0 %v431
      %v492 = vpop.f32.mrf.mxu0
      %v493 = vadd.f32 0.0, %v492
      %v494 = vpop.f32.mrf.mxu0
      %v495 = vadd.f32 0.0, %v494
      %496 = vdwg.mxu0
      %498 = vset.pattern.permute.xlu0 0
      %499 = vperm.xlu0 %498, %v366
      %v500 = vpop.permute.xlu0 %499
      %503 = vset.pattern.permute.xlu0 0
      %504 = vperm.xlu0 %503, %v367
      %v505 = vpop.permute.xlu0 %504
      %508 = vset.pattern.permute.xlu0 0
      %509 = vperm.xlu0 %508, %v368
      %v510 = vpop.permute.xlu0 %509
      %513 = vset.pattern.permute.xlu0 0
      %514 = vperm.xlu0 %513, %v369
      %v515 = vpop.permute.xlu0 %514
      %518 = vset.pattern.permute.xlu0 0
      %519 = vperm.xlu0 %518, %v370
      %v520 = vpop.permute.xlu0 %519
      %523 = vset.pattern.permute.xlu0 0
      %524 = vperm.xlu0 %523, %v371
      %v525 = vpop.permute.xlu0 %524
      %528 = vset.pattern.permute.xlu0 0
      %529 = vperm.xlu0 %528, %v372
      %v530 = vpop.permute.xlu0 %529
      %533 = vset.pattern.permute.xlu0 0
      %534 = vperm.xlu0 %533, %v373
      %v535 = vpop.permute.xlu0 %534
      %v537 = vadd.f32 %v500, %v449
      %v538 = vadd.f32 %v500, %v478
      %v539 = vadd.f32 %v505, %v451
      %v540 = vadd.f32 %v505, %v480
      %v541 = vadd.f32 %v510, %v454
      %v542 = vadd.f32 %v510, %v483
      %v543 = vadd.f32 %v515, %v456
      %v544 = vadd.f32 %v515, %v485
      %v545 = vadd.f32 %v520, %v459
      %v546 = vadd.f32 %v520, %v488
      %v547 = vadd.f32 %v525, %v461
      %v548 = vadd.f32 %v525, %v490
      %v549 = vadd.f32 %v530, %v464
      %v550 = vadd.f32 %v530, %v493
      %v551 = vadd.f32 %v535, %v466
      %v552 = vadd.f32 %v535, %v495
      %s553 = scalar_lea.vmem %s1, 32
      %v554 = vld [vmem:[%s553] sm:$0xf]
      %v555 = vld [vmem:[%s553 + $0x4] sm:$0xf]
      %v556 = vld [vmem:[%s553 + $0x8] sm:$0xf]
      %v557 = vld [vmem:[%s553 + $0xc] sm:$0xf]
      %v558 = vld [vmem:[%s553 + $0x10] sm:$0xf]
      %v559 = vld [vmem:[%s553 + $0x14] sm:$0xf]
      %v560 = vld [vmem:[%s553 + $0x18] sm:$0xf]
      %v561 = vld [vmem:[%s553 + $0x1c] sm:$0xf]
      %v570 = vunpack.c.l.b16 %v554
      %v571 = vunpack.c.l.b16 %v555
      %v572 = vunpack.c.l.b16 %v556
      %v573 = vunpack.c.l.b16 %v557
      %v574 = vunpack.c.l.b16 %v558
      %v575 = vunpack.c.l.b16 %v559
      %v576 = vunpack.c.l.b16 %v560
      %v577 = vunpack.c.l.b16 %v561
      %v578 = vpack.c.b16 %v571, %v570
      %v579 = vpack.c.b16 %v573, %v572
      %v580 = vpack.c.b16 %v575, %v574
      %v581 = vpack.c.b16 %v577, %v576
      %582 = vrot.lane.b32.xlu0 %v414, 110
      %v583 = vpop.permute.xlu0 %582
      %584 = vrot.lane.b32.xlu0 %v415, 110
      %v585 = vpop.permute.xlu0 %584
      %586 = vrot.lane.b32.xlu0 %v416, 110
      %v587 = vpop.permute.xlu0 %586
      %588 = vrot.lane.b32.xlu0 %v417, 110
      %v589 = vpop.permute.xlu0 %588
      %vm590 = vcmask 900096
      %v591 = vsel %vm590, %v583, %v585
      %v592 = vsel %vm590, %v587, %v589
      %v596 = vsel %vm420, %v578, 0
      %v599 = vsel %vm420, %v579, 0
      %v602 = vsel %vm420, %v580, 0
      %v605 = vsel %vm420, %v581, 0
      %v608 = vsel %vm344, %v592, 0
      %v611 = vsel %vm344, %v589, 0
      %613 = vmatpush.bf16.msra.mxu0 0
      %614 = vmatpush.bf16.msra.mxu0 0
      %615 = vmatpush.bf16.msra.mxu0 0
      %616 = vmatpush.bf16.msra.mxu0 0
      %617 = vmatpush.bf16.msra.mxu0 0
      %618 = vmatpush.bf16.msra.mxu0 0
      %619 = vmatpush.bf16.msra.mxu0 %v608
      %620 = vmatpush.bf16.msra.mxu0 %v591
      %621 = vmatmul.bf16.gmra.mxu0 %v596
      %v622 = vpop.f32.mrf.mxu0
      %v623 = vadd.f32 0.0, %v622
      %v624 = vpop.f32.mrf.mxu0
      %v625 = vadd.f32 0.0, %v624
      %626 = vmatmul.bf16.gmra.mxu0 %v599
      %v627 = vpop.f32.mrf.mxu0
      %v628 = vadd.f32 0.0, %v627
      %v629 = vpop.f32.mrf.mxu0
      %v630 = vadd.f32 0.0, %v629
      %631 = vmatmul.bf16.gmra.mxu0 %v602
      %v632 = vpop.f32.mrf.mxu0
      %v633 = vadd.f32 0.0, %v632
      %v634 = vpop.f32.mrf.mxu0
      %v635 = vadd.f32 0.0, %v634
      %636 = vmatmul.bf16.gmra.mxu0 %v605
      %v637 = vpop.f32.mrf.mxu0
      %v638 = vadd.f32 0.0, %v637
      %v639 = vpop.f32.mrf.mxu0
      %v640 = vadd.f32 0.0, %v639
      %641 = vdwg.mxu0
      %642 = vmatpush.bf16.msra.mxu0 0
      %643 = vmatpush.bf16.msra.mxu0 0
      %644 = vmatpush.bf16.msra.mxu0 0
      %645 = vmatpush.bf16.msra.mxu0 0
      %646 = vmatpush.bf16.msra.mxu0 0
      %647 = vmatpush.bf16.msra.mxu0 0
      %648 = vmatpush.bf16.msra.mxu0 %v611
      %649 = vmatpush.bf16.msra.mxu0 %v585
      %650 = vmatmul.bf16.gmra.mxu0 %v596
      %v651 = vpop.f32.mrf.mxu0
      %v652 = vadd.f32 0.0, %v651
      %v653 = vpop.f32.mrf.mxu0
      %v654 = vadd.f32 0.0, %v653
      %655 = vmatmul.bf16.gmra.mxu0 %v599
      %v656 = vpop.f32.mrf.mxu0
      %v657 = vadd.f32 0.0, %v656
      %v658 = vpop.f32.mrf.mxu0
      %v659 = vadd.f32 0.0, %v658
      %660 = vmatmul.bf16.gmra.mxu0 %v602
      %v661 = vpop.f32.mrf.mxu0
      %v662 = vadd.f32 0.0, %v661
      %v663 = vpop.f32.mrf.mxu0
      %v664 = vadd.f32 0.0, %v663
      %665 = vmatmul.bf16.gmra.mxu0 %v605
      %v666 = vpop.f32.mrf.mxu0
      %v667 = vadd.f32 0.0, %v666
      %v668 = vpop.f32.mrf.mxu0
      %v669 = vadd.f32 0.0, %v668
      %670 = vdwg.mxu0
      %v671 = vadd.f32 %v537, %v623
      %v672 = vadd.f32 %v538, %v652
      %v673 = vadd.f32 %v539, %v625
      %v674 = vadd.f32 %v540, %v654
      %v675 = vadd.f32 %v541, %v628
      %v676 = vadd.f32 %v542, %v657
      %v677 = vadd.f32 %v543, %v630
      %v678 = vadd.f32 %v544, %v659
      %v679 = vadd.f32 %v545, %v633
      %v680 = vadd.f32 %v546, %v662
      %v681 = vadd.f32 %v547, %v635
      %v682 = vadd.f32 %v548, %v664
      %v683 = vadd.f32 %v549, %v638
      %v684 = vadd.f32 %v550, %v667
      %v685 = vadd.f32 %v551, %v640
      %v686 = vadd.f32 %v552, %v669
      %s687 = scalar_lea.vmem %s1, 64
      %v688 = vld [vmem:[%s687] sm:$0xf]
      %v689 = vld [vmem:[%s687 + $0x4] sm:$0xf]
      %v690 = vld [vmem:[%s687 + $0x8] sm:$0xf]
      %v691 = vld [vmem:[%s687 + $0xc] sm:$0xf]
      %v692 = vld [vmem:[%s687 + $0x10] sm:$0xf]
      %v693 = vld [vmem:[%s687 + $0x14] sm:$0xf]
      %v694 = vld [vmem:[%s687 + $0x18] sm:$0xf]
      %v695 = vld [vmem:[%s687 + $0x1c] sm:$0xf]
      %v704 = vunpack.c.l.b16 %v688
      %v705 = vunpack.c.l.b16 %v689
      %v706 = vunpack.c.l.b16 %v690
      %v707 = vunpack.c.l.b16 %v691
      %v708 = vunpack.c.l.b16 %v692
      %v709 = vunpack.c.l.b16 %v693
      %v710 = vunpack.c.l.b16 %v694
      %v711 = vunpack.c.l.b16 %v695
      %v712 = vpack.c.b16 %v705, %v704
      %v713 = vpack.c.b16 %v707, %v706
      %v714 = vpack.c.b16 %v709, %v708
      %v715 = vpack.c.b16 %v711, %v710
      %716 = vrot.lane.b32.xlu0 %v414, 92
      %v717 = vpop.permute.xlu0 %716
      %718 = vrot.lane.b32.xlu0 %v415, 92
      %v719 = vpop.permute.xlu0 %718
      %720 = vrot.lane.b32.xlu0 %v416, 92
      %v721 = vpop.permute.xlu0 %720
      %722 = vrot.lane.b32.xlu0 %v417, 92
      %v723 = vpop.permute.xlu0 %722
      %vm724 = vcmask 752640
      %v725 = vsel %vm724, %v717, %v719
      %v726 = vsel %vm724, %v721, %v723
      %v730 = vsel %vm420, %v712, 0
      %v733 = vsel %vm420, %v713, 0
      %v736 = vsel %vm420, %v714, 0
      %v739 = vsel %vm420, %v715, 0
      %v742 = vsel %vm344, %v726, 0
      %v745 = vsel %vm344, %v723, 0
      %747 = vmatpush.bf16.msra.mxu0 0
      %748 = vmatpush.bf16.msra.mxu0 0
      %749 = vmatpush.bf16.msra.mxu0 0
      %750 = vmatpush.bf16.msra.mxu0 0
      %751 = vmatpush.bf16.msra.mxu0 0
      %752 = vmatpush.bf16.msra.mxu0 0
      %753 = vmatpush.bf16.msra.mxu0 %v742
      %754 = vmatpush.bf16.msra.mxu0 %v725
      %755 = vmatmul.bf16.gmra.mxu0 %v730
      %v756 = vpop.f32.mrf.mxu0
      %v757 = vadd.f32 0.0, %v756
      %v758 = vpop.f32.mrf.mxu0
      %v759 = vadd.f32 0.0, %v758
      %760 = vmatmul.bf16.gmra.mxu0 %v733
      %v761 = vpop.f32.mrf.mxu0
      %v762 = vadd.f32 0.0, %v761
      %v763 = vpop.f32.mrf.mxu0
      %v764 = vadd.f32 0.0, %v763
      %765 = vmatmul.bf16.gmra.mxu0 %v736
      %v766 = vpop.f32.mrf.mxu0
      %v767 = vadd.f32 0.0, %v766
      %v768 = vpop.f32.mrf.mxu0
      %v769 = vadd.f32 0.0, %v768
      %770 = vmatmul.bf16.gmra.mxu0 %v739
      %v771 = vpop.f32.mrf.mxu0
      %v772 = vadd.f32 0.0, %v771
      %v773 = vpop.f32.mrf.mxu0
      %v774 = vadd.f32 0.0, %v773
      %775 = vdwg.mxu0
      %776 = vmatpush.bf16.msra.mxu0 0
      %777 = vmatpush.bf16.msra.mxu0 0
      %778 = vmatpush.bf16.msra.mxu0 0
      %779 = vmatpush.bf16.msra.mxu0 0
      %780 = vmatpush.bf16.msra.mxu0 0
      %781 = vmatpush.bf16.msra.mxu0 0
      %782 = vmatpush.bf16.msra.mxu0 %v745
      %783 = vmatpush.bf16.msra.mxu0 %v719
      %784 = vmatmul.bf16.gmra.mxu0 %v730
      %v785 = vpop.f32.mrf.mxu0
      %v786 = vadd.f32 0.0, %v785
      %v787 = vpop.f32.mrf.mxu0
      %v788 = vadd.f32 0.0, %v787
      %789 = vmatmul.bf16.gmra.mxu0 %v733
      %v790 = vpop.f32.mrf.mxu0
      %v791 = vadd.f32 0.0, %v790
      %v792 = vpop.f32.mrf.mxu0
      %v793 = vadd.f32 0.0, %v792
      %794 = vmatmul.bf16.gmra.mxu0 %v736
      %v795 = vpop.f32.mrf.mxu0
      %v796 = vadd.f32 0.0, %v795
      %v797 = vpop.f32.mrf.mxu0
      %v798 = vadd.f32 0.0, %v797
      %799 = vmatmul.bf16.gmra.mxu0 %v739
      %v800 = vpop.f32.mrf.mxu0
      %v801 = vadd.f32 0.0, %v800
      %v802 = vpop.f32.mrf.mxu0
      %v803 = vadd.f32 0.0, %v802
      %804 = vdwg.mxu0
      %v805 = vadd.f32 %v671, %v757
      %v806 = vadd.f32 %v672, %v786
      %v807 = vadd.f32 %v673, %v759
      %v808 = vadd.f32 %v674, %v788
      %v809 = vadd.f32 %v675, %v762
      %v810 = vadd.f32 %v676, %v791
      %v811 = vadd.f32 %v677, %v764
      %v812 = vadd.f32 %v678, %v793
      %v813 = vadd.f32 %v679, %v767
      %v814 = vadd.f32 %v680, %v796
      %v815 = vadd.f32 %v681, %v769
      %v816 = vadd.f32 %v682, %v798
      %v817 = vadd.f32 %v683, %v772
      %v818 = vadd.f32 %v684, %v801
      %v819 = vadd.f32 %v685, %v774
      %v820 = vadd.f32 %v686, %v803
      %v821 = vmax.f32 %v805, 0.0
      %v822 = vmax.f32 %v806, 0.0
      %v823 = vmax.f32 %v807, 0.0
      %v824 = vmax.f32 %v808, 0.0
      %v825 = vmax.f32 %v809, 0.0
      %v826 = vmax.f32 %v810, 0.0
      %v827 = vmax.f32 %v811, 0.0
      %v828 = vmax.f32 %v812, 0.0
      %v829 = vmax.f32 %v813, 0.0
      %v830 = vmax.f32 %v814, 0.0
      %v831 = vmax.f32 %v815, 0.0
      %v832 = vmax.f32 %v816, 0.0
      %v833 = vmax.f32 %v817, 0.0
      %v834 = vmax.f32 %v818, 0.0
      %v835 = vmax.f32 %v819, 0.0
      %v836 = vmax.f32 %v820, 0.0
      %v837 = vlaneseq
      %v838 = vand.u32 %v837, 127
      %v839 = vadd.s32 %v838, 128
      %p840 = scmp.eq.s32.totalorder %s24, 0
      %s841 = scalar_select %p840, 36, 0
      %p842 = scmp.eq.s32.totalorder %s24, 1
      %s843 = scalar_select %p842, 180, 216
      %v844 = vld [vmem:[%s7] sm:$0x3]
      %vm845 = vcmp.gt.f32.partialorder %v844, 0.5
      %v846 = vstv %s841
      %vm847 = vcmp.ge.s32.totalorder %v838, %v846
      %vm848 = vcmp.ge.s32.totalorder %v839, %v846
      %v849 = vsel %vm847, 1, 0
      %v850 = vsel %vm848, 1, 0
      %v851 = vrot.slane %v850, 7
      %vm852 = vcmask 1040384
      %v853 = vsel %vm852, %v849, %v851
      %vm854 = vcmp.ne.s32.totalorder %v853, 0
      %vm855 = vmand %vm845, %vm854
      %v856 = vstv %s843
      %vm857 = vcmp.lt.s32.totalorder %v838, %v856
      %vm858 = vcmp.lt.s32.totalorder %v839, %v856
      %v859 = vsel %vm857, 1, 0
      %v860 = vsel %vm858, 1, 0
      %v861 = vrot.slane %v860, 7
      %v862 = vsel %vm852, %v859, %v861
      %vm863 = vcmp.ne.s32.totalorder %v862, 0
      %vm864 = vmand %vm855, %vm863
      %v865 = vsel %vm864, 1, 0
      %v866 = vperm.slane %v865, 0
      %v867 = vperm.slane %v865, 1
      %vm868 = vcmp.eq.s32.totalorder %v866, 1
      %vm869 = vcmp.eq.s32.totalorder %v867, 1
      %v870 = vsel %vm868, %v821, 0.0
      %v871 = vsel %vm869, %v822, 0.0
      %v872 = vsel %vm868, %v823, 0.0
      %v873 = vsel %vm869, %v824, 0.0
      %v874 = vsel %vm868, %v825, 0.0
      %v875 = vsel %vm869, %v826, 0.0
      %v876 = vsel %vm868, %v827, 0.0
      %v877 = vsel %vm869, %v828, 0.0
      %v878 = vsel %vm868, %v829, 0.0
      %v879 = vsel %vm869, %v830, 0.0
      %v880 = vsel %vm868, %v831, 0.0
      %v881 = vsel %vm869, %v832, 0.0
      %v882 = vsel %vm868, %v833, 0.0
      %v883 = vsel %vm869, %v834, 0.0
      %v884 = vsel %vm868, %v835, 0.0
      %v885 = vsel %vm869, %v836, 0.0
      %v886 = vpack.c.bf16 %v871, %v870
      %v887 = vpack.c.bf16 %v873, %v872
      %v888 = vpack.c.bf16 %v875, %v874
      %v889 = vpack.c.bf16 %v877, %v876
      %v890 = vpack.c.bf16 %v879, %v878
      %v891 = vpack.c.bf16 %v881, %v880
      %v892 = vpack.c.bf16 %v883, %v882
      %v893 = vpack.c.bf16 %v885, %v884
      %vm894 = vcmask 11264
      %895 = vst.msk [vmem:[#allocation2] sm:$0xf] %vm894, 0
      %896 = vst.msk [vmem:[#allocation2 + $0x8] sm:$0xf] %vm894, 0
      %897 = vst.msk [vmem:[#allocation2 + $0x10] sm:$0xf] %vm894, 0
      %898 = vst.msk [vmem:[#allocation2 + $0x18] sm:$0xf] %vm894, 0
      %899 = vst.msk [vmem:[#allocation2 + $0x20] sm:$0xf] %vm894, 0
      %900 = vst.msk [vmem:[#allocation2 + $0x28] sm:$0xf] %vm894, 0
      %901 = vst.msk [vmem:[#allocation2 + $0x30] sm:$0xf] %vm894, 0
      %902 = vst.msk [vmem:[#allocation2 + $0x38] sm:$0xf] %vm894, 0
      %903 = vst.msk [vmem:[#allocation2 + $0x40] sm:$0xf] %vm894, 0
      %904 = vst.msk [vmem:[#allocation2 + $0x48] sm:$0xf] %vm894, 0
      %905 = vst.msk [vmem:[#allocation2 + $0x50] sm:$0xf] %vm894, 0
      %906 = vst.msk [vmem:[#allocation2 + $0x58] sm:$0xf] %vm894, 0
      %907 = vst.msk [vmem:[#allocation2 + $0x60] sm:$0xf] %vm894, 0
      %908 = vst.msk [vmem:[#allocation2 + $0x68] sm:$0xf] %vm894, 0
      %909 = vst.msk [vmem:[#allocation2 + $0x70] sm:$0xf] %vm894, 0
      %910 = vst.msk [vmem:[#allocation2 + $0x78] sm:$0xf] %vm894, 0
      %911 = vst.msk [vmem:[#allocation2 + $0x80] sm:$0xf] %vm894, 0
      %912 = vst.msk [vmem:[#allocation2 + $0x88] sm:$0xf] %vm894, 0
      %913 = vst.msk [vmem:[#allocation2 + $0x90] sm:$0xf] %vm894, 0
      %914 = vst.msk [vmem:[#allocation2 + $0x98] sm:$0xf] %vm894, 0
      %915 = vst.msk [vmem:[#allocation2 + $0xa0] sm:$0xf] %vm894, 0
      %916 = vst.msk [vmem:[#allocation2 + $0xa8] sm:$0xf] %vm894, 0
      %917 = vst.msk [vmem:[#allocation2 + $0xb0] sm:$0xf] %vm894, 0
      %918 = vst.msk [vmem:[#allocation2 + $0xb8] sm:$0xf] %vm894, 0
      %vm919 = vcmask 732864
      %920 = vst.msk [vmem:[#allocation2 + $0x4] sm:$0xf] %vm919, 0
      %921 = vst.msk [vmem:[#allocation2 + $0xc] sm:$0xf] %vm919, 0
      %922 = vst.msk [vmem:[#allocation2 + $0x14] sm:$0xf] %vm919, 0
      %923 = vst.msk [vmem:[#allocation2 + $0x1c] sm:$0xf] %vm919, 0
      %924 = vst.msk [vmem:[#allocation2 + $0x24] sm:$0xf] %vm919, 0
      %925 = vst.msk [vmem:[#allocation2 + $0x2c] sm:$0xf] %vm919, 0
      %926 = vst.msk [vmem:[#allocation2 + $0x34] sm:$0xf] %vm919, 0
      %927 = vst.msk [vmem:[#allocation2 + $0x3c] sm:$0xf] %vm919, 0
      %928 = vst.msk [vmem:[#allocation2 + $0x44] sm:$0xf] %vm919, 0
      %929 = vst.msk [vmem:[#allocation2 + $0x4c] sm:$0xf] %vm919, 0
      %930 = vst.msk [vmem:[#allocation2 + $0x54] sm:$0xf] %vm919, 0
      %931 = vst.msk [vmem:[#allocation2 + $0x5c] sm:$0xf] %vm919, 0
      %932 = vst.msk [vmem:[#allocation2 + $0x64] sm:$0xf] %vm919, 0
      %933 = vst.msk [vmem:[#allocation2 + $0x6c] sm:$0xf] %vm919, 0
      %934 = vst.msk [vmem:[#allocation2 + $0x74] sm:$0xf] %vm919, 0
      %935 = vst.msk [vmem:[#allocation2 + $0x7c] sm:$0xf] %vm919, 0
      %936 = vst.msk [vmem:[#allocation2 + $0x84] sm:$0xf] %vm919, 0
      %937 = vst.msk [vmem:[#allocation2 + $0x8c] sm:$0xf] %vm919, 0
      %938 = vst.msk [vmem:[#allocation2 + $0x94] sm:$0xf] %vm919, 0
      %939 = vst.msk [vmem:[#allocation2 + $0x9c] sm:$0xf] %vm919, 0
      %940 = vst.msk [vmem:[#allocation2 + $0xa4] sm:$0xf] %vm919, 0
      %941 = vst.msk [vmem:[#allocation2 + $0xac] sm:$0xf] %vm919, 0
      %942 = vst.msk [vmem:[#allocation2 + $0xb4] sm:$0xf] %vm919, 0
      %943 = vst.msk [vmem:[#allocation2 + $0xbc] sm:$0xf] %vm919, 0
      %952 = vrot.lane.b32.xlu0 %v886, 2
      %v953 = vpop.permute.xlu0 %952
      %954 = vrot.lane.b32.xlu0 %v887, 2
      %v955 = vpop.permute.xlu0 %954
      %956 = vrot.lane.b32.xlu0 %v888, 2
      %v957 = vpop.permute.xlu0 %956
      %958 = vrot.lane.b32.xlu0 %v889, 2
      %v959 = vpop.permute.xlu0 %958
      %960 = vrot.lane.b32.xlu0 %v890, 2
      %v961 = vpop.permute.xlu0 %960
      %962 = vrot.lane.b32.xlu0 %v891, 2
      %v963 = vpop.permute.xlu0 %962
      %964 = vrot.lane.b32.xlu0 %v892, 2
      %v965 = vpop.permute.xlu0 %964
      %966 = vrot.lane.b32.xlu0 %v893, 2
      %v967 = vpop.permute.xlu0 %966
      %v968 = vrot.slane %v953, 4
      %v969 = vrot.slane %v955, 4
      %v970 = vrot.slane %v957, 4
      %v971 = vrot.slane %v959, 4
      %v972 = vrot.slane %v961, 4
      %v973 = vrot.slane %v963, 4
      %v974 = vrot.slane %v965, 4
      %v975 = vrot.slane %v967, 4
      %vm976 = vcmask 15360
      %v977 = vsel %vm976, %v968, %v953
      %v978 = vsel %vm976, %v969, %v955
      %v979 = vsel %vm976, %v970, %v957
      %v980 = vsel %vm976, %v971, %v959
      %v981 = vsel %vm976, %v972, %v961
      %v982 = vsel %vm976, %v973, %v963
      %v983 = vsel %vm976, %v974, %v965
      %v984 = vsel %vm976, %v975, %v967
      %vm993 = vcmask 1043472
      %vm994 = vcmask 736260
      %vm995 = vmor %vm994, %vm993
      %996 = vst.msk [vmem:[#allocation2] sm:$0xff] %vm995, %v977
      %997 = vst.msk [vmem:[#allocation2 + $0x8] sm:$0xff] %vm995, %v978
      %998 = vst.msk [vmem:[#allocation2 + $0x10] sm:$0xff] %vm995, %v979
      %999 = vst.msk [vmem:[#allocation2 + $0x18] sm:$0xff] %vm995, %v980
      %1000 = vst.msk [vmem:[#allocation2 + $0x20] sm:$0xff] %vm995, %v981
      %1001 = vst.msk [vmem:[#allocation2 + $0x28] sm:$0xff] %vm995, %v982
      %1002 = vst.msk [vmem:[#allocation2 + $0x30] sm:$0xff] %vm995, %v983
      %1003 = vst.msk [vmem:[#allocation2 + $0x38] sm:$0xff] %vm995, %v984
      %1004 = vrot.lane.b32.xlu0 %v886, 1
      %v1005 = vpop.permute.xlu0 %1004
      %1006 = vrot.lane.b32.xlu0 %v887, 1
      %v1007 = vpop.permute.xlu0 %1006
      %1008 = vrot.lane.b32.xlu0 %v888, 1
      %v1009 = vpop.permute.xlu0 %1008
      %1010 = vrot.lane.b32.xlu0 %v889, 1
      %v1011 = vpop.permute.xlu0 %1010
      %1012 = vrot.lane.b32.xlu0 %v890, 1
      %v1013 = vpop.permute.xlu0 %1012
      %1014 = vrot.lane.b32.xlu0 %v891, 1
      %v1015 = vpop.permute.xlu0 %1014
      %1016 = vrot.lane.b32.xlu0 %v892, 1
      %v1017 = vpop.permute.xlu0 %1016
      %1018 = vrot.lane.b32.xlu0 %v893, 1
      %v1019 = vpop.permute.xlu0 %1018
      %v1020 = vrot.slane %v1005, 4
      %v1021 = vrot.slane %v1007, 4
      %v1022 = vrot.slane %v1009, 4
      %v1023 = vrot.slane %v1011, 4
      %v1024 = vrot.slane %v1013, 4
      %v1025 = vrot.slane %v1015, 4
      %v1026 = vrot.slane %v1017, 4
      %v1027 = vrot.slane %v1019, 4
      %vm1028 = vcmask 7168
      %v1029 = vsel %vm1028, %v1020, %v1005
      %v1030 = vsel %vm1028, %v1021, %v1007
      %v1031 = vsel %vm1028, %v1022, %v1009
      %v1032 = vsel %vm1028, %v1023, %v1011
      %v1033 = vsel %vm1028, %v1024, %v1013
      %v1034 = vsel %vm1028, %v1025, %v1015
      %v1035 = vsel %vm1028, %v1026, %v1017
      %v1036 = vsel %vm1028, %v1027, %v1019
      %vm1045 = vcmask 1043464
      %vm1046 = vcmask 728068
      %vm1047 = vmor %vm1046, %vm1045
      %1048 = vst.msk [vmem:[#allocation2 + $0x40] sm:$0xff] %vm1047, %v1029
      %1049 = vst.msk [vmem:[#allocation2 + $0x48] sm:$0xff] %vm1047, %v1030
      %1050 = vst.msk [vmem:[#allocation2 + $0x50] sm:$0xff] %vm1047, %v1031
      %1051 = vst.msk [vmem:[#allocation2 + $0x58] sm:$0xff] %vm1047, %v1032
      %1052 = vst.msk [vmem:[#allocation2 + $0x60] sm:$0xff] %vm1047, %v1033
      %1053 = vst.msk [vmem:[#allocation2 + $0x68] sm:$0xff] %vm1047, %v1034
      %1054 = vst.msk [vmem:[#allocation2 + $0x70] sm:$0xff] %vm1047, %v1035
      %1055 = vst.msk [vmem:[#allocation2 + $0x78] sm:$0xff] %vm1047, %v1036
      %vm1056 = vcmask 719876
      %vm1057 = vmor %vm1056, %vm344
      %1058 = vst.msk [vmem:[#allocation2 + $0x80] sm:$0xff] %vm1057, %v886
      %1059 = vst.msk [vmem:[#allocation2 + $0x88] sm:$0xff] %vm1057, %v887
      %1060 = vst.msk [vmem:[#allocation2 + $0x90] sm:$0xff] %vm1057, %v888
      %1061 = vst.msk [vmem:[#allocation2 + $0x98] sm:$0xff] %vm1057, %v889
      %1062 = vst.msk [vmem:[#allocation2 + $0xa0] sm:$0xff] %vm1057, %v890
      %1063 = vst.msk [vmem:[#allocation2 + $0xa8] sm:$0xff] %vm1057, %v891
      %1064 = vst.msk [vmem:[#allocation2 + $0xb0] sm:$0xff] %vm1057, %v892
      %1065 = vst.msk [vmem:[#allocation2 + $0xb8] sm:$0xff] %vm1057, %v893
      %v1066 = vld [vmem:[%s4] sm:$0xff]
      %v1067 = vld [vmem:[%s4 + $0x8] sm:$0xff]
      %v1068 = vld [vmem:[%s4 + $0x10] sm:$0xff]
      %v1069 = vld [vmem:[%s4 + $0x18] sm:$0xff]
      %v1070 = vld [vmem:[%s4 + $0x20] sm:$0xff]
      %v1071 = vld [vmem:[%s4 + $0x28] sm:$0xff]
      %v1072 = vld [vmem:[%s4 + $0x30] sm:$0xff]
      %v1073 = vld [vmem:[%s4 + $0x38] sm:$0xff]
      %v1074 = vld [vmem:[%s3] sm:$0xff]
      %v1075 = vld [vmem:[%s3 + $0x8] sm:$0xff]
      %v1076 = vld [vmem:[%s3 + $0x10] sm:$0xff]
      %v1077 = vld [vmem:[%s3 + $0x18] sm:$0xff]
      %v1078 = vld [vmem:[%s3 + $0x20] sm:$0xff]
      %v1079 = vld [vmem:[%s3 + $0x28] sm:$0xff]
      %v1080 = vld [vmem:[%s3 + $0x30] sm:$0xff]
      %v1081 = vld [vmem:[%s3 + $0x38] sm:$0xff]
      %v1082 = vld [vmem:[#allocation2] sm:$0xff]
      %v1083 = vld [vmem:[#allocation2 + $0x8] sm:$0xff]
      %v1084 = vld [vmem:[#allocation2 + $0x10] sm:$0xff]
      %v1085 = vld [vmem:[#allocation2 + $0x18] sm:$0xff]
      %v1086 = vld [vmem:[#allocation2 + $0x20] sm:$0xff]
      %v1087 = vld [vmem:[#allocation2 + $0x28] sm:$0xff]
      %v1088 = vld [vmem:[#allocation2 + $0x30] sm:$0xff]
      %v1089 = vld [vmem:[#allocation2 + $0x38] sm:$0xff]
      %v1090 = vld [vmem:[#allocation2 + $0x40] sm:$0xff]
      %v1091 = vld [vmem:[#allocation2 + $0x48] sm:$0xff]
      %v1092 = vld [vmem:[#allocation2 + $0x50] sm:$0xff]
      %v1093 = vld [vmem:[#allocation2 + $0x58] sm:$0xff]
      %v1094 = vld [vmem:[#allocation2 + $0x60] sm:$0xff]
      %v1095 = vld [vmem:[#allocation2 + $0x68] sm:$0xff]
      %v1096 = vld [vmem:[#allocation2 + $0x70] sm:$0xff]
      %v1097 = vld [vmem:[#allocation2 + $0x78] sm:$0xff]
      %v1098 = vld [vmem:[#allocation2 + $0x80] sm:$0xff]
      %v1099 = vld [vmem:[#allocation2 + $0x88] sm:$0xff]
      %v1100 = vld [vmem:[#allocation2 + $0x90] sm:$0xff]
      %v1101 = vld [vmem:[#allocation2 + $0x98] sm:$0xff]
      %v1102 = vld [vmem:[#allocation2 + $0xa0] sm:$0xff]
      %v1103 = vld [vmem:[#allocation2 + $0xa8] sm:$0xff]
      %v1104 = vld [vmem:[#allocation2 + $0xb0] sm:$0xff]
      %v1105 = vld [vmem:[#allocation2 + $0xb8] sm:$0xff]
      %v1114 = vunpack.c.l.b16 %v1074
      %v1115 = vunpack.c.h.b16 %v1074
      %v1116 = vunpack.c.l.b16 %v1075
      %v1117 = vunpack.c.h.b16 %v1075
      %v1118 = vunpack.c.l.b16 %v1076
      %v1119 = vunpack.c.h.b16 %v1076
      %v1120 = vunpack.c.l.b16 %v1077
      %v1121 = vunpack.c.h.b16 %v1077
      %v1122 = vunpack.c.l.b16 %v1078
      %v1123 = vunpack.c.h.b16 %v1078
      %v1124 = vunpack.c.l.b16 %v1079
      %v1125 = vunpack.c.h.b16 %v1079
      %v1126 = vunpack.c.l.b16 %v1080
      %v1127 = vunpack.c.h.b16 %v1080
      %v1128 = vunpack.c.l.b16 %v1081
      %v1129 = vunpack.c.h.b16 %v1081
      %v1130 = vpack.c.b16 %v1116, %v1114
      %v1131 = vpack.c.b16 %v1117, %v1115
      %v1132 = vpack.c.b16 %v1120, %v1118
      %v1133 = vpack.c.b16 %v1121, %v1119
      %v1134 = vpack.c.b16 %v1124, %v1122
      %v1135 = vpack.c.b16 %v1125, %v1123
      %v1136 = vpack.c.b16 %v1128, %v1126
      %v1137 = vpack.c.b16 %v1129, %v1127
      %v1166 = vunpack.c.l.b16 %v1082
      %v1167 = vunpack.c.h.b16 %v1082
      %v1168 = vunpack.c.l.b16 %v1083
      %v1169 = vunpack.c.h.b16 %v1083
      %v1170 = vunpack.c.l.b16 %v1084
      %v1171 = vunpack.c.h.b16 %v1084
      %v1172 = vunpack.c.l.b16 %v1085
      %v1173 = vunpack.c.h.b16 %v1085
      %v1174 = vunpack.c.l.b16 %v1086
      %v1175 = vunpack.c.h.b16 %v1086
      %v1176 = vunpack.c.l.b16 %v1087
      %v1177 = vunpack.c.h.b16 %v1087
      %v1178 = vunpack.c.l.b16 %v1088
      %v1179 = vunpack.c.h.b16 %v1088
      %v1180 = vunpack.c.l.b16 %v1089
      %v1181 = vunpack.c.h.b16 %v1089
      %v1182 = vunpack.c.l.b16 %v1090
      %v1183 = vunpack.c.h.b16 %v1090
      %v1184 = vunpack.c.l.b16 %v1091
      %v1185 = vunpack.c.h.b16 %v1091
      %v1186 = vunpack.c.l.b16 %v1092
      %v1187 = vunpack.c.h.b16 %v1092
      %v1188 = vunpack.c.l.b16 %v1093
      %v1189 = vunpack.c.h.b16 %v1093
      %v1190 = vunpack.c.l.b16 %v1094
      %v1191 = vunpack.c.h.b16 %v1094
      %v1192 = vunpack.c.l.b16 %v1095
      %v1193 = vunpack.c.h.b16 %v1095
      %v1194 = vunpack.c.l.b16 %v1096
      %v1195 = vunpack.c.h.b16 %v1096
      %v1196 = vunpack.c.l.b16 %v1097
      %v1197 = vunpack.c.h.b16 %v1097
      %v1198 = vunpack.c.l.b16 %v1098
      %v1199 = vunpack.c.h.b16 %v1098
      %v1200 = vunpack.c.l.b16 %v1099
      %v1201 = vunpack.c.h.b16 %v1099
      %v1202 = vunpack.c.l.b16 %v1100
      %v1203 = vunpack.c.h.b16 %v1100
      %v1204 = vunpack.c.l.b16 %v1101
      %v1205 = vunpack.c.h.b16 %v1101
      %v1206 = vunpack.c.l.b16 %v1102
      %v1207 = vunpack.c.h.b16 %v1102
      %v1208 = vunpack.c.l.b16 %v1103
      %v1209 = vunpack.c.h.b16 %v1103
      %v1210 = vunpack.c.l.b16 %v1104
      %v1211 = vunpack.c.h.b16 %v1104
      %v1212 = vunpack.c.l.b16 %v1105
      %v1213 = vunpack.c.h.b16 %v1105
      %v1214 = vpack.c.b16 %v1168, %v1166
      %v1215 = vpack.c.b16 %v1169, %v1167
      %v1216 = vpack.c.b16 %v1172, %v1170
      %v1217 = vpack.c.b16 %v1173, %v1171
      %v1218 = vpack.c.b16 %v1176, %v1174
      %v1219 = vpack.c.b16 %v1177, %v1175
      %v1220 = vpack.c.b16 %v1180, %v1178
      %v1221 = vpack.c.b16 %v1181, %v1179
      %v1222 = vpack.c.b16 %v1184, %v1182
      %v1223 = vpack.c.b16 %v1185, %v1183
      %v1224 = vpack.c.b16 %v1188, %v1186
      %v1225 = vpack.c.b16 %v1189, %v1187
      %v1226 = vpack.c.b16 %v1192, %v1190
      %v1227 = vpack.c.b16 %v1193, %v1191
      %v1228 = vpack.c.b16 %v1196, %v1194
      %v1229 = vpack.c.b16 %v1197, %v1195
      %v1230 = vpack.c.b16 %v1200, %v1198
      %v1231 = vpack.c.b16 %v1201, %v1199
      %v1232 = vpack.c.b16 %v1204, %v1202
      %v1233 = vpack.c.b16 %v1205, %v1203
      %v1234 = vpack.c.b16 %v1208, %v1206
      %v1235 = vpack.c.b16 %v1209, %v1207
      %v1236 = vpack.c.b16 %v1212, %v1210
      %v1237 = vpack.c.b16 %v1213, %v1211
      %1238 = vrot.lane.b32.xlu0 %v1214, 127
      %v1239 = vpop.permute.xlu0 %1238
      %1240 = vrot.lane.b32.xlu0 %v1215, 127
      %v1241 = vpop.permute.xlu0 %1240
      %1242 = vrot.lane.b32.xlu0 %v1216, 127
      %v1243 = vpop.permute.xlu0 %1242
      %1244 = vrot.lane.b32.xlu0 %v1217, 127
      %v1245 = vpop.permute.xlu0 %1244
      %1246 = vrot.lane.b32.xlu0 %v1218, 127
      %v1247 = vpop.permute.xlu0 %1246
      %1248 = vrot.lane.b32.xlu0 %v1219, 127
      %v1249 = vpop.permute.xlu0 %1248
      %1250 = vrot.lane.b32.xlu0 %v1220, 127
      %v1251 = vpop.permute.xlu0 %1250
      %1252 = vrot.lane.b32.xlu0 %v1221, 127
      %v1253 = vpop.permute.xlu0 %1252
      %1254 = vrot.lane.b32.xlu0 %v1222, 127
      %v1255 = vpop.permute.xlu0 %1254
      %1256 = vrot.lane.b32.xlu0 %v1223, 127
      %v1257 = vpop.permute.xlu0 %1256
      %1258 = vrot.lane.b32.xlu0 %v1224, 127
      %v1259 = vpop.permute.xlu0 %1258
      %1260 = vrot.lane.b32.xlu0 %v1225, 127
      %v1261 = vpop.permute.xlu0 %1260
      %1262 = vrot.lane.b32.xlu0 %v1226, 127
      %v1263 = vpop.permute.xlu0 %1262
      %1264 = vrot.lane.b32.xlu0 %v1227, 127
      %v1265 = vpop.permute.xlu0 %1264
      %1266 = vrot.lane.b32.xlu0 %v1228, 127
      %v1267 = vpop.permute.xlu0 %1266
      %1268 = vrot.lane.b32.xlu0 %v1229, 127
      %v1269 = vpop.permute.xlu0 %1268
      %1270 = vrot.lane.b32.xlu0 %v1230, 127
      %v1271 = vpop.permute.xlu0 %1270
      %1272 = vrot.lane.b32.xlu0 %v1231, 127
      %v1273 = vpop.permute.xlu0 %1272
      %1274 = vrot.lane.b32.xlu0 %v1232, 127
      %v1275 = vpop.permute.xlu0 %1274
      %1276 = vrot.lane.b32.xlu0 %v1233, 127
      %v1277 = vpop.permute.xlu0 %1276
      %1278 = vrot.lane.b32.xlu0 %v1234, 127
      %v1279 = vpop.permute.xlu0 %1278
      %1280 = vrot.lane.b32.xlu0 %v1235, 127
      %v1281 = vpop.permute.xlu0 %1280
      %1282 = vrot.lane.b32.xlu0 %v1236, 127
      %v1283 = vpop.permute.xlu0 %1282
      %1284 = vrot.lane.b32.xlu0 %v1237, 127
      %v1285 = vpop.permute.xlu0 %1284
      %v1286 = vsel %vm353, %v1239, %v1241
      %v1287 = vsel %vm353, %v1243, %v1245
      %v1288 = vsel %vm353, %v1247, %v1249
      %v1289 = vsel %vm353, %v1251, %v1253
      %v1290 = vsel %vm353, %v1255, %v1257
      %v1291 = vsel %vm353, %v1259, %v1261
      %v1292 = vsel %vm353, %v1263, %v1265
      %v1293 = vsel %vm353, %v1267, %v1269
      %v1294 = vsel %vm353, %v1271, %v1273
      %v1295 = vsel %vm353, %v1275, %v1277
      %v1296 = vsel %vm353, %v1279, %v1281
      %v1297 = vsel %vm353, %v1283, %v1285
      %vm1322 = vcmask 523264
      %v1324 = vsel %vm1322, %v1131, 0
      %v1327 = vsel %vm1322, %v1133, 0
      %v1330 = vsel %vm1322, %v1135, 0
      %v1333 = vsel %vm1322, %v1137, 0
      %1335 = vmatpush.bf16.msra.mxu0 %v1293
      %1336 = vmatpush.bf16.msra.mxu0 %v1292
      %1337 = vmatpush.bf16.msra.mxu0 %v1291
      %1338 = vmatpush.bf16.msra.mxu0 %v1290
      %1339 = vmatpush.bf16.msra.mxu0 %v1289
      %1340 = vmatpush.bf16.msra.mxu0 %v1288
      %1341 = vmatpush.bf16.msra.mxu0 %v1287
      %1342 = vmatpush.bf16.msra.mxu0 %v1286
      %1343 = vmatmul.bf16.gmra.mxu0 %v1130
      %v1344 = vpop.f32.mrf.mxu0
      %v1345 = vadd.f32 0.0, %v1344
      %v1346 = vpop.f32.mrf.mxu0
      %v1347 = vadd.f32 0.0, %v1346
      %1348 = vmatmul.bf16.gmra.mxu0 %v1132
      %v1349 = vpop.f32.mrf.mxu0
      %v1350 = vadd.f32 0.0, %v1349
      %v1351 = vpop.f32.mrf.mxu0
      %v1352 = vadd.f32 0.0, %v1351
      %1353 = vmatmul.bf16.gmra.mxu0 %v1134
      %v1354 = vpop.f32.mrf.mxu0
      %v1355 = vadd.f32 0.0, %v1354
      %v1356 = vpop.f32.mrf.mxu0
      %v1357 = vadd.f32 0.0, %v1356
      %1358 = vmatmul.bf16.gmra.mxu0 %v1136
      %v1359 = vpop.f32.mrf.mxu0
      %v1360 = vadd.f32 0.0, %v1359
      %v1361 = vpop.f32.mrf.mxu0
      %v1362 = vadd.f32 0.0, %v1361
      %1363 = vdwg.mxu0
      %1364 = vmatpush.bf16.msra.mxu0 0
      %1365 = vmatpush.bf16.msra.mxu0 0
      %1366 = vmatpush.bf16.msra.mxu0 0
      %1367 = vmatpush.bf16.msra.mxu0 0
      %1368 = vmatpush.bf16.msra.mxu0 %v1297
      %1369 = vmatpush.bf16.msra.mxu0 %v1296
      %1370 = vmatpush.bf16.msra.mxu0 %v1295
      %1371 = vmatpush.bf16.msra.mxu0 %v1294
      %1372 = vmatmul.bf16.gmra.mxu0 %v1324
      %v1373 = vpop.f32.mrf.mxu0
      %v1374 = vadd.f32 %v1345, %v1373
      %v1375 = vpop.f32.mrf.mxu0
      %v1376 = vadd.f32 %v1347, %v1375
      %1377 = vmatmul.bf16.gmra.mxu0 %v1327
      %v1378 = vpop.f32.mrf.mxu0
      %v1379 = vadd.f32 %v1350, %v1378
      %v1380 = vpop.f32.mrf.mxu0
      %v1381 = vadd.f32 %v1352, %v1380
      %1382 = vmatmul.bf16.gmra.mxu0 %v1330
      %v1383 = vpop.f32.mrf.mxu0
      %v1384 = vadd.f32 %v1355, %v1383
      %v1385 = vpop.f32.mrf.mxu0
      %v1386 = vadd.f32 %v1357, %v1385
      %1387 = vmatmul.bf16.gmra.mxu0 %v1333
      %v1388 = vpop.f32.mrf.mxu0
      %v1389 = vadd.f32 %v1360, %v1388
      %v1390 = vpop.f32.mrf.mxu0
      %v1391 = vadd.f32 %v1362, %v1390
      %1392 = vdwg.mxu0
      %1393 = vmatpush.bf16.msra.mxu0 %v1269
      %1394 = vmatpush.bf16.msra.mxu0 %v1265
      %1395 = vmatpush.bf16.msra.mxu0 %v1261
      %1396 = vmatpush.bf16.msra.mxu0 %v1257
      %1397 = vmatpush.bf16.msra.mxu0 %v1253
      %1398 = vmatpush.bf16.msra.mxu0 %v1249
      %1399 = vmatpush.bf16.msra.mxu0 %v1245
      %1400 = vmatpush.bf16.msra.mxu0 %v1241
      %1401 = vmatmul.bf16.gmra.mxu0 %v1130
      %v1402 = vpop.f32.mrf.mxu0
      %v1403 = vadd.f32 0.0, %v1402
      %v1404 = vpop.f32.mrf.mxu0
      %v1405 = vadd.f32 0.0, %v1404
      %1406 = vmatmul.bf16.gmra.mxu0 %v1132
      %v1407 = vpop.f32.mrf.mxu0
      %v1408 = vadd.f32 0.0, %v1407
      %v1409 = vpop.f32.mrf.mxu0
      %v1410 = vadd.f32 0.0, %v1409
      %1411 = vmatmul.bf16.gmra.mxu0 %v1134
      %v1412 = vpop.f32.mrf.mxu0
      %v1413 = vadd.f32 0.0, %v1412
      %v1414 = vpop.f32.mrf.mxu0
      %v1415 = vadd.f32 0.0, %v1414
      %1416 = vmatmul.bf16.gmra.mxu0 %v1136
      %v1417 = vpop.f32.mrf.mxu0
      %v1418 = vadd.f32 0.0, %v1417
      %v1419 = vpop.f32.mrf.mxu0
      %v1420 = vadd.f32 0.0, %v1419
      %1421 = vdwg.mxu0
      %1422 = vmatpush.bf16.msra.mxu0 0
      %1423 = vmatpush.bf16.msra.mxu0 0
      %1424 = vmatpush.bf16.msra.mxu0 0
      %1425 = vmatpush.bf16.msra.mxu0 0
      %1426 = vmatpush.bf16.msra.mxu0 %v1285
      %1427 = vmatpush.bf16.msra.mxu0 %v1281
      %1428 = vmatpush.bf16.msra.mxu0 %v1277
      %1429 = vmatpush.bf16.msra.mxu0 %v1273
      %1430 = vmatmul.bf16.gmra.mxu0 %v1324
      %v1431 = vpop.f32.mrf.mxu0
      %v1432 = vadd.f32 %v1403, %v1431
      %v1433 = vpop.f32.mrf.mxu0
      %v1434 = vadd.f32 %v1405, %v1433
      %1435 = vmatmul.bf16.gmra.mxu0 %v1327
      %v1436 = vpop.f32.mrf.mxu0
      %v1437 = vadd.f32 %v1408, %v1436
      %v1438 = vpop.f32.mrf.mxu0
      %v1439 = vadd.f32 %v1410, %v1438
      %1440 = vmatmul.bf16.gmra.mxu0 %v1330
      %v1441 = vpop.f32.mrf.mxu0
      %v1442 = vadd.f32 %v1413, %v1441
      %v1443 = vpop.f32.mrf.mxu0
      %v1444 = vadd.f32 %v1415, %v1443
      %1445 = vmatmul.bf16.gmra.mxu0 %v1333
      %v1446 = vpop.f32.mrf.mxu0
      %v1447 = vadd.f32 %v1418, %v1446
      %v1448 = vpop.f32.mrf.mxu0
      %v1449 = vadd.f32 %v1420, %v1448
      %1450 = vdwg.mxu0
      %1452 = vset.pattern.permute.xlu0 0
      %1453 = vperm.xlu0 %1452, %v1066
      %v1454 = vpop.permute.xlu0 %1453
      %1457 = vset.pattern.permute.xlu0 0
      %1458 = vperm.xlu0 %1457, %v1067
      %v1459 = vpop.permute.xlu0 %1458
      %1462 = vset.pattern.permute.xlu0 0
      %1463 = vperm.xlu0 %1462, %v1068
      %v1464 = vpop.permute.xlu0 %1463
      %1467 = vset.pattern.permute.xlu0 0
      %1468 = vperm.xlu0 %1467, %v1069
      %v1469 = vpop.permute.xlu0 %1468
      %1472 = vset.pattern.permute.xlu0 0
      %1473 = vperm.xlu0 %1472, %v1070
      %v1474 = vpop.permute.xlu0 %1473
      %1477 = vset.pattern.permute.xlu0 0
      %1478 = vperm.xlu0 %1477, %v1071
      %v1479 = vpop.permute.xlu0 %1478
      %1482 = vset.pattern.permute.xlu0 0
      %1483 = vperm.xlu0 %1482, %v1072
      %v1484 = vpop.permute.xlu0 %1483
      %1487 = vset.pattern.permute.xlu0 0
      %1488 = vperm.xlu0 %1487, %v1073
      %v1489 = vpop.permute.xlu0 %1488
      %v1491 = vadd.f32 %v1454, %v1374
      %v1492 = vadd.f32 %v1454, %v1432
      %v1493 = vadd.f32 %v1459, %v1376
      %v1494 = vadd.f32 %v1459, %v1434
      %v1495 = vadd.f32 %v1464, %v1379
      %v1496 = vadd.f32 %v1464, %v1437
      %v1497 = vadd.f32 %v1469, %v1381
      %v1498 = vadd.f32 %v1469, %v1439
      %v1499 = vadd.f32 %v1474, %v1384
      %v1500 = vadd.f32 %v1474, %v1442
      %v1501 = vadd.f32 %v1479, %v1386
      %v1502 = vadd.f32 %v1479, %v1444
      %v1503 = vadd.f32 %v1484, %v1389
      %v1504 = vadd.f32 %v1484, %v1447
      %v1505 = vadd.f32 %v1489, %v1391
      %v1506 = vadd.f32 %v1489, %v1449
      %s1507 = scalar_lea.vmem %s3, 64
      %v1508 = vld [vmem:[%s1507] sm:$0xff]
      %v1509 = vld [vmem:[%s1507 + $0x8] sm:$0xff]
      %v1510 = vld [vmem:[%s1507 + $0x10] sm:$0xff]
      %v1511 = vld [vmem:[%s1507 + $0x18] sm:$0xff]
      %v1512 = vld [vmem:[%s1507 + $0x20] sm:$0xff]
      %v1513 = vld [vmem:[%s1507 + $0x28] sm:$0xff]
      %v1514 = vld [vmem:[%s1507 + $0x30] sm:$0xff]
      %v1515 = vld [vmem:[%s1507 + $0x38] sm:$0xff]
      %v1524 = vunpack.c.l.b16 %v1508
      %v1525 = vunpack.c.h.b16 %v1508
      %v1526 = vunpack.c.l.b16 %v1509
      %v1527 = vunpack.c.h.b16 %v1509
      %v1528 = vunpack.c.l.b16 %v1510
      %v1529 = vunpack.c.h.b16 %v1510
      %v1530 = vunpack.c.l.b16 %v1511
      %v1531 = vunpack.c.h.b16 %v1511
      %v1532 = vunpack.c.l.b16 %v1512
      %v1533 = vunpack.c.h.b16 %v1512
      %v1534 = vunpack.c.l.b16 %v1513
      %v1535 = vunpack.c.h.b16 %v1513
      %v1536 = vunpack.c.l.b16 %v1514
      %v1537 = vunpack.c.h.b16 %v1514
      %v1538 = vunpack.c.l.b16 %v1515
      %v1539 = vunpack.c.h.b16 %v1515
      %v1540 = vpack.c.b16 %v1526, %v1524
      %v1541 = vpack.c.b16 %v1527, %v1525
      %v1542 = vpack.c.b16 %v1530, %v1528
      %v1543 = vpack.c.b16 %v1531, %v1529
      %v1544 = vpack.c.b16 %v1534, %v1532
      %v1545 = vpack.c.b16 %v1535, %v1533
      %v1546 = vpack.c.b16 %v1538, %v1536
      %v1547 = vpack.c.b16 %v1539, %v1537
      %1552 = vrot.lane.b32.xlu0 %v1214, 109
      %v1553 = vpop.permute.xlu0 %1552
      %1554 = vrot.lane.b32.xlu0 %v1215, 109
      %v1555 = vpop.permute.xlu0 %1554
      %1556 = vrot.lane.b32.xlu0 %v1216, 109
      %v1557 = vpop.permute.xlu0 %1556
      %1558 = vrot.lane.b32.xlu0 %v1217, 109
      %v1559 = vpop.permute.xlu0 %1558
      %1560 = vrot.lane.b32.xlu0 %v1218, 109
      %v1561 = vpop.permute.xlu0 %1560
      %1562 = vrot.lane.b32.xlu0 %v1219, 109
      %v1563 = vpop.permute.xlu0 %1562
      %1564 = vrot.lane.b32.xlu0 %v1220, 109
      %v1565 = vpop.permute.xlu0 %1564
      %1566 = vrot.lane.b32.xlu0 %v1221, 109
      %v1567 = vpop.permute.xlu0 %1566
      %1568 = vrot.lane.b32.xlu0 %v1222, 109
      %v1569 = vpop.permute.xlu0 %1568
      %1570 = vrot.lane.b32.xlu0 %v1223, 109
      %v1571 = vpop.permute.xlu0 %1570
      %1572 = vrot.lane.b32.xlu0 %v1224, 109
      %v1573 = vpop.permute.xlu0 %1572
      %1574 = vrot.lane.b32.xlu0 %v1225, 109
      %v1575 = vpop.permute.xlu0 %1574
      %1576 = vrot.lane.b32.xlu0 %v1226, 109
      %v1577 = vpop.permute.xlu0 %1576
      %1578 = vrot.lane.b32.xlu0 %v1227, 109
      %v1579 = vpop.permute.xlu0 %1578
      %1580 = vrot.lane.b32.xlu0 %v1228, 109
      %v1581 = vpop.permute.xlu0 %1580
      %1582 = vrot.lane.b32.xlu0 %v1229, 109
      %v1583 = vpop.permute.xlu0 %1582
      %1584 = vrot.lane.b32.xlu0 %v1230, 109
      %v1585 = vpop.permute.xlu0 %1584
      %1586 = vrot.lane.b32.xlu0 %v1231, 109
      %v1587 = vpop.permute.xlu0 %1586
      %1588 = vrot.lane.b32.xlu0 %v1232, 109
      %v1589 = vpop.permute.xlu0 %1588
      %1590 = vrot.lane.b32.xlu0 %v1233, 109
      %v1591 = vpop.permute.xlu0 %1590
      %1592 = vrot.lane.b32.xlu0 %v1234, 109
      %v1593 = vpop.permute.xlu0 %1592
      %1594 = vrot.lane.b32.xlu0 %v1235, 109
      %v1595 = vpop.permute.xlu0 %1594
      %1596 = vrot.lane.b32.xlu0 %v1236, 109
      %v1597 = vpop.permute.xlu0 %1596
      %1598 = vrot.lane.b32.xlu0 %v1237, 109
      %v1599 = vpop.permute.xlu0 %1598
      %vm1600 = vcmask 891904
      %v1601 = vsel %vm1600, %v1553, %v1555
      %v1602 = vsel %vm1600, %v1557, %v1559
      %v1603 = vsel %vm1600, %v1561, %v1563
      %v1604 = vsel %vm1600, %v1565, %v1567
      %v1605 = vsel %vm1600, %v1569, %v1571
      %v1606 = vsel %vm1600, %v1573, %v1575
      %v1607 = vsel %vm1600, %v1577, %v1579
      %v1608 = vsel %vm1600, %v1581, %v1583
      %v1609 = vsel %vm1600, %v1585, %v1587
      %v1610 = vsel %vm1600, %v1589, %v1591
      %v1611 = vsel %vm1600, %v1593, %v1595
      %v1612 = vsel %vm1600, %v1597, %v1599
      %v1638 = vsel %vm1322, %v1541, 0
      %v1641 = vsel %vm1322, %v1543, 0
      %v1644 = vsel %vm1322, %v1545, 0
      %v1647 = vsel %vm1322, %v1547, 0
      %1649 = vmatpush.bf16.msra.mxu0 %v1608
      %1650 = vmatpush.bf16.msra.mxu0 %v1607
      %1651 = vmatpush.bf16.msra.mxu0 %v1606
      %1652 = vmatpush.bf16.msra.mxu0 %v1605
      %1653 = vmatpush.bf16.msra.mxu0 %v1604
      %1654 = vmatpush.bf16.msra.mxu0 %v1603
      %1655 = vmatpush.bf16.msra.mxu0 %v1602
      %1656 = vmatpush.bf16.msra.mxu0 %v1601
      %1657 = vmatmul.bf16.gmra.mxu0 %v1540
      %v1658 = vpop.f32.mrf.mxu0
      %v1659 = vadd.f32 0.0, %v1658
      %v1660 = vpop.f32.mrf.mxu0
      %v1661 = vadd.f32 0.0, %v1660
      %1662 = vmatmul.bf16.gmra.mxu0 %v1542
      %v1663 = vpop.f32.mrf.mxu0
      %v1664 = vadd.f32 0.0, %v1663
      %v1665 = vpop.f32.mrf.mxu0
      %v1666 = vadd.f32 0.0, %v1665
      %1667 = vmatmul.bf16.gmra.mxu0 %v1544
      %v1668 = vpop.f32.mrf.mxu0
      %v1669 = vadd.f32 0.0, %v1668
      %v1670 = vpop.f32.mrf.mxu0
      %v1671 = vadd.f32 0.0, %v1670
      %1672 = vmatmul.bf16.gmra.mxu0 %v1546
      %v1673 = vpop.f32.mrf.mxu0
      %v1674 = vadd.f32 0.0, %v1673
      %v1675 = vpop.f32.mrf.mxu0
      %v1676 = vadd.f32 0.0, %v1675
      %1677 = vdwg.mxu0
      %1678 = vmatpush.bf16.msra.mxu0 0
      %1679 = vmatpush.bf16.msra.mxu0 0
      %1680 = vmatpush.bf16.msra.mxu0 0
      %1681 = vmatpush.bf16.msra.mxu0 0
      %1682 = vmatpush.bf16.msra.mxu0 %v1612
      %1683 = vmatpush.bf16.msra.mxu0 %v1611
      %1684 = vmatpush.bf16.msra.mxu0 %v1610
      %1685 = vmatpush.bf16.msra.mxu0 %v1609
      %1686 = vmatmul.bf16.gmra.mxu0 %v1638
      %v1687 = vpop.f32.mrf.mxu0
      %v1688 = vadd.f32 %v1659, %v1687
      %v1689 = vpop.f32.mrf.mxu0
      %v1690 = vadd.f32 %v1661, %v1689
      %1691 = vmatmul.bf16.gmra.mxu0 %v1641
      %v1692 = vpop.f32.mrf.mxu0
      %v1693 = vadd.f32 %v1664, %v1692
      %v1694 = vpop.f32.mrf.mxu0
      %v1695 = vadd.f32 %v1666, %v1694
      %1696 = vmatmul.bf16.gmra.mxu0 %v1644
      %v1697 = vpop.f32.mrf.mxu0
      %v1698 = vadd.f32 %v1669, %v1697
      %v1699 = vpop.f32.mrf.mxu0
      %v1700 = vadd.f32 %v1671, %v1699
      %1701 = vmatmul.bf16.gmra.mxu0 %v1647
      %v1702 = vpop.f32.mrf.mxu0
      %v1703 = vadd.f32 %v1674, %v1702
      %v1704 = vpop.f32.mrf.mxu0
      %v1705 = vadd.f32 %v1676, %v1704
      %1706 = vdwg.mxu0
      %1707 = vmatpush.bf16.msra.mxu0 %v1583
      %1708 = vmatpush.bf16.msra.mxu0 %v1579
      %1709 = vmatpush.bf16.msra.mxu0 %v1575
      %1710 = vmatpush.bf16.msra.mxu0 %v1571
      %1711 = vmatpush.bf16.msra.mxu0 %v1567
      %1712 = vmatpush.bf16.msra.mxu0 %v1563
      %1713 = vmatpush.bf16.msra.mxu0 %v1559
      %1714 = vmatpush.bf16.msra.mxu0 %v1555
      %1715 = vmatmul.bf16.gmra.mxu0 %v1540
      %v1716 = vpop.f32.mrf.mxu0
      %v1717 = vadd.f32 0.0, %v1716
      %v1718 = vpop.f32.mrf.mxu0
      %v1719 = vadd.f32 0.0, %v1718
      %1720 = vmatmul.bf16.gmra.mxu0 %v1542
      %v1721 = vpop.f32.mrf.mxu0
      %v1722 = vadd.f32 0.0, %v1721
      %v1723 = vpop.f32.mrf.mxu0
      %v1724 = vadd.f32 0.0, %v1723
      %1725 = vmatmul.bf16.gmra.mxu0 %v1544
      %v1726 = vpop.f32.mrf.mxu0
      %v1727 = vadd.f32 0.0, %v1726
      %v1728 = vpop.f32.mrf.mxu0
      %v1729 = vadd.f32 0.0, %v1728
      %1730 = vmatmul.bf16.gmra.mxu0 %v1546
      %v1731 = vpop.f32.mrf.mxu0
      %v1732 = vadd.f32 0.0, %v1731
      %v1733 = vpop.f32.mrf.mxu0
      %v1734 = vadd.f32 0.0, %v1733
      %1735 = vdwg.mxu0
      %1736 = vmatpush.bf16.msra.mxu0 0
      %1737 = vmatpush.bf16.msra.mxu0 0
      %1738 = vmatpush.bf16.msra.mxu0 0
      %1739 = vmatpush.bf16.msra.mxu0 0
      %1740 = vmatpush.bf16.msra.mxu0 %v1599
      %1741 = vmatpush.bf16.msra.mxu0 %v1595
      %1742 = vmatpush.bf16.msra.mxu0 %v1591
      %1743 = vmatpush.bf16.msra.mxu0 %v1587
      %1744 = vmatmul.bf16.gmra.mxu0 %v1638
      %v1745 = vpop.f32.mrf.mxu0
      %v1746 = vadd.f32 %v1717, %v1745
      %v1747 = vpop.f32.mrf.mxu0
      %v1748 = vadd.f32 %v1719, %v1747
      %1749 = vmatmul.bf16.gmra.mxu0 %v1641
      %v1750 = vpop.f32.mrf.mxu0
      %v1751 = vadd.f32 %v1722, %v1750
      %v1752 = vpop.f32.mrf.mxu0
      %v1753 = vadd.f32 %v1724, %v1752
      %1754 = vmatmul.bf16.gmra.mxu0 %v1644
      %v1755 = vpop.f32.mrf.mxu0
      %v1756 = vadd.f32 %v1727, %v1755
      %v1757 = vpop.f32.mrf.mxu0
      %v1758 = vadd.f32 %v1729, %v1757
      %1759 = vmatmul.bf16.gmra.mxu0 %v1647
      %v1760 = vpop.f32.mrf.mxu0
      %v1761 = vadd.f32 %v1732, %v1760
      %v1762 = vpop.f32.mrf.mxu0
      %v1763 = vadd.f32 %v1734, %v1762
      %1764 = vdwg.mxu0
      %v1765 = vadd.f32 %v1491, %v1688
      %v1766 = vadd.f32 %v1492, %v1746
      %v1767 = vadd.f32 %v1493, %v1690
      %v1768 = vadd.f32 %v1494, %v1748
      %v1769 = vadd.f32 %v1495, %v1693
      %v1770 = vadd.f32 %v1496, %v1751
      %v1771 = vadd.f32 %v1497, %v1695
      %v1772 = vadd.f32 %v1498, %v1753
      %v1773 = vadd.f32 %v1499, %v1698
      %v1774 = vadd.f32 %v1500, %v1756
      %v1775 = vadd.f32 %v1501, %v1700
      %v1776 = vadd.f32 %v1502, %v1758
      %v1777 = vadd.f32 %v1503, %v1703
      %v1778 = vadd.f32 %v1504, %v1761
      %v1779 = vadd.f32 %v1505, %v1705
      %v1780 = vadd.f32 %v1506, %v1763
      %s1781 = scalar_lea.vmem %s3, 128
      %v1782 = vld [vmem:[%s1781] sm:$0xff]
      %v1783 = vld [vmem:[%s1781 + $0x8] sm:$0xff]
      %v1784 = vld [vmem:[%s1781 + $0x10] sm:$0xff]
      %v1785 = vld [vmem:[%s1781 + $0x18] sm:$0xff]
      %v1786 = vld [vmem:[%s1781 + $0x20] sm:$0xff]
      %v1787 = vld [vmem:[%s1781 + $0x28] sm:$0xff]
      %v1788 = vld [vmem:[%s1781 + $0x30] sm:$0xff]
      %v1789 = vld [vmem:[%s1781 + $0x38] sm:$0xff]
      %v1798 = vunpack.c.l.b16 %v1782
      %v1799 = vunpack.c.h.b16 %v1782
      %v1800 = vunpack.c.l.b16 %v1783
      %v1801 = vunpack.c.h.b16 %v1783
      %v1802 = vunpack.c.l.b16 %v1784
      %v1803 = vunpack.c.h.b16 %v1784
      %v1804 = vunpack.c.l.b16 %v1785
      %v1805 = vunpack.c.h.b16 %v1785
      %v1806 = vunpack.c.l.b16 %v1786
      %v1807 = vunpack.c.h.b16 %v1786
      %v1808 = vunpack.c.l.b16 %v1787
      %v1809 = vunpack.c.h.b16 %v1787
      %v1810 = vunpack.c.l.b16 %v1788
      %v1811 = vunpack.c.h.b16 %v1788
      %v1812 = vunpack.c.l.b16 %v1789
      %v1813 = vunpack.c.h.b16 %v1789
      %v1814 = vpack.c.b16 %v1800, %v1798
      %v1815 = vpack.c.b16 %v1801, %v1799
      %v1816 = vpack.c.b16 %v1804, %v1802
      %v1817 = vpack.c.b16 %v1805, %v1803
      %v1818 = vpack.c.b16 %v1808, %v1806
      %v1819 = vpack.c.b16 %v1809, %v1807
      %v1820 = vpack.c.b16 %v1812, %v1810
      %v1821 = vpack.c.b16 %v1813, %v1811
      %1826 = vrot.lane.b32.xlu0 %v1214, 91
      %v1827 = vpop.permute.xlu0 %1826
      %1828 = vrot.lane.b32.xlu0 %v1215, 91
      %v1829 = vpop.permute.xlu0 %1828
      %1830 = vrot.lane.b32.xlu0 %v1216, 91
      %v1831 = vpop.permute.xlu0 %1830
      %1832 = vrot.lane.b32.xlu0 %v1217, 91
      %v1833 = vpop.permute.xlu0 %1832
      %1834 = vrot.lane.b32.xlu0 %v1218, 91
      %v1835 = vpop.permute.xlu0 %1834
      %1836 = vrot.lane.b32.xlu0 %v1219, 91
      %v1837 = vpop.permute.xlu0 %1836
      %1838 = vrot.lane.b32.xlu0 %v1220, 91
      %v1839 = vpop.permute.xlu0 %1838
      %1840 = vrot.lane.b32.xlu0 %v1221, 91
      %v1841 = vpop.permute.xlu0 %1840
      %1842 = vrot.lane.b32.xlu0 %v1222, 91
      %v1843 = vpop.permute.xlu0 %1842
      %1844 = vrot.lane.b32.xlu0 %v1223, 91
      %v1845 = vpop.permute.xlu0 %1844
      %1846 = vrot.lane.b32.xlu0 %v1224, 91
      %v1847 = vpop.permute.xlu0 %1846
      %1848 = vrot.lane.b32.xlu0 %v1225, 91
      %v1849 = vpop.permute.xlu0 %1848
      %1850 = vrot.lane.b32.xlu0 %v1226, 91
      %v1851 = vpop.permute.xlu0 %1850
      %1852 = vrot.lane.b32.xlu0 %v1227, 91
      %v1853 = vpop.permute.xlu0 %1852
      %1854 = vrot.lane.b32.xlu0 %v1228, 91
      %v1855 = vpop.permute.xlu0 %1854
      %1856 = vrot.lane.b32.xlu0 %v1229, 91
      %v1857 = vpop.permute.xlu0 %1856
      %1858 = vrot.lane.b32.xlu0 %v1230, 91
      %v1859 = vpop.permute.xlu0 %1858
      %1860 = vrot.lane.b32.xlu0 %v1231, 91
      %v1861 = vpop.permute.xlu0 %1860
      %1862 = vrot.lane.b32.xlu0 %v1232, 91
      %v1863 = vpop.permute.xlu0 %1862
      %1864 = vrot.lane.b32.xlu0 %v1233, 91
      %v1865 = vpop.permute.xlu0 %1864
      %1866 = vrot.lane.b32.xlu0 %v1234, 91
      %v1867 = vpop.permute.xlu0 %1866
      %1868 = vrot.lane.b32.xlu0 %v1235, 91
      %v1869 = vpop.permute.xlu0 %1868
      %1870 = vrot.lane.b32.xlu0 %v1236, 91
      %v1871 = vpop.permute.xlu0 %1870
      %1872 = vrot.lane.b32.xlu0 %v1237, 91
      %v1873 = vpop.permute.xlu0 %1872
      %vm1874 = vcmask 744448
      %v1875 = vsel %vm1874, %v1827, %v1829
      %v1876 = vsel %vm1874, %v1831, %v1833
      %v1877 = vsel %vm1874, %v1835, %v1837
      %v1878 = vsel %vm1874, %v1839, %v1841
      %v1879 = vsel %vm1874, %v1843, %v1845
      %v1880 = vsel %vm1874, %v1847, %v1849
      %v1881 = vsel %vm1874, %v1851, %v1853
      %v1882 = vsel %vm1874, %v1855, %v1857
      %v1883 = vsel %vm1874, %v1859, %v1861
      %v1884 = vsel %vm1874, %v1863, %v1865
      %v1885 = vsel %vm1874, %v1867, %v1869
      %v1886 = vsel %vm1874, %v1871, %v1873
      %v1912 = vsel %vm1322, %v1815, 0
      %v1915 = vsel %vm1322, %v1817, 0
      %v1918 = vsel %vm1322, %v1819, 0
      %v1921 = vsel %vm1322, %v1821, 0
      %1923 = vmatpush.bf16.msra.mxu0 %v1882
      %1924 = vmatpush.bf16.msra.mxu0 %v1881
      %1925 = vmatpush.bf16.msra.mxu0 %v1880
      %1926 = vmatpush.bf16.msra.mxu0 %v1879
      %1927 = vmatpush.bf16.msra.mxu0 %v1878
      %1928 = vmatpush.bf16.msra.mxu0 %v1877
      %1929 = vmatpush.bf16.msra.mxu0 %v1876
      %1930 = vmatpush.bf16.msra.mxu0 %v1875
      %1931 = vmatmul.bf16.gmra.mxu0 %v1814
      %v1932 = vpop.f32.mrf.mxu0
      %v1933 = vadd.f32 0.0, %v1932
      %v1934 = vpop.f32.mrf.mxu0
      %v1935 = vadd.f32 0.0, %v1934
      %1936 = vmatmul.bf16.gmra.mxu0 %v1816
      %v1937 = vpop.f32.mrf.mxu0
      %v1938 = vadd.f32 0.0, %v1937
      %v1939 = vpop.f32.mrf.mxu0
      %v1940 = vadd.f32 0.0, %v1939
      %1941 = vmatmul.bf16.gmra.mxu0 %v1818
      %v1942 = vpop.f32.mrf.mxu0
      %v1943 = vadd.f32 0.0, %v1942
      %v1944 = vpop.f32.mrf.mxu0
      %v1945 = vadd.f32 0.0, %v1944
      %1946 = vmatmul.bf16.gmra.mxu0 %v1820
      %v1947 = vpop.f32.mrf.mxu0
      %v1948 = vadd.f32 0.0, %v1947
      %v1949 = vpop.f32.mrf.mxu0
      %v1950 = vadd.f32 0.0, %v1949
      %1951 = vdwg.mxu0
      %1952 = vmatpush.bf16.msra.mxu0 0
      %1953 = vmatpush.bf16.msra.mxu0 0
      %1954 = vmatpush.bf16.msra.mxu0 0
      %1955 = vmatpush.bf16.msra.mxu0 0
      %1956 = vmatpush.bf16.msra.mxu0 %v1886
      %1957 = vmatpush.bf16.msra.mxu0 %v1885
      %1958 = vmatpush.bf16.msra.mxu0 %v1884
      %1959 = vmatpush.bf16.msra.mxu0 %v1883
      %1960 = vmatmul.bf16.gmra.mxu0 %v1912
      %v1961 = vpop.f32.mrf.mxu0
      %v1962 = vadd.f32 %v1933, %v1961
      %v1963 = vpop.f32.mrf.mxu0
      %v1964 = vadd.f32 %v1935, %v1963
      %1965 = vmatmul.bf16.gmra.mxu0 %v1915
      %v1966 = vpop.f32.mrf.mxu0
      %v1967 = vadd.f32 %v1938, %v1966
      %v1968 = vpop.f32.mrf.mxu0
      %v1969 = vadd.f32 %v1940, %v1968
      %1970 = vmatmul.bf16.gmra.mxu0 %v1918
      %v1971 = vpop.f32.mrf.mxu0
      %v1972 = vadd.f32 %v1943, %v1971
      %v1973 = vpop.f32.mrf.mxu0
      %v1974 = vadd.f32 %v1945, %v1973
      %1975 = vmatmul.bf16.gmra.mxu0 %v1921
      %v1976 = vpop.f32.mrf.mxu0
      %v1977 = vadd.f32 %v1948, %v1976
      %v1978 = vpop.f32.mrf.mxu0
      %v1979 = vadd.f32 %v1950, %v1978
      %1980 = vdwg.mxu0
      %1981 = vmatpush.bf16.msra.mxu0 %v1857
      %1982 = vmatpush.bf16.msra.mxu0 %v1853
      %1983 = vmatpush.bf16.msra.mxu0 %v1849
      %1984 = vmatpush.bf16.msra.mxu0 %v1845
      %1985 = vmatpush.bf16.msra.mxu0 %v1841
      %1986 = vmatpush.bf16.msra.mxu0 %v1837
      %1987 = vmatpush.bf16.msra.mxu0 %v1833
      %1988 = vmatpush.bf16.msra.mxu0 %v1829
      %1989 = vmatmul.bf16.gmra.mxu0 %v1814
      %v1990 = vpop.f32.mrf.mxu0
      %v1991 = vadd.f32 0.0, %v1990
      %v1992 = vpop.f32.mrf.mxu0
      %v1993 = vadd.f32 0.0, %v1992
      %1994 = vmatmul.bf16.gmra.mxu0 %v1816
      %v1995 = vpop.f32.mrf.mxu0
      %v1996 = vadd.f32 0.0, %v1995
      %v1997 = vpop.f32.mrf.mxu0
      %v1998 = vadd.f32 0.0, %v1997
      %1999 = vmatmul.bf16.gmra.mxu0 %v1818
      %v2000 = vpop.f32.mrf.mxu0
      %v2001 = vadd.f32 0.0, %v2000
      %v2002 = vpop.f32.mrf.mxu0
      %v2003 = vadd.f32 0.0, %v2002
      %2004 = vmatmul.bf16.gmra.mxu0 %v1820
      %v2005 = vpop.f32.mrf.mxu0
      %v2006 = vadd.f32 0.0, %v2005
      %v2007 = vpop.f32.mrf.mxu0
      %v2008 = vadd.f32 0.0, %v2007
      %2009 = vdwg.mxu0
      %2010 = vmatpush.bf16.msra.mxu0 0
      %2011 = vmatpush.bf16.msra.mxu0 0
      %2012 = vmatpush.bf16.msra.mxu0 0
      %2013 = vmatpush.bf16.msra.mxu0 0
      %2014 = vmatpush.bf16.msra.mxu0 %v1873
      %2015 = vmatpush.bf16.msra.mxu0 %v1869
      %2016 = vmatpush.bf16.msra.mxu0 %v1865
      %2017 = vmatpush.bf16.msra.mxu0 %v1861
      %2018 = vmatmul.bf16.gmra.mxu0 %v1912
      %v2019 = vpop.f32.mrf.mxu0
      %v2020 = vadd.f32 %v1991, %v2019
      %v2021 = vpop.f32.mrf.mxu0
      %v2022 = vadd.f32 %v1993, %v2021
      %2023 = vmatmul.bf16.gmra.mxu0 %v1915
      %v2024 = vpop.f32.mrf.mxu0
      %v2025 = vadd.f32 %v1996, %v2024
      %v2026 = vpop.f32.mrf.mxu0
      %v2027 = vadd.f32 %v1998, %v2026
      %2028 = vmatmul.bf16.gmra.mxu0 %v1918
      %v2029 = vpop.f32.mrf.mxu0
      %v2030 = vadd.f32 %v2001, %v2029
      %v2031 = vpop.f32.mrf.mxu0
      %v2032 = vadd.f32 %v2003, %v2031
      %2033 = vmatmul.bf16.gmra.mxu0 %v1921
      %v2034 = vpop.f32.mrf.mxu0
      %v2035 = vadd.f32 %v2006, %v2034
      %v2036 = vpop.f32.mrf.mxu0
      %v2037 = vadd.f32 %v2008, %v2036
      %2038 = vdwg.mxu0
      %v2039 = vadd.f32 %v1765, %v1962
      %v2040 = vadd.f32 %v1766, %v2020
      %v2041 = vadd.f32 %v1767, %v1964
      %v2042 = vadd.f32 %v1768, %v2022
      %v2043 = vadd.f32 %v1769, %v1967
      %v2044 = vadd.f32 %v1770, %v2025
      %v2045 = vadd.f32 %v1771, %v1969
      %v2046 = vadd.f32 %v1772, %v2027
      %v2047 = vadd.f32 %v1773, %v1972
      %v2048 = vadd.f32 %v1774, %v2030
      %v2049 = vadd.f32 %v1775, %v1974
      %v2050 = vadd.f32 %v1776, %v2032
      %v2051 = vadd.f32 %v1777, %v1977
      %v2052 = vadd.f32 %v1778, %v2035
      %v2053 = vadd.f32 %v1779, %v1979
      %v2054 = vadd.f32 %v1780, %v2037
      %v2055 = vmax.f32 %v2039, 0.0
      %v2056 = vmax.f32 %v2040, 0.0
      %v2057 = vmax.f32 %v2041, 0.0
      %v2058 = vmax.f32 %v2042, 0.0
      %v2059 = vmax.f32 %v2043, 0.0
      %v2060 = vmax.f32 %v2044, 0.0
      %v2061 = vmax.f32 %v2045, 0.0
      %v2062 = vmax.f32 %v2046, 0.0
      %v2063 = vmax.f32 %v2047, 0.0
      %v2064 = vmax.f32 %v2048, 0.0
      %v2065 = vmax.f32 %v2049, 0.0
      %v2066 = vmax.f32 %v2050, 0.0
      %v2067 = vmax.f32 %v2051, 0.0
      %v2068 = vmax.f32 %v2052, 0.0
      %v2069 = vmax.f32 %v2053, 0.0
      %v2070 = vmax.f32 %v2054, 0.0
      %s2071 = scalar_select %p840, 18, 0
      %s2072 = scalar_select %p842, 162, 180
      %v2073 = vld [vmem:[%s7] sm:$0x3]
      %vm2074 = vcmp.gt.f32.partialorder %v2073, 0.5
      %v2075 = vstv %s2071
      %vm2076 = vcmp.ge.s32.totalorder %v838, %v2075
      %vm2077 = vcmp.ge.s32.totalorder %v839, %v2075
      %v2078 = vsel %vm2076, 1, 0
      %v2079 = vsel %vm2077, 1, 0
      %v2080 = vrot.slane %v2079, 7
      %v2081 = vsel %vm852, %v2078, %v2080
      %vm2082 = vcmp.ne.s32.totalorder %v2081, 0
      %vm2083 = vmand %vm2074, %vm2082
      %v2084 = vstv %s2072
      %vm2085 = vcmp.lt.s32.totalorder %v838, %v2084
      %vm2086 = vcmp.lt.s32.totalorder %v839, %v2084
      %v2087 = vsel %vm2085, 1, 0
      %v2088 = vsel %vm2086, 1, 0
      %v2089 = vrot.slane %v2088, 7
      %v2090 = vsel %vm852, %v2087, %v2089
      %vm2091 = vcmp.ne.s32.totalorder %v2090, 0
      %vm2092 = vmand %vm2083, %vm2091
      %v2093 = vsel %vm2092, 1, 0
      %v2094 = vperm.slane %v2093, 0
      %v2095 = vperm.slane %v2093, 1
      %vm2096 = vcmp.eq.s32.totalorder %v2094, 1
      %vm2097 = vcmp.eq.s32.totalorder %v2095, 1
      %v2098 = vsel %vm2096, %v2055, 0.0
      %v2099 = vsel %vm2097, %v2056, 0.0
      %v2100 = vsel %vm2096, %v2057, 0.0
      %v2101 = vsel %vm2097, %v2058, 0.0
      %v2102 = vsel %vm2096, %v2059, 0.0
      %v2103 = vsel %vm2097, %v2060, 0.0
      %v2104 = vsel %vm2096, %v2061, 0.0
      %v2105 = vsel %vm2097, %v2062, 0.0
      %v2106 = vsel %vm2096, %v2063, 0.0
      %v2107 = vsel %vm2097, %v2064, 0.0
      %v2108 = vsel %vm2096, %v2065, 0.0
      %v2109 = vsel %vm2097, %v2066, 0.0
      %v2110 = vsel %vm2096, %v2067, 0.0
      %v2111 = vsel %vm2097, %v2068, 0.0
      %v2112 = vsel %vm2096, %v2069, 0.0
      %v2113 = vsel %vm2097, %v2070, 0.0
      %v2114 = vpack.c.bf16 %v2099, %v2098
      %v2115 = vpack.c.bf16 %v2101, %v2100
      %v2116 = vpack.c.bf16 %v2103, %v2102
      %v2117 = vpack.c.bf16 %v2105, %v2104
      %v2118 = vpack.c.bf16 %v2107, %v2106
      %v2119 = vpack.c.bf16 %v2109, %v2108
      %v2120 = vpack.c.bf16 %v2111, %v2110
      %v2121 = vpack.c.bf16 %v2113, %v2112
      %2122 = vst.msk [vmem:[#allocation2] sm:$0xf] %vm894, 0
      %2123 = vst.msk [vmem:[#allocation2 + $0x8] sm:$0xf] %vm894, 0
      %2124 = vst.msk [vmem:[#allocation2 + $0x10] sm:$0xf] %vm894, 0
      %2125 = vst.msk [vmem:[#allocation2 + $0x18] sm:$0xf] %vm894, 0
      %2126 = vst.msk [vmem:[#allocation2 + $0x20] sm:$0xf] %vm894, 0
      %2127 = vst.msk [vmem:[#allocation2 + $0x28] sm:$0xf] %vm894, 0
      %2128 = vst.msk [vmem:[#allocation2 + $0x30] sm:$0xf] %vm894, 0
      %2129 = vst.msk [vmem:[#allocation2 + $0x38] sm:$0xf] %vm894, 0
      %2130 = vst.msk [vmem:[#allocation2 + $0x40] sm:$0xf] %vm894, 0
      %2131 = vst.msk [vmem:[#allocation2 + $0x48] sm:$0xf] %vm894, 0
      %2132 = vst.msk [vmem:[#allocation2 + $0x50] sm:$0xf] %vm894, 0
      %2133 = vst.msk [vmem:[#allocation2 + $0x58] sm:$0xf] %vm894, 0
      %2134 = vst.msk [vmem:[#allocation2 + $0x60] sm:$0xf] %vm894, 0
      %2135 = vst.msk [vmem:[#allocation2 + $0x68] sm:$0xf] %vm894, 0
      %2136 = vst.msk [vmem:[#allocation2 + $0x70] sm:$0xf] %vm894, 0
      %2137 = vst.msk [vmem:[#allocation2 + $0x78] sm:$0xf] %vm894, 0
      %2138 = vst.msk [vmem:[#allocation2 + $0x80] sm:$0xf] %vm894, 0
      %2139 = vst.msk [vmem:[#allocation2 + $0x88] sm:$0xf] %vm894, 0
      %2140 = vst.msk [vmem:[#allocation2 + $0x90] sm:$0xf] %vm894, 0
      %2141 = vst.msk [vmem:[#allocation2 + $0x98] sm:$0xf] %vm894, 0
      %2142 = vst.msk [vmem:[#allocation2 + $0xa0] sm:$0xf] %vm894, 0
      %2143 = vst.msk [vmem:[#allocation2 + $0xa8] sm:$0xf] %vm894, 0
      %2144 = vst.msk [vmem:[#allocation2 + $0xb0] sm:$0xf] %vm894, 0
      %2145 = vst.msk [vmem:[#allocation2 + $0xb8] sm:$0xf] %vm894, 0
      %vm2146 = vcmask 437664
      %2147 = vst.msk [vmem:[#allocation2 + $0x4] sm:$0xf] %vm2146, 0
      %2148 = vst.msk [vmem:[#allocation2 + $0xc] sm:$0xf] %vm2146, 0
      %2149 = vst.msk [vmem:[#allocation2 + $0x14] sm:$0xf] %vm2146, 0
      %2150 = vst.msk [vmem:[#allocation2 + $0x1c] sm:$0xf] %vm2146, 0
      %2151 = vst.msk [vmem:[#allocation2 + $0x24] sm:$0xf] %vm2146, 0
      %2152 = vst.msk [vmem:[#allocation2 + $0x2c] sm:$0xf] %vm2146, 0
      %2153 = vst.msk [vmem:[#allocation2 + $0x34] sm:$0xf] %vm2146, 0
      %2154 = vst.msk [vmem:[#allocation2 + $0x3c] sm:$0xf] %vm2146, 0
      %2155 = vst.msk [vmem:[#allocation2 + $0x44] sm:$0xf] %vm2146, 0
      %2156 = vst.msk [vmem:[#allocation2 + $0x4c] sm:$0xf] %vm2146, 0
      %2157 = vst.msk [vmem:[#allocation2 + $0x54] sm:$0xf] %vm2146, 0
      %2158 = vst.msk [vmem:[#allocation2 + $0x5c] sm:$0xf] %vm2146, 0
      %2159 = vst.msk [vmem:[#allocation2 + $0x64] sm:$0xf] %vm2146, 0
      %2160 = vst.msk [vmem:[#allocation2 + $0x6c] sm:$0xf] %vm2146, 0
      %2161 = vst.msk [vmem:[#allocation2 + $0x74] sm:$0xf] %vm2146, 0
      %2162 = vst.msk [vmem:[#allocation2 + $0x7c] sm:$0xf] %vm2146, 0
      %2163 = vst.msk [vmem:[#allocation2 + $0x84] sm:$0xf] %vm2146, 0
      %2164 = vst.msk [vmem:[#allocation2 + $0x8c] sm:$0xf] %vm2146, 0
      %2165 = vst.msk [vmem:[#allocation2 + $0x94] sm:$0xf] %vm2146, 0
      %2166 = vst.msk [vmem:[#allocation2 + $0x9c] sm:$0xf] %vm2146, 0
      %2167 = vst.msk [vmem:[#allocation2 + $0xa4] sm:$0xf] %vm2146, 0
      %2168 = vst.msk [vmem:[#allocation2 + $0xac] sm:$0xf] %vm2146, 0
      %2169 = vst.msk [vmem:[#allocation2 + $0xb4] sm:$0xf] %vm2146, 0
      %2170 = vst.msk [vmem:[#allocation2 + $0xbc] sm:$0xf] %vm2146, 0
      %2179 = vrot.lane.b32.xlu0 %v2114, 2
      %v2180 = vpop.permute.xlu0 %2179
      %2181 = vrot.lane.b32.xlu0 %v2115, 2
      %v2182 = vpop.permute.xlu0 %2181
      %2183 = vrot.lane.b32.xlu0 %v2116, 2
      %v2184 = vpop.permute.xlu0 %2183
      %2185 = vrot.lane.b32.xlu0 %v2117, 2
      %v2186 = vpop.permute.xlu0 %2185
      %2187 = vrot.lane.b32.xlu0 %v2118, 2
      %v2188 = vpop.permute.xlu0 %2187
      %2189 = vrot.lane.b32.xlu0 %v2119, 2
      %v2190 = vpop.permute.xlu0 %2189
      %2191 = vrot.lane.b32.xlu0 %v2120, 2
      %v2192 = vpop.permute.xlu0 %2191
      %2193 = vrot.lane.b32.xlu0 %v2121, 2
      %v2194 = vpop.permute.xlu0 %2193
      %v2195 = vrot.slane %v2180, 4
      %v2196 = vrot.slane %v2182, 4
      %v2197 = vrot.slane %v2184, 4
      %v2198 = vrot.slane %v2186, 4
      %v2199 = vrot.slane %v2188, 4
      %v2200 = vrot.slane %v2190, 4
      %v2201 = vrot.slane %v2192, 4
      %v2202 = vrot.slane %v2194, 4
      %v2203 = vsel %vm976, %v2195, %v2180
      %v2204 = vsel %vm976, %v2196, %v2182
      %v2205 = vsel %vm976, %v2197, %v2184
      %v2206 = vsel %vm976, %v2198, %v2186
      %v2207 = vsel %vm976, %v2199, %v2188
      %v2208 = vsel %vm976, %v2200, %v2190
      %v2209 = vsel %vm976, %v2201, %v2192
      %v2210 = vsel %vm976, %v2202, %v2194
      %vm2219 = vcmask 441348
      %vm2220 = vmor %vm2219, %vm993
      %2221 = vst.msk [vmem:[#allocation2] sm:$0xff] %vm2220, %v2203
      %2222 = vst.msk [vmem:[#allocation2 + $0x8] sm:$0xff] %vm2220, %v2204
      %2223 = vst.msk [vmem:[#allocation2 + $0x10] sm:$0xff] %vm2220, %v2205
      %2224 = vst.msk [vmem:[#allocation2 + $0x18] sm:$0xff] %vm2220, %v2206
      %2225 = vst.msk [vmem:[#allocation2 + $0x20] sm:$0xff] %vm2220, %v2207
      %2226 = vst.msk [vmem:[#allocation2 + $0x28] sm:$0xff] %vm2220, %v2208
      %2227 = vst.msk [vmem:[#allocation2 + $0x30] sm:$0xff] %vm2220, %v2209
      %2228 = vst.msk [vmem:[#allocation2 + $0x38] sm:$0xff] %vm2220, %v2210
      %2229 = vrot.lane.b32.xlu0 %v2114, 1
      %v2230 = vpop.permute.xlu0 %2229
      %2231 = vrot.lane.b32.xlu0 %v2115, 1
      %v2232 = vpop.permute.xlu0 %2231
      %2233 = vrot.lane.b32.xlu0 %v2116, 1
      %v2234 = vpop.permute.xlu0 %2233
      %2235 = vrot.lane.b32.xlu0 %v2117, 1
      %v2236 = vpop.permute.xlu0 %2235
      %2237 = vrot.lane.b32.xlu0 %v2118, 1
      %v2238 = vpop.permute.xlu0 %2237
      %2239 = vrot.lane.b32.xlu0 %v2119, 1
      %v2240 = vpop.permute.xlu0 %2239
      %2241 = vrot.lane.b32.xlu0 %v2120, 1
      %v2242 = vpop.permute.xlu0 %2241
      %2243 = vrot.lane.b32.xlu0 %v2121, 1
      %v2244 = vpop.permute.xlu0 %2243
      %v2245 = vrot.slane %v2230, 4
      %v2246 = vrot.slane %v2232, 4
      %v2247 = vrot.slane %v2234, 4
      %v2248 = vrot.slane %v2236, 4
      %v2249 = vrot.slane %v2238, 4
      %v2250 = vrot.slane %v2240, 4
      %v2251 = vrot.slane %v2242, 4
      %v2252 = vrot.slane %v2244, 4
      %v2253 = vsel %vm1028, %v2245, %v2230
      %v2254 = vsel %vm1028, %v2246, %v2232
      %v2255 = vsel %vm1028, %v2247, %v2234
      %v2256 = vsel %vm1028, %v2248, %v2236
      %v2257 = vsel %vm1028, %v2249, %v2238
      %v2258 = vsel %vm1028, %v2250, %v2240
      %v2259 = vsel %vm1028, %v2251, %v2242
      %v2260 = vsel %vm1028, %v2252, %v2244
      %vm2269 = vcmask 433156
      %vm2270 = vmor %vm2269, %vm1045
      %2271 = vst.msk [vmem:[#allocation2 + $0x40] sm:$0xff] %vm2270, %v2253
      %2272 = vst.msk [vmem:[#allocation2 + $0x48] sm:$0xff] %vm2270, %v2254
      %2273 = vst.msk [vmem:[#allocation2 + $0x50] sm:$0xff] %vm2270, %v2255
      %2274 = vst.msk [vmem:[#allocation2 + $0x58] sm:$0xff] %vm2270, %v2256
      %2275 = vst.msk [vmem:[#allocation2 + $0x60] sm:$0xff] %vm2270, %v2257
      %2276 = vst.msk [vmem:[#allocation2 + $0x68] sm:$0xff] %vm2270, %v2258
      %2277 = vst.msk [vmem:[#allocation2 + $0x70] sm:$0xff] %vm2270, %v2259
      %2278 = vst.msk [vmem:[#allocation2 + $0x78] sm:$0xff] %vm2270, %v2260
      %vm2279 = vcmask 424964
      %vm2280 = vmor %vm2279, %vm344
      %2281 = vst.msk [vmem:[#allocation2 + $0x80] sm:$0xff] %vm2280, %v2114
      %2282 = vst.msk [vmem:[#allocation2 + $0x88] sm:$0xff] %vm2280, %v2115
      %2283 = vst.msk [vmem:[#allocation2 + $0x90] sm:$0xff] %vm2280, %v2116
      %2284 = vst.msk [vmem:[#allocation2 + $0x98] sm:$0xff] %vm2280, %v2117
      %2285 = vst.msk [vmem:[#allocation2 + $0xa0] sm:$0xff] %vm2280, %v2118
      %2286 = vst.msk [vmem:[#allocation2 + $0xa8] sm:$0xff] %vm2280, %v2119
      %2287 = vst.msk [vmem:[#allocation2 + $0xb0] sm:$0xff] %vm2280, %v2120
      %2288 = vst.msk [vmem:[#allocation2 + $0xb8] sm:$0xff] %vm2280, %v2121
      %v2289 = vld [vmem:[%s6] sm:$0xff]
      %v2290 = vld [vmem:[%s6 + $0x8] sm:$0xf]
      %v2291 = vld [vmem:[%s5] sm:$0xff]
      %v2292 = vld [vmem:[%s5 + $0x8] sm:$0x33]
      %v2293 = vld [vmem:[#allocation2] sm:$0xff]
      %v2294 = vld [vmem:[#allocation2 + $0x8] sm:$0xff]
      %v2295 = vld [vmem:[#allocation2 + $0x10] sm:$0xff]
      %v2296 = vld [vmem:[#allocation2 + $0x18] sm:$0xff]
      %v2297 = vld [vmem:[#allocation2 + $0x20] sm:$0xff]
      %v2298 = vld [vmem:[#allocation2 + $0x28] sm:$0xff]
      %v2299 = vld [vmem:[#allocation2 + $0x30] sm:$0xff]
      %v2300 = vld [vmem:[#allocation2 + $0x38] sm:$0xff]
      %v2301 = vld [vmem:[#allocation2 + $0x40] sm:$0xff]
      %v2302 = vld [vmem:[#allocation2 + $0x48] sm:$0xff]
      %v2303 = vld [vmem:[#allocation2 + $0x50] sm:$0xff]
      %v2304 = vld [vmem:[#allocation2 + $0x58] sm:$0xff]
      %v2305 = vld [vmem:[#allocation2 + $0x60] sm:$0xff]
      %v2306 = vld [vmem:[#allocation2 + $0x68] sm:$0xff]
      %v2307 = vld [vmem:[#allocation2 + $0x70] sm:$0xff]
      %v2308 = vld [vmem:[#allocation2 + $0x78] sm:$0xff]
      %v2309 = vld [vmem:[#allocation2 + $0x80] sm:$0xff]
      %v2310 = vld [vmem:[#allocation2 + $0x88] sm:$0xff]
      %v2311 = vld [vmem:[#allocation2 + $0x90] sm:$0xff]
      %v2312 = vld [vmem:[#allocation2 + $0x98] sm:$0xff]
      %v2313 = vld [vmem:[#allocation2 + $0xa0] sm:$0xff]
      %v2314 = vld [vmem:[#allocation2 + $0xa8] sm:$0xff]
      %v2315 = vld [vmem:[#allocation2 + $0xb0] sm:$0xff]
      %v2316 = vld [vmem:[#allocation2 + $0xb8] sm:$0xff]
      %v2319 = vunpack.c.l.b16 %v2291
      %v2320 = vunpack.c.h.b16 %v2291
      %v2321 = vunpack.c.l.b16 %v2292
      %v2322 = vunpack.c.h.b16 %v2292
      %v2323 = vpack.c.b16 %v2321, %v2319
      %v2324 = vpack.c.b16 %v2322, %v2320
      %v2350 = vunpack.c.l.b16 %v2293
      %v2351 = vunpack.c.h.b16 %v2293
      %v2352 = vunpack.c.l.b16 %v2294
      %v2353 = vunpack.c.h.b16 %v2294
      %v2354 = vunpack.c.l.b16 %v2295
      %v2355 = vunpack.c.h.b16 %v2295
      %v2356 = vunpack.c.l.b16 %v2296
      %v2357 = vunpack.c.h.b16 %v2296
      %v2358 = vunpack.c.l.b16 %v2297
      %v2359 = vunpack.c.h.b16 %v2297
      %v2360 = vunpack.c.l.b16 %v2298
      %v2361 = vunpack.c.h.b16 %v2298
      %v2362 = vunpack.c.l.b16 %v2299
      %v2363 = vunpack.c.h.b16 %v2299
      %v2364 = vunpack.c.l.b16 %v2300
      %v2365 = vunpack.c.h.b16 %v2300
      %v2366 = vunpack.c.l.b16 %v2301
      %v2367 = vunpack.c.h.b16 %v2301
      %v2368 = vunpack.c.l.b16 %v2302
      %v2369 = vunpack.c.h.b16 %v2302
      %v2370 = vunpack.c.l.b16 %v2303
      %v2371 = vunpack.c.h.b16 %v2303
      %v2372 = vunpack.c.l.b16 %v2304
      %v2373 = vunpack.c.h.b16 %v2304
      %v2374 = vunpack.c.l.b16 %v2305
      %v2375 = vunpack.c.h.b16 %v2305
      %v2376 = vunpack.c.l.b16 %v2306
      %v2377 = vunpack.c.h.b16 %v2306
      %v2378 = vunpack.c.l.b16 %v2307
      %v2379 = vunpack.c.h.b16 %v2307
      %v2380 = vunpack.c.l.b16 %v2308
      %v2381 = vunpack.c.h.b16 %v2308
      %v2382 = vunpack.c.l.b16 %v2309
      %v2383 = vunpack.c.h.b16 %v2309
      %v2384 = vunpack.c.l.b16 %v2310
      %v2385 = vunpack.c.h.b16 %v2310
      %v2386 = vunpack.c.l.b16 %v2311
      %v2387 = vunpack.c.h.b16 %v2311
      %v2388 = vunpack.c.l.b16 %v2312
      %v2389 = vunpack.c.h.b16 %v2312
      %v2390 = vunpack.c.l.b16 %v2313
      %v2391 = vunpack.c.h.b16 %v2313
      %v2392 = vunpack.c.l.b16 %v2314
      %v2393 = vunpack.c.h.b16 %v2314
      %v2394 = vunpack.c.l.b16 %v2315
      %v2395 = vunpack.c.h.b16 %v2315
      %v2396 = vunpack.c.l.b16 %v2316
      %v2397 = vunpack.c.h.b16 %v2316
      %v2398 = vpack.c.b16 %v2352, %v2350
      %v2399 = vpack.c.b16 %v2353, %v2351
      %v2400 = vpack.c.b16 %v2356, %v2354
      %v2401 = vpack.c.b16 %v2357, %v2355
      %v2402 = vpack.c.b16 %v2360, %v2358
      %v2403 = vpack.c.b16 %v2361, %v2359
      %v2404 = vpack.c.b16 %v2364, %v2362
      %v2405 = vpack.c.b16 %v2365, %v2363
      %v2406 = vpack.c.b16 %v2368, %v2366
      %v2407 = vpack.c.b16 %v2369, %v2367
      %v2408 = vpack.c.b16 %v2372, %v2370
      %v2409 = vpack.c.b16 %v2373, %v2371
      %v2410 = vpack.c.b16 %v2376, %v2374
      %v2411 = vpack.c.b16 %v2377, %v2375
      %v2412 = vpack.c.b16 %v2380, %v2378
      %v2413 = vpack.c.b16 %v2381, %v2379
      %v2414 = vpack.c.b16 %v2384, %v2382
      %v2415 = vpack.c.b16 %v2385, %v2383
      %v2416 = vpack.c.b16 %v2388, %v2386
      %v2417 = vpack.c.b16 %v2389, %v2387
      %v2418 = vpack.c.b16 %v2392, %v2390
      %v2419 = vpack.c.b16 %v2393, %v2391
      %v2420 = vpack.c.b16 %v2396, %v2394
      %v2421 = vpack.c.b16 %v2397, %v2395
      %2422 = vrot.lane.b32.xlu0 %v2398, 127
      %v2423 = vpop.permute.xlu0 %2422
      %2424 = vrot.lane.b32.xlu0 %v2399, 127
      %v2425 = vpop.permute.xlu0 %2424
      %2426 = vrot.lane.b32.xlu0 %v2400, 127
      %v2427 = vpop.permute.xlu0 %2426
      %2428 = vrot.lane.b32.xlu0 %v2401, 127
      %v2429 = vpop.permute.xlu0 %2428
      %2430 = vrot.lane.b32.xlu0 %v2402, 127
      %v2431 = vpop.permute.xlu0 %2430
      %2432 = vrot.lane.b32.xlu0 %v2403, 127
      %v2433 = vpop.permute.xlu0 %2432
      %2434 = vrot.lane.b32.xlu0 %v2404, 127
      %v2435 = vpop.permute.xlu0 %2434
      %2436 = vrot.lane.b32.xlu0 %v2405, 127
      %v2437 = vpop.permute.xlu0 %2436
      %2438 = vrot.lane.b32.xlu0 %v2406, 127
      %v2439 = vpop.permute.xlu0 %2438
      %2440 = vrot.lane.b32.xlu0 %v2407, 127
      %v2441 = vpop.permute.xlu0 %2440
      %2442 = vrot.lane.b32.xlu0 %v2408, 127
      %v2443 = vpop.permute.xlu0 %2442
      %2444 = vrot.lane.b32.xlu0 %v2409, 127
      %v2445 = vpop.permute.xlu0 %2444
      %2446 = vrot.lane.b32.xlu0 %v2410, 127
      %v2447 = vpop.permute.xlu0 %2446
      %2448 = vrot.lane.b32.xlu0 %v2411, 127
      %v2449 = vpop.permute.xlu0 %2448
      %2450 = vrot.lane.b32.xlu0 %v2412, 127
      %v2451 = vpop.permute.xlu0 %2450
      %2452 = vrot.lane.b32.xlu0 %v2413, 127
      %v2453 = vpop.permute.xlu0 %2452
      %2454 = vrot.lane.b32.xlu0 %v2414, 127
      %v2455 = vpop.permute.xlu0 %2454
      %2456 = vrot.lane.b32.xlu0 %v2415, 127
      %v2457 = vpop.permute.xlu0 %2456
      %2458 = vrot.lane.b32.xlu0 %v2416, 127
      %v2459 = vpop.permute.xlu0 %2458
      %2460 = vrot.lane.b32.xlu0 %v2417, 127
      %v2461 = vpop.permute.xlu0 %2460
      %2462 = vrot.lane.b32.xlu0 %v2418, 127
      %v2463 = vpop.permute.xlu0 %2462
      %2464 = vrot.lane.b32.xlu0 %v2419, 127
      %v2465 = vpop.permute.xlu0 %2464
      %2466 = vrot.lane.b32.xlu0 %v2420, 127
      %v2467 = vpop.permute.xlu0 %2466
      %2468 = vrot.lane.b32.xlu0 %v2421, 127
      %v2469 = vpop.permute.xlu0 %2468
      %v2470 = vsel %vm353, %v2423, %v2425
      %v2471 = vsel %vm353, %v2427, %v2429
      %v2472 = vsel %vm353, %v2431, %v2433
      %v2473 = vsel %vm353, %v2435, %v2437
      %v2474 = vsel %vm353, %v2439, %v2441
      %v2475 = vsel %vm353, %v2443, %v2445
      %v2476 = vsel %vm353, %v2447, %v2449
      %v2477 = vsel %vm353, %v2451, %v2453
      %v2478 = vsel %vm353, %v2455, %v2457
      %v2479 = vsel %vm353, %v2459, %v2461
      %v2480 = vsel %vm353, %v2463, %v2465
      %v2481 = vsel %vm353, %v2467, %v2469
      %v2507 = vsel %vm1322, %v2324, 0
      %2509 = vmatpush.bf16.msra.mxu0 %v2477
      %2510 = vmatpush.bf16.msra.mxu0 %v2476
      %2511 = vmatpush.bf16.msra.mxu0 %v2475
      %2512 = vmatpush.bf16.msra.mxu0 %v2474
      %2513 = vmatpush.bf16.msra.mxu0 %v2473
      %2514 = vmatpush.bf16.msra.mxu0 %v2472
      %2515 = vmatpush.bf16.msra.mxu0 %v2471
      %2516 = vmatpush.bf16.msra.mxu0 %v2470
      %2517 = vmatmul.bf16.gmra.mxu0 %v2323
      %v2518 = vpop.f32.mrf.mxu0
      %v2519 = vadd.f32 0.0, %v2518
      %v2520 = vpop.f32.mrf.mxu0
      %v2521 = vadd.f32 0.0, %v2520
      %2522 = vdwg.mxu0
      %2523 = vmatpush.bf16.msra.mxu0 0
      %2524 = vmatpush.bf16.msra.mxu0 0
      %2525 = vmatpush.bf16.msra.mxu0 0
      %2526 = vmatpush.bf16.msra.mxu0 0
      %2527 = vmatpush.bf16.msra.mxu0 %v2481
      %2528 = vmatpush.bf16.msra.mxu0 %v2480
      %2529 = vmatpush.bf16.msra.mxu0 %v2479
      %2530 = vmatpush.bf16.msra.mxu0 %v2478
      %2531 = vmatmul.bf16.gmra.mxu0 %v2507
      %v2532 = vpop.f32.mrf.mxu0
      %v2533 = vadd.f32 %v2519, %v2532
      %v2534 = vpop.f32.mrf.mxu0
      %v2535 = vadd.f32 %v2521, %v2534
      %2536 = vdwg.mxu0
      %2537 = vmatpush.bf16.msra.mxu0 %v2453
      %2538 = vmatpush.bf16.msra.mxu0 %v2449
      %2539 = vmatpush.bf16.msra.mxu0 %v2445
      %2540 = vmatpush.bf16.msra.mxu0 %v2441
      %2541 = vmatpush.bf16.msra.mxu0 %v2437
      %2542 = vmatpush.bf16.msra.mxu0 %v2433
      %2543 = vmatpush.bf16.msra.mxu0 %v2429
      %2544 = vmatpush.bf16.msra.mxu0 %v2425
      %2545 = vmatmul.bf16.gmra.mxu0 %v2323
      %v2546 = vpop.f32.mrf.mxu0
      %v2547 = vadd.f32 0.0, %v2546
      %v2548 = vpop.f32.mrf.mxu0
      %v2549 = vadd.f32 0.0, %v2548
      %2550 = vdwg.mxu0
      %2551 = vmatpush.bf16.msra.mxu0 0
      %2552 = vmatpush.bf16.msra.mxu0 0
      %2553 = vmatpush.bf16.msra.mxu0 0
      %2554 = vmatpush.bf16.msra.mxu0 0
      %2555 = vmatpush.bf16.msra.mxu0 %v2469
      %2556 = vmatpush.bf16.msra.mxu0 %v2465
      %2557 = vmatpush.bf16.msra.mxu0 %v2461
      %2558 = vmatpush.bf16.msra.mxu0 %v2457
      %2559 = vmatmul.bf16.gmra.mxu0 %v2507
      %v2560 = vpop.f32.mrf.mxu0
      %v2561 = vadd.f32 %v2547, %v2560
      %v2562 = vpop.f32.mrf.mxu0
      %v2563 = vadd.f32 %v2549, %v2562
      %2564 = vdwg.mxu0
      %2566 = vset.pattern.permute.xlu0 0
      %2567 = vperm.xlu0 %2566, %v2289
      %v2568 = vpop.permute.xlu0 %2567
      %2571 = vset.pattern.permute.xlu0 0
      %2572 = vperm.xlu0 %2571, %v2290
      %v2573 = vpop.permute.xlu0 %2572
      %v2575 = vadd.f32 %v2568, %v2533
      %v2576 = vadd.f32 %v2568, %v2561
      %v2577 = vadd.f32 %v2573, %v2535
      %v2578 = vadd.f32 %v2573, %v2563
      %s2579 = scalar_lea.vmem %s5, 16
      %v2580 = vld [vmem:[%s2579] sm:$0xff]
      %v2581 = vld [vmem:[%s2579 + $0x8] sm:$0x33]
      %v2584 = vunpack.c.l.b16 %v2580
      %v2585 = vunpack.c.h.b16 %v2580
      %v2586 = vunpack.c.l.b16 %v2581
      %v2587 = vunpack.c.h.b16 %v2581
      %v2588 = vpack.c.b16 %v2586, %v2584
      %v2589 = vpack.c.b16 %v2587, %v2585
      %2591 = vrot.lane.b32.xlu0 %v2398, 109
      %v2592 = vpop.permute.xlu0 %2591
      %2593 = vrot.lane.b32.xlu0 %v2399, 109
      %v2594 = vpop.permute.xlu0 %2593
      %2595 = vrot.lane.b32.xlu0 %v2400, 109
      %v2596 = vpop.permute.xlu0 %2595
      %2597 = vrot.lane.b32.xlu0 %v2401, 109
      %v2598 = vpop.permute.xlu0 %2597
      %2599 = vrot.lane.b32.xlu0 %v2402, 109
      %v2600 = vpop.permute.xlu0 %2599
      %2601 = vrot.lane.b32.xlu0 %v2403, 109
      %v2602 = vpop.permute.xlu0 %2601
      %2603 = vrot.lane.b32.xlu0 %v2404, 109
      %v2604 = vpop.permute.xlu0 %2603
      %2605 = vrot.lane.b32.xlu0 %v2405, 109
      %v2606 = vpop.permute.xlu0 %2605
      %2607 = vrot.lane.b32.xlu0 %v2406, 109
      %v2608 = vpop.permute.xlu0 %2607
      %2609 = vrot.lane.b32.xlu0 %v2407, 109
      %v2610 = vpop.permute.xlu0 %2609
      %2611 = vrot.lane.b32.xlu0 %v2408, 109
      %v2612 = vpop.permute.xlu0 %2611
      %2613 = vrot.lane.b32.xlu0 %v2409, 109
      %v2614 = vpop.permute.xlu0 %2613
      %2615 = vrot.lane.b32.xlu0 %v2410, 109
      %v2616 = vpop.permute.xlu0 %2615
      %2617 = vrot.lane.b32.xlu0 %v2411, 109
      %v2618 = vpop.permute.xlu0 %2617
      %2619 = vrot.lane.b32.xlu0 %v2412, 109
      %v2620 = vpop.permute.xlu0 %2619
      %2621 = vrot.lane.b32.xlu0 %v2413, 109
      %v2622 = vpop.permute.xlu0 %2621
      %2623 = vrot.lane.b32.xlu0 %v2414, 109
      %v2624 = vpop.permute.xlu0 %2623
      %2625 = vrot.lane.b32.xlu0 %v2415, 109
      %v2626 = vpop.permute.xlu0 %2625
      %2627 = vrot.lane.b32.xlu0 %v2416, 109
      %v2628 = vpop.permute.xlu0 %2627
      %2629 = vrot.lane.b32.xlu0 %v2417, 109
      %v2630 = vpop.permute.xlu0 %2629
      %2631 = vrot.lane.b32.xlu0 %v2418, 109
      %v2632 = vpop.permute.xlu0 %2631
      %2633 = vrot.lane.b32.xlu0 %v2419, 109
      %v2634 = vpop.permute.xlu0 %2633
      %2635 = vrot.lane.b32.xlu0 %v2420, 109
      %v2636 = vpop.permute.xlu0 %2635
      %2637 = vrot.lane.b32.xlu0 %v2421, 109
      %v2638 = vpop.permute.xlu0 %2637
      %v2639 = vsel %vm1600, %v2592, %v2594
      %v2640 = vsel %vm1600, %v2596, %v2598
      %v2641 = vsel %vm1600, %v2600, %v2602
      %v2642 = vsel %vm1600, %v2604, %v2606
      %v2643 = vsel %vm1600, %v2608, %v2610
      %v2644 = vsel %vm1600, %v2612, %v2614
      %v2645 = vsel %vm1600, %v2616, %v2618
      %v2646 = vsel %vm1600, %v2620, %v2622
      %v2647 = vsel %vm1600, %v2624, %v2626
      %v2648 = vsel %vm1600, %v2628, %v2630
      %v2649 = vsel %vm1600, %v2632, %v2634
      %v2650 = vsel %vm1600, %v2636, %v2638
      %v2676 = vsel %vm1322, %v2589, 0
      %2678 = vmatpush.bf16.msra.mxu0 %v2646
      %2679 = vmatpush.bf16.msra.mxu0 %v2645
      %2680 = vmatpush.bf16.msra.mxu0 %v2644
      %2681 = vmatpush.bf16.msra.mxu0 %v2643
      %2682 = vmatpush.bf16.msra.mxu0 %v2642
      %2683 = vmatpush.bf16.msra.mxu0 %v2641
      %2684 = vmatpush.bf16.msra.mxu0 %v2640
      %2685 = vmatpush.bf16.msra.mxu0 %v2639
      %2686 = vmatmul.bf16.gmra.mxu0 %v2588
      %v2687 = vpop.f32.mrf.mxu0
      %v2688 = vadd.f32 0.0, %v2687
      %v2689 = vpop.f32.mrf.mxu0
      %v2690 = vadd.f32 0.0, %v2689
      %2691 = vdwg.mxu0
      %2692 = vmatpush.bf16.msra.mxu0 0
      %2693 = vmatpush.bf16.msra.mxu0 0
      %2694 = vmatpush.bf16.msra.mxu0 0
      %2695 = vmatpush.bf16.msra.mxu0 0
      %2696 = vmatpush.bf16.msra.mxu0 %v2650
      %2697 = vmatpush.bf16.msra.mxu0 %v2649
      %2698 = vmatpush.bf16.msra.mxu0 %v2648
      %2699 = vmatpush.bf16.msra.mxu0 %v2647
      %2700 = vmatmul.bf16.gmra.mxu0 %v2676
      %v2701 = vpop.f32.mrf.mxu0
      %v2702 = vadd.f32 %v2688, %v2701
      %v2703 = vpop.f32.mrf.mxu0
      %v2704 = vadd.f32 %v2690, %v2703
      %2705 = vdwg.mxu0
      %2706 = vmatpush.bf16.msra.mxu0 %v2622
      %2707 = vmatpush.bf16.msra.mxu0 %v2618
      %2708 = vmatpush.bf16.msra.mxu0 %v2614
      %2709 = vmatpush.bf16.msra.mxu0 %v2610
      %2710 = vmatpush.bf16.msra.mxu0 %v2606
      %2711 = vmatpush.bf16.msra.mxu0 %v2602
      %2712 = vmatpush.bf16.msra.mxu0 %v2598
      %2713 = vmatpush.bf16.msra.mxu0 %v2594
      %2714 = vmatmul.bf16.gmra.mxu0 %v2588
      %v2715 = vpop.f32.mrf.mxu0
      %v2716 = vadd.f32 0.0, %v2715
      %v2717 = vpop.f32.mrf.mxu0
      %v2718 = vadd.f32 0.0, %v2717
      %2719 = vdwg.mxu0
      %2720 = vmatpush.bf16.msra.mxu0 0
      %2721 = vmatpush.bf16.msra.mxu0 0
      %2722 = vmatpush.bf16.msra.mxu0 0
      %2723 = vmatpush.bf16.msra.mxu0 0
      %2724 = vmatpush.bf16.msra.mxu0 %v2638
      %2725 = vmatpush.bf16.msra.mxu0 %v2634
      %2726 = vmatpush.bf16.msra.mxu0 %v2630
      %2727 = vmatpush.bf16.msra.mxu0 %v2626
      %2728 = vmatmul.bf16.gmra.mxu0 %v2676
      %v2729 = vpop.f32.mrf.mxu0
      %v2730 = vadd.f32 %v2716, %v2729
      %v2731 = vpop.f32.mrf.mxu0
      %v2732 = vadd.f32 %v2718, %v2731
      %2733 = vdwg.mxu0
      %v2734 = vadd.f32 %v2575, %v2702
      %v2735 = vadd.f32 %v2576, %v2730
      %v2736 = vadd.f32 %v2577, %v2704
      %v2737 = vadd.f32 %v2578, %v2732
      %s2738 = scalar_lea.vmem %s5, 32
      %v2739 = vld [vmem:[%s2738] sm:$0xff]
      %v2740 = vld [vmem:[%s2738 + $0x8] sm:$0x33]
      %v2743 = vunpack.c.l.b16 %v2739
      %v2744 = vunpack.c.h.b16 %v2739
      %v2745 = vunpack.c.l.b16 %v2740
      %v2746 = vunpack.c.h.b16 %v2740
      %v2747 = vpack.c.b16 %v2745, %v2743
      %v2748 = vpack.c.b16 %v2746, %v2744
      %2750 = vrot.lane.b32.xlu0 %v2398, 91
      %v2751 = vpop.permute.xlu0 %2750
      %2752 = vrot.lane.b32.xlu0 %v2399, 91
      %v2753 = vpop.permute.xlu0 %2752
      %2754 = vrot.lane.b32.xlu0 %v2400, 91
      %v2755 = vpop.permute.xlu0 %2754
      %2756 = vrot.lane.b32.xlu0 %v2401, 91
      %v2757 = vpop.permute.xlu0 %2756
      %2758 = vrot.lane.b32.xlu0 %v2402, 91
      %v2759 = vpop.permute.xlu0 %2758
      %2760 = vrot.lane.b32.xlu0 %v2403, 91
      %v2761 = vpop.permute.xlu0 %2760
      %2762 = vrot.lane.b32.xlu0 %v2404, 91
      %v2763 = vpop.permute.xlu0 %2762
      %2764 = vrot.lane.b32.xlu0 %v2405, 91
      %v2765 = vpop.permute.xlu0 %2764
      %2766 = vrot.lane.b32.xlu0 %v2406, 91
      %v2767 = vpop.permute.xlu0 %2766
      %2768 = vrot.lane.b32.xlu0 %v2407, 91
      %v2769 = vpop.permute.xlu0 %2768
      %2770 = vrot.lane.b32.xlu0 %v2408, 91
      %v2771 = vpop.permute.xlu0 %2770
      %2772 = vrot.lane.b32.xlu0 %v2409, 91
      %v2773 = vpop.permute.xlu0 %2772
      %2774 = vrot.lane.b32.xlu0 %v2410, 91
      %v2775 = vpop.permute.xlu0 %2774
      %2776 = vrot.lane.b32.xlu0 %v2411, 91
      %v2777 = vpop.permute.xlu0 %2776
      %2778 = vrot.lane.b32.xlu0 %v2412, 91
      %v2779 = vpop.permute.xlu0 %2778
      %2780 = vrot.lane.b32.xlu0 %v2413, 91
      %v2781 = vpop.permute.xlu0 %2780
      %2782 = vrot.lane.b32.xlu0 %v2414, 91
      %v2783 = vpop.permute.xlu0 %2782
      %2784 = vrot.lane.b32.xlu0 %v2415, 91
      %v2785 = vpop.permute.xlu0 %2784
      %2786 = vrot.lane.b32.xlu0 %v2416, 91
      %v2787 = vpop.permute.xlu0 %2786
      %2788 = vrot.lane.b32.xlu0 %v2417, 91
      %v2789 = vpop.permute.xlu0 %2788
      %2790 = vrot.lane.b32.xlu0 %v2418, 91
      %v2791 = vpop.permute.xlu0 %2790
      %2792 = vrot.lane.b32.xlu0 %v2419, 91
      %v2793 = vpop.permute.xlu0 %2792
      %2794 = vrot.lane.b32.xlu0 %v2420, 91
      %v2795 = vpop.permute.xlu0 %2794
      %2796 = vrot.lane.b32.xlu0 %v2421, 91
      %v2797 = vpop.permute.xlu0 %2796
      %v2798 = vsel %vm1874, %v2751, %v2753
      %v2799 = vsel %vm1874, %v2755, %v2757
      %v2800 = vsel %vm1874, %v2759, %v2761
      %v2801 = vsel %vm1874, %v2763, %v2765
      %v2802 = vsel %vm1874, %v2767, %v2769
      %v2803 = vsel %vm1874, %v2771, %v2773
      %v2804 = vsel %vm1874, %v2775, %v2777
      %v2805 = vsel %vm1874, %v2779, %v2781
      %v2806 = vsel %vm1874, %v2783, %v2785
      %v2807 = vsel %vm1874, %v2787, %v2789
      %v2808 = vsel %vm1874, %v2791, %v2793
      %v2809 = vsel %vm1874, %v2795, %v2797
      %v2835 = vsel %vm1322, %v2748, 0
      %2837 = vmatpush.bf16.msra.mxu0 %v2805
      %2838 = vmatpush.bf16.msra.mxu0 %v2804
      %2839 = vmatpush.bf16.msra.mxu0 %v2803
      %2840 = vmatpush.bf16.msra.mxu0 %v2802
      %2841 = vmatpush.bf16.msra.mxu0 %v2801
      %2842 = vmatpush.bf16.msra.mxu0 %v2800
      %2843 = vmatpush.bf16.msra.mxu0 %v2799
      %2844 = vmatpush.bf16.msra.mxu0 %v2798
      %2845 = vmatmul.bf16.gmra.mxu0 %v2747
      %v2846 = vpop.f32.mrf.mxu0
      %v2847 = vadd.f32 0.0, %v2846
      %v2848 = vpop.f32.mrf.mxu0
      %v2849 = vadd.f32 0.0, %v2848
      %2850 = vdwg.mxu0
      %2851 = vmatpush.bf16.msra.mxu0 0
      %2852 = vmatpush.bf16.msra.mxu0 0
      %2853 = vmatpush.bf16.msra.mxu0 0
      %2854 = vmatpush.bf16.msra.mxu0 0
      %2855 = vmatpush.bf16.msra.mxu0 %v2809
      %2856 = vmatpush.bf16.msra.mxu0 %v2808
      %2857 = vmatpush.bf16.msra.mxu0 %v2807
      %2858 = vmatpush.bf16.msra.mxu0 %v2806
      %2859 = vmatmul.bf16.gmra.mxu0 %v2835
      %v2860 = vpop.f32.mrf.mxu0
      %v2861 = vadd.f32 %v2847, %v2860
      %v2862 = vpop.f32.mrf.mxu0
      %v2863 = vadd.f32 %v2849, %v2862
      %2864 = vdwg.mxu0
      %2865 = vmatpush.bf16.msra.mxu0 %v2781
      %2866 = vmatpush.bf16.msra.mxu0 %v2777
      %2867 = vmatpush.bf16.msra.mxu0 %v2773
      %2868 = vmatpush.bf16.msra.mxu0 %v2769
      %2869 = vmatpush.bf16.msra.mxu0 %v2765
      %2870 = vmatpush.bf16.msra.mxu0 %v2761
      %2871 = vmatpush.bf16.msra.mxu0 %v2757
      %2872 = vmatpush.bf16.msra.mxu0 %v2753
      %2873 = vmatmul.bf16.gmra.mxu0 %v2747
      %v2874 = vpop.f32.mrf.mxu0
      %v2875 = vadd.f32 0.0, %v2874
      %v2876 = vpop.f32.mrf.mxu0
      %v2877 = vadd.f32 0.0, %v2876
      %2878 = vdwg.mxu0
      %2879 = vmatpush.bf16.msra.mxu0 0
      %2880 = vmatpush.bf16.msra.mxu0 0
      %2881 = vmatpush.bf16.msra.mxu0 0
      %2882 = vmatpush.bf16.msra.mxu0 0
      %2883 = vmatpush.bf16.msra.mxu0 %v2797
      %2884 = vmatpush.bf16.msra.mxu0 %v2793
      %2885 = vmatpush.bf16.msra.mxu0 %v2789
      %2886 = vmatpush.bf16.msra.mxu0 %v2785
      %2887 = vmatmul.bf16.gmra.mxu0 %v2835
      %v2888 = vpop.f32.mrf.mxu0
      %v2889 = vadd.f32 %v2875, %v2888
      %v2890 = vpop.f32.mrf.mxu0
      %v2891 = vadd.f32 %v2877, %v2890
      %2892 = vdwg.mxu0
      %v2893 = vadd.f32 %v2734, %v2861
      %v2894 = vadd.f32 %v2735, %v2889
      %v2895 = vadd.f32 %v2736, %v2863
      %v2896 = vadd.f32 %v2737, %v2891
      %v2897 = vpack.c.bf16 %v2894, %v2893
      %v2898 = vpack.c.bf16 %v2896, %v2895
      %vm2899 = vcmask 130052
      %vm2900 = vmor %vm2899, %vm344
      %2901 = vst.msk [vmem:[%s341] sm:$0xff] %vm2900, %v2897
      %vm2902 = vcmask 1041408
      %vm2903 = vcmask 128004
      %vm2904 = vmor %vm2903, %vm2902
      %2905 = vst.msk [vmem:[%s341 + $0x8] sm:$0x33] %vm2904, %v2898
      %p2906 = scmp.lt.s32.totalorder %s23, 1
      %s2907 = scalar_select %p2906, %s23, 1
      %p2908 = scmp.lt.s32.totalorder %s24, 1
      %s2909 = scalar_select %p2908, %s24, 1
      %s2910 = smul.addr %s2909, 4
      %s2911 = smul.addr %s2907, 8
      %s2912 = sadd.s32 %s2910, %s2911
      %s2913 = smul.addr %s2912, 4
      %s2914 = scalar_lea.vmem %s8, %s2913
      // Predicated region
      $region53: #{super_resolution_forward.1} parent=51 // pred_check
        %p2915 = pneg %p226
      $region54: #{super_resolution_forward.1} parent=51 // pred_check_branch
        %2917 = sbr.rel (%p2915) target = $region56
      $region55: #{super_resolution_forward.1} parent=51 // pred_region
        _
      $region56: #{super_resolution_forward.1} parent=51 // pred_fallthru
        _
    $region52: #{super_resolution_forward.1} parent=5 // pred_fallthru
      _
    %p2918 = scmp.le.s32.totalorder 2, %s14
    // Predicated region
    $region57: #{super_resolution_forward.1} parent=5 // pred_check
      %p2919 = pneg %p2918
    $region58: #{super_resolution_forward.1} parent=5 // pred_check_branch
      %2921 = sbr.rel (%p2919) target = $region60
    $region59: #{super_resolution_forward.1} parent=5 // pred_region
      %s2922 = ssub.s32 %s14, 2
      // Predicated region
      $region61: #{super_resolution_forward.1} parent=59 // pred_check
        %p2923 = pneg %p232
      $region62: #{super_resolution_forward.1} parent=59 // pred_check_branch
        %2925 = sbr.rel (%p2923) target = $region64
      $region63: #{super_resolution_forward.1} parent=59 // pred_region
        %p2926 = scmp.lt.s32.totalorder %s25, 1
        %s2927 = scalar_select %p2926, %s25, 1
        %p2928 = scmp.lt.s32.totalorder %s26, 1
        %s2929 = scalar_select %p2928, %s26, 1
        %s2930 = smul.addr %s2929, 4
        %s2931 = smul.addr %s2927, 8
        %s2932 = sadd.s32 %s2930, %s2931
        %s2933 = smul.addr %s2932, 4
        %s2934 = scalar_lea.vmem %s8, %s2933
      $region64: #{super_resolution_forward.1} parent=59 // pred_fallthru
        _
    $region60: #{super_resolution_forward.1} parent=5 // pred_fallthru
      _
  $region6: #{super_resolution_forward.1} parent=0 // loop_footer
    %s18 = sadd.s32 1, %s14
  $region7: #{super_resolution_forward.1} parent=0 // loop_footer_branch
    %13 = sbr.rel target = $region3
  $region8: #{super_resolution_forward.1} parent=0 // loop_exit
    _

</llo_original>
